<compile_context>
chip_gen: v7x
topology: tpu7x:2x2x1
jax: 0.10.0
libtpu: 0.0.40
codegen_flags: <defaults>
</compile_context>

<pallas_src>
import jax
import jax.numpy as jnp
from jax.experimental import pallas as pl
from jax.experimental.pallas import tpu as pltpu

TILE_B = 128            # rows per MXU pass / per grid step
D_IN = 28 * 28          # 784
H1, H2, H3 = 512, 256, 128
H4 = 60                 # logical width of layer 4 (PyTorch)
H4_PAD = 128            # padded, lane-aligned width
N_OUT = 10
N_OUT_PAD = 128         # lane-dense output width (sliced to 10 in wrapper)


def mlp_kernel(x_ref,
               w1_ref, b1_ref,
               w2_ref, b2_ref,
               w3_ref, b3_ref,
               w4_ref, b4_ref,
               w5_ref, b5_ref,
               o_ref):
    """Fused 5-layer MLP on one batch tile.

    x_ref: (TILE_B, 784) bf16.  Weights bf16 (MXU operands), biases f32.
    Matmuls accumulate in f32 on the MXU; bias-add + ReLU run in f32 on the VPU.
    Dropout layers are identity (eval mode).
    """
    h = jnp.dot(x_ref[...], w1_ref[...], preferred_element_type=jnp.float32)   # (B, 512)
    h = jnp.maximum(h + b1_ref[...], 0.0)

    h = jnp.dot(h.astype(jnp.bfloat16), w2_ref[...],
                preferred_element_type=jnp.float32)                            # (B, 256)
    h = jnp.maximum(h + b2_ref[...], 0.0)

    h = jnp.dot(h.astype(jnp.bfloat16), w3_ref[...],
                preferred_element_type=jnp.float32)                            # (B, 128)
    h = jnp.maximum(h + b3_ref[...], 0.0)

    h = jnp.dot(h.astype(jnp.bfloat16), w4_ref[...],
                preferred_element_type=jnp.float32)                            # (B, 128) padded
    h = jnp.maximum(h + b4_ref[...], 0.0)

    h = jnp.dot(h.astype(jnp.bfloat16), w5_ref[...],
                preferred_element_type=jnp.float32)                            # (B, 128) padded
    o_ref[...] = h + b5_ref[...]


def mlp_forward(x_nchw, params):
    """x_nchw: (B, 1, 28, 28). Returns logits (B, 10) float32."""
    B = x_nchw.shape[0]
    x2d = x_nchw.reshape(B, -1).astype(jnp.bfloat16)        # nn.Flatten + bf16 MXU operand

    # Pad batch to a multiple of TILE_B (padded rows are discarded at the end).
    B_pad = ((B + TILE_B - 1) // TILE_B) * TILE_B
    if B_pad != B:
        x2d = jnp.pad(x2d, ((0, B_pad - B), (0, 0)))

    flat = []
    for w, b in params:
        flat.extend([w, b])

    n_weight_elems = sum(int(w.size) for w, _ in params)
    n_bias_elems = sum(int(b.size) for _, b in params)
    cost = pl.CostEstimate(
        flops=2 * B_pad * n_weight_elems,
        transcendentals=0,
        bytes_accessed=(2 * n_weight_elems + 4 * n_bias_elems
                        + 2 * B_pad * D_IN + 4 * B_pad * N_OUT_PAD),
    )

    grid = (B_pad // TILE_B,)
    in_specs = [pl.BlockSpec((TILE_B, D_IN), lambda i: (i, 0))]
    for arr in flat:
        # Constant index_map -> block index never changes -> weights/biases stay
        # VMEM-resident across grid steps (no re-DMA).
        in_specs.append(pl.BlockSpec(arr.shape, lambda i: (0, 0)))

    out = pl.pallas_call(
        mlp_kernel,
        out_shape=jax.ShapeDtypeStruct((B_pad, N_OUT_PAD), jnp.float32),
        grid=grid,
        in_specs=in_specs,
        out_specs=pl.BlockSpec((TILE_B, N_OUT_PAD), lambda i: (i, 0)),
        compiler_params=pltpu.CompilerParams(
            dimension_semantics=("parallel",),   # batch axis -> both v7x TensorCores
        ),
        cost_estimate=cost,
    )(x2d, *flat)

    return out[:B, :N_OUT]


def init_params(key):
    """nn.Linear-style init U(-1/sqrt(fan_in), 1/sqrt(fan_in)).

    Weights stored transposed vs PyTorch, i.e. (in_features, out_features), so the
    kernel computes y = x @ W + b.  Layer-4/5 shapes are zero-padded to lane-aligned
    widths (60->128 hidden, 10->128 output); the pads are mathematically inert.
    Weights cast to bf16 (MXU operands); biases kept f32.
    """
    logical = [(D_IN, H1), (H1, H2), (H2, H3), (H3, H4), (H4, N_OUT)]
    padded = [(D_IN, H1), (H1, H2), (H2, H3), (H3, H4_PAD), (H4_PAD, N_OUT_PAD)]
    params = []
    for (fi, fo), (pi, po) in zip(logical, padded):
        key, kw, kb = jax.random.split(key, 3)
        bound = 1.0 / jnp.sqrt(float(fi))
        w = jax.random.uniform(kw, (fi, fo), jnp.float32, -bound, bound)
        b = jax.random.uniform(kb, (1, fo), jnp.float32, -bound, bound)
        w = jnp.pad(w, ((0, pi - fi), (0, po - fo)))
        b = jnp.pad(b, ((0, 0), (0, po - fo)))
        params.append((w.astype(jnp.bfloat16), b))
    return params


def reference_forward(x_nchw, params):
    """Plain-JAX reference using the same bf16 weights / f32 accumulation."""
    h = x_nchw.reshape(x_nchw.shape[0], -1).astype(jnp.bfloat16)
    for i, (w, b) in enumerate(params):
        h = jnp.dot(h, w, preferred_element_type=jnp.float32) + b
        if i < len(params) - 1:
            h = jnp.maximum(h, 0.0).astype(jnp.bfloat16)
    return h[:, :N_OUT]


if __name__ == "__main__":
    key = jax.random.PRNGKey(0)
    key, kx = jax.random.split(key)

    # Spatial dims are fixed at 28x28 by Linear(784, 512).  B=200 exercises both the
    # batch grid (2 steps of TILE_B=128) and the batch-padding path.
    B = 200
    x = jax.random.normal(kx, (B, 1, 28, 28), dtype=jnp.float32)
    params = init_params(key)

    out = jax.block_until_ready(mlp_forward(x, params))
    ref = jax.block_until_ready(reference_forward(x, params))

    assert out.shape == (B, N_OUT), out.shape
    assert jnp.allclose(out, ref, atol=1e-3, rtol=1e-3), float(jnp.max(jnp.abs(out - ref)))

    print("KERNEL_OK")
</pallas_src>

<mosaic_0001>
module attributes {stable_mosaic.version = 11 : i64} {
  func.func @mlp_kernel(%arg0: i32, %arg1: memref<128x784xbf16, #tpu.memory_space<vmem>>, %arg2: memref<784x512xbf16, #tpu.memory_space<vmem>>, %arg3: memref<1x512xf32, #tpu.memory_space<vmem>>, %arg4: memref<512x256xbf16, #tpu.memory_space<vmem>>, %arg5: memref<1x256xf32, #tpu.memory_space<vmem>>, %arg6: memref<256x128xbf16, #tpu.memory_space<vmem>>, %arg7: memref<1x128xf32, #tpu.memory_space<vmem>>, %arg8: memref<128x128xbf16, #tpu.memory_space<vmem>>, %arg9: memref<1x128xf32, #tpu.memory_space<vmem>>, %arg10: memref<128x128xbf16, #tpu.memory_space<vmem>>, %arg11: memref<1x128xf32, #tpu.memory_space<vmem>>, %arg12: memref<128x128xf32, #tpu.memory_space<vmem>>) attributes {dimension_semantics = [#tpu.dimension_semantics<parallel>], iteration_bounds = array<i64: 2>, scalar_prefetch = 0 : i64, scratch_operands = 0 : i64, tpu.core_type = #tpu.core_type<tc>, window_params = [{transform_indices = @transform_0, window_bounds = array<i64: 128, 784>}, {pipeline_mode = #tpu.pipeline_mode<synchronous>, transform_indices = @transform_1, window_bounds = array<i64: 784, 512>}, {pipeline_mode = #tpu.pipeline_mode<synchronous>, transform_indices = @transform_2, window_bounds = array<i64: 1, 512>}, {pipeline_mode = #tpu.pipeline_mode<synchronous>, transform_indices = @transform_3, window_bounds = array<i64: 512, 256>}, {pipeline_mode = #tpu.pipeline_mode<synchronous>, transform_indices = @transform_4, window_bounds = array<i64: 1, 256>}, {pipeline_mode = #tpu.pipeline_mode<synchronous>, transform_indices = @transform_5, window_bounds = array<i64: 256, 128>}, {pipeline_mode = #tpu.pipeline_mode<synchronous>, transform_indices = @transform_6, window_bounds = array<i64: 1, 128>}, {pipeline_mode = #tpu.pipeline_mode<synchronous>, transform_indices = @transform_7, window_bounds = array<i64: 128, 128>}, {pipeline_mode = #tpu.pipeline_mode<synchronous>, transform_indices = @transform_8, window_bounds = array<i64: 1, 128>}, {pipeline_mode = #tpu.pipeline_mode<synchronous>, transform_indices = @transform_9, window_bounds = array<i64: 128, 128>}, {pipeline_mode = #tpu.pipeline_mode<synchronous>, transform_indices = @transform_10, window_bounds = array<i64: 1, 128>}, {transform_indices = @transform_11, window_bounds = array<i64: 128, 128>}]} {
    %c0 = arith.constant 0 : index
    %c0_0 = arith.constant 0 : index
    %0 = vector.load %arg1[%c0, %c0_0] : memref<128x784xbf16, #tpu.memory_space<vmem>>, vector<128x784xbf16>
    %c0_1 = arith.constant 0 : index
    %c0_2 = arith.constant 0 : index
    %1 = vector.load %arg2[%c0_1, %c0_2] : memref<784x512xbf16, #tpu.memory_space<vmem>>, vector<784x512xbf16>
    %cst = arith.constant dense<0.000000e+00> : vector<128x512xf32>
    %2 = tpu.matmul %0, %1, %cst {dimension_numbers = #tpu.dot_dimension_numbers<[1], [0], [0], [1], [0, 0, 1, 1], [], []>} : vector<128x784xbf16>, vector<784x512xbf16>, vector<128x512xf32> -> vector<128x512xf32>
    %c0_3 = arith.constant 0 : index
    %c0_4 = arith.constant 0 : index
    %3 = vector.load %arg3[%c0_3, %c0_4] : memref<1x512xf32, #tpu.memory_space<vmem>>, vector<1x512xf32>
    %4 = vector.broadcast %3 : vector<1x512xf32> to vector<128x512xf32>
    %5 = arith.addf %2, %4 : vector<128x512xf32>
    %cst_5 = arith.constant 0.000000e+00 : f32
    %6 = vector.broadcast %cst_5 : f32 to vector<128x512xf32>
    %7 = arith.maximumf %5, %6 : vector<128x512xf32>
    %8 = arith.truncf %7 : vector<128x512xf32> to vector<128x512xbf16>
    %c0_6 = arith.constant 0 : index
    %c0_7 = arith.constant 0 : index
    %9 = vector.load %arg4[%c0_6, %c0_7] : memref<512x256xbf16, #tpu.memory_space<vmem>>, vector<512x256xbf16>
    %cst_8 = arith.constant dense<0.000000e+00> : vector<128x256xf32>
    %10 = tpu.matmul %8, %9, %cst_8 {dimension_numbers = #tpu.dot_dimension_numbers<[1], [0], [0], [1], [0, 0, 1, 1], [], []>} : vector<128x512xbf16>, vector<512x256xbf16>, vector<128x256xf32> -> vector<128x256xf32>
    %c0_9 = arith.constant 0 : index
    %c0_10 = arith.constant 0 : index
    %11 = vector.load %arg5[%c0_9, %c0_10] : memref<1x256xf32, #tpu.memory_space<vmem>>, vector<1x256xf32>
    %12 = vector.broadcast %11 : vector<1x256xf32> to vector<128x256xf32>
    %13 = arith.addf %10, %12 : vector<128x256xf32>
    %cst_11 = arith.constant 0.000000e+00 : f32
    %14 = vector.broadcast %cst_11 : f32 to vector<128x256xf32>
    %15 = arith.maximumf %13, %14 : vector<128x256xf32>
    %16 = arith.truncf %15 : vector<128x256xf32> to vector<128x256xbf16>
    %c0_12 = arith.constant 0 : index
    %c0_13 = arith.constant 0 : index
    %17 = vector.load %arg6[%c0_12, %c0_13] : memref<256x128xbf16, #tpu.memory_space<vmem>>, vector<256x128xbf16>
    %cst_14 = arith.constant dense<0.000000e+00> : vector<128x128xf32>
    %18 = tpu.matmul %16, %17, %cst_14 {dimension_numbers = #tpu.dot_dimension_numbers<[1], [0], [0], [1], [0, 0, 1, 1], [], []>} : vector<128x256xbf16>, vector<256x128xbf16>, vector<128x128xf32> -> vector<128x128xf32>
    %c0_15 = arith.constant 0 : index
    %c0_16 = arith.constant 0 : index
    %19 = vector.load %arg7[%c0_15, %c0_16] : memref<1x128xf32, #tpu.memory_space<vmem>>, vector<1x128xf32>
    %20 = vector.broadcast %19 : vector<1x128xf32> to vector<128x128xf32>
    %21 = arith.addf %18, %20 : vector<128x128xf32>
    %cst_17 = arith.constant 0.000000e+00 : f32
    %22 = vector.broadcast %cst_17 : f32 to vector<128x128xf32>
    %23 = arith.maximumf %21, %22 : vector<128x128xf32>
    %24 = arith.truncf %23 : vector<128x128xf32> to vector<128x128xbf16>
    %c0_18 = arith.constant 0 : index
    %c0_19 = arith.constant 0 : index
    %25 = vector.load %arg8[%c0_18, %c0_19] : memref<128x128xbf16, #tpu.memory_space<vmem>>, vector<128x128xbf16>
    %cst_20 = arith.constant dense<0.000000e+00> : vector<128x128xf32>
    %26 = tpu.matmul %24, %25, %cst_20 {dimension_numbers = #tpu.dot_dimension_numbers<[1], [0], [0], [1], [0, 0, 1, 1], [], []>} : vector<128x128xbf16>, vector<128x128xbf16>, vector<128x128xf32> -> vector<128x128xf32>
    %c0_21 = arith.constant 0 : index
    %c0_22 = arith.constant 0 : index
    %27 = vector.load %arg9[%c0_21, %c0_22] : memref<1x128xf32, #tpu.memory_space<vmem>>, vector<1x128xf32>
    %28 = vector.broadcast %27 : vector<1x128xf32> to vector<128x128xf32>
    %29 = arith.addf %26, %28 : vector<128x128xf32>
    %cst_23 = arith.constant 0.000000e+00 : f32
    %30 = vector.broadcast %cst_23 : f32 to vector<128x128xf32>
    %31 = arith.maximumf %29, %30 : vector<128x128xf32>
    %32 = arith.truncf %31 : vector<128x128xf32> to vector<128x128xbf16>
    %c0_24 = arith.constant 0 : index
    %c0_25 = arith.constant 0 : index
    %33 = vector.load %arg10[%c0_24, %c0_25] : memref<128x128xbf16, #tpu.memory_space<vmem>>, vector<128x128xbf16>
    %cst_26 = arith.constant dense<0.000000e+00> : vector<128x128xf32>
    %34 = tpu.matmul %32, %33, %cst_26 {dimension_numbers = #tpu.dot_dimension_numbers<[1], [0], [0], [1], [0, 0, 1, 1], [], []>} : vector<128x128xbf16>, vector<128x128xbf16>, vector<128x128xf32> -> vector<128x128xf32>
    %c0_27 = arith.constant 0 : index
    %c0_28 = arith.constant 0 : index
    %35 = vector.load %arg11[%c0_27, %c0_28] : memref<1x128xf32, #tpu.memory_space<vmem>>, vector<1x128xf32>
    %36 = vector.broadcast %35 : vector<1x128xf32> to vector<128x128xf32>
    %37 = arith.addf %34, %36 : vector<128x128xf32>
    %c0_29 = arith.constant 0 : index
    %c0_30 = arith.constant 0 : index
    %38 = vector.load %arg12[%c0_29, %c0_30] : memref<128x128xf32, #tpu.memory_space<vmem>>, vector<128x128xf32>
    tpu.vector_store %arg12[%c0_29, %c0_30], %37 {strides = array<i32>} : memref<128x128xf32, #tpu.memory_space<vmem>>, vector<128x128xf32>,
    return
  }
  func.func @transform_0(%arg0: i32) -> (i32, i32) {
    %c0_i32 = arith.constant 0 : i32
    %c0_i32_0 = arith.constant 0 : i32
    return %arg0, %c0_i32 : i32, i32
  }
  func.func @transform_1(%arg0: i32) -> (i32, i32) {
    %c0_i32 = arith.constant 0 : i32
    %c0_i32_0 = arith.constant 0 : i32
    %c0_i32_1 = arith.constant 0 : i32
    return %c0_i32, %c0_i32_0 : i32, i32
  }
  func.func @transform_2(%arg0: i32) -> (i32, i32) {
    %c0_i32 = arith.constant 0 : i32
    %c0_i32_0 = arith.constant 0 : i32
    %c0_i32_1 = arith.constant 0 : i32
    return %c0_i32, %c0_i32_0 : i32, i32
  }
  func.func @transform_3(%arg0: i32) -> (i32, i32) {
    %c0_i32 = arith.constant 0 : i32
    %c0_i32_0 = arith.constant 0 : i32
    %c0_i32_1 = arith.constant 0 : i32
    return %c0_i32, %c0_i32_0 : i32, i32
  }
  func.func @transform_4(%arg0: i32) -> (i32, i32) {
    %c0_i32 = arith.constant 0 : i32
    %c0_i32_0 = arith.constant 0 : i32
    %c0_i32_1 = arith.constant 0 : i32
    return %c0_i32, %c0_i32_0 : i32, i32
  }
  func.func @transform_5(%arg0: i32) -> (i32, i32) {
    %c0_i32 = arith.constant 0 : i32
    %c0_i32_0 = arith.constant 0 : i32
    %c0_i32_1 = arith.constant 0 : i32
    return %c0_i32, %c0_i32_0 : i32, i32
  }
  func.func @transform_6(%arg0: i32) -> (i32, i32) {
    %c0_i32 = arith.constant 0 : i32
    %c0_i32_0 = arith.constant 0 : i32
    %c0_i32_1 = arith.constant 0 : i32
    return %c0_i32, %c0_i32_0 : i32, i32
  }
  func.func @transform_7(%arg0: i32) -> (i32, i32) {
    %c0_i32 = arith.constant 0 : i32
    %c0_i32_0 = arith.constant 0 : i32
    %c0_i32_1 = arith.constant 0 : i32
    return %c0_i32, %c0_i32_0 : i32, i32
  }
  func.func @transform_8(%arg0: i32) -> (i32, i32) {
    %c0_i32 = arith.constant 0 : i32
    %c0_i32_0 = arith.constant 0 : i32
    %c0_i32_1 = arith.constant 0 : i32
    return %c0_i32, %c0_i32_0 : i32, i32
  }
  func.func @transform_9(%arg0: i32) -> (i32, i32) {
    %c0_i32 = arith.constant 0 : i32
    %c0_i32_0 = arith.constant 0 : i32
    %c0_i32_1 = arith.constant 0 : i32
    return %c0_i32, %c0_i32_0 : i32, i32
  }
  func.func @transform_10(%arg0: i32) -> (i32, i32) {
    %c0_i32 = arith.constant 0 : i32
    %c0_i32_0 = arith.constant 0 : i32
    %c0_i32_1 = arith.constant 0 : i32
    return %c0_i32, %c0_i32_0 : i32, i32
  }
  func.func @transform_11(%arg0: i32) -> (i32, i32) {
    %c0_i32 = arith.constant 0 : i32
    %c0_i32_0 = arith.constant 0 : i32
    return %arg0, %c0_i32 : i32, i32
  }
}

</mosaic_0001>

<llo_original>
// kernel: tpu_custom_call.1
$region0: #{tpu_custom_call.1}
  #allocation0 [shape = 'u32[]', space=smem, size = 0x4, offset = 0x4, fixed_abs, tag = 'smem constant byte address 0x4 - core index']
  #allocation1 [shape = 'u32[144,128]{1,0:T(1,128)}', space=vmem, size = 0x12000, scoped, tag = 'internal scratch']
  %s0 = inlined_call_operand.vmem [shape: bf16[256,784], index: 0, kind: input, shape index: {}]
  %s1 = inlined_call_operand.vmem [shape: bf16[784,512], index: 1, kind: input, shape index: {}]
  %s2 = inlined_call_operand.hbm [shape: f32[1,512], index: 2, kind: input, shape index: {}]
  %s3 = inlined_call_operand.hbm [shape: bf16[512,256], index: 3, kind: input, shape index: {}]
  %s4 = inlined_call_operand.vmem [shape: f32[1,256], index: 4, kind: input, shape index: {}]
  %s5 = inlined_call_operand.vmem [shape: bf16[256,128], index: 5, kind: input, shape index: {}]
  %s6 = inlined_call_operand.hbm [shape: f32[1,128], index: 6, kind: input, shape index: {}]
  %s7 = inlined_call_operand.hbm [shape: bf16[128,128], index: 7, kind: input, shape index: {}]
  %s8 = inlined_call_operand.hbm [shape: f32[1,128], index: 8, kind: input, shape index: {}]
  %s9 = inlined_call_operand.hbm [shape: bf16[128,128], index: 9, kind: input, shape index: {}]
  %s10 = inlined_call_operand.vmem [shape: f32[1,128], index: 10, kind: input, shape index: {}]
  %s11 = inlined_call_operand.hbm [shape: f32[256,128], index: 11, kind: output, shape index: {}]
  %s12 = sld [smem:[#allocation0]]
  $region101: #{tpu_custom_call.1} parent=0
    _
  %s14 = ssub.s32 1, %s12
  %s15 = scalar_select 0, %s14, %s12
  $region1: #{tpu_custom_call.1} parent=0
    #allocation2 [shape = 'u8[2048]{0}', space=vmem, size = 0x800, scoped, tag = 'input window, operand 2, single buffered']
    #allocation3 [shape = 's32[2]{0}', space=sflag, size = 0x8, scoped, tag = 'scoped memory for tpu_custom_call.1']
    #allocation4 [shape = 's32[2]{0}', space=sflag, size = 0x8, scoped, tag = 'scoped memory for tpu_custom_call.1']
    #allocation5 [shape = 'u8[262144]{0}', space=vmem, size = 0x40000, scoped, tag = 'input window, operand 3, single buffered']
    #allocation6 [shape = 's32[1]{0}', space=sflag, size = 0x4, scoped, tag = 'scoped memory for tpu_custom_call.1']
    #allocation7 [shape = 'u8[512]{0}', space=vmem, size = 0x400, scoped, tag = 'input window, operand 6, single buffered']
    #allocation8 [shape = 'u8[32768]{0}', space=vmem, size = 0x8000, scoped, tag = 'input window, operand 7, single buffered']
    #allocation9 [shape = 's32[1]{0}', space=sflag, size = 0x4, scoped, tag = 'scoped memory for tpu_custom_call.1']
    #allocation10 [shape = 'u8[512]{0}', space=vmem, size = 0x400, scoped, tag = 'input window, operand 8, single buffered']
    #allocation11 [shape = 'u8[32768]{0}', space=vmem, size = 0x8000, scoped, tag = 'input window, operand 9, single buffered']
    #allocation12 [shape = 's32[1]{0}', space=sflag, size = 0x4, scoped, tag = 'scoped memory for tpu_custom_call.1']
    #allocation13 [shape = 'u8[131072]{0}', space=vmem, size = 0x20000, scoped, tag = 'output window, operand 0']
    %16 = vsyncpa [#allocation3], 0
    %17 = vsyncpa [#allocation6], 0
    %18 = vsyncpa [#allocation9], 0
    %19 = vsyncpa [#allocation12], 0
    %20 = vsyncpa [#allocation4], 0
    %s21 = scalar_lea.sflag [#allocation4], 1
    %22 = vsyncpa %s21, 0
    loop: start=0, step=1, limit=4
    $region2: #{tpu_custom_call.1} parent=1 // loop_pre_header
      _
    $region3: #{tpu_custom_call.1} parent=1 // loop_header
      %s24 = sphi 0, %s28
      %p25 = scmp.ge.s32.totalorder %s24, 4
      %s34 = sphi 0, %s36
      %s37 = sphi 0, %s34
      %s38 = sphi 0, %s37
      %s54 = sphi 0, %s38
      %s58 = sphi 0, %s58
      %s60 = sphi 0, %s58
      %s61 = sphi 0, %s60
      %s75 = sphi 0, %s61
      %s79 = sphi 0, %s79
      %s81 = sphi 0, %s79
      %s82 = sphi 0, %s81
      %s96 = sphi 0, %s82
      %s100 = sphi 0, %s100
      %s102 = sphi 0, %s100
      %s103 = sphi 0, %s102
      %s117 = sphi 0, %s103
      %s121 = sphi 0, %s121
      %s123 = sphi 0, %s121
      %s124 = sphi 0, %s123
      %s138 = sphi 0, %s124
      %s142 = sphi 0, %s142
      %s144 = sphi 0, %s142
      %s145 = sphi 0, %s144
      %s159 = sphi 0, %s145
      %s163 = sphi 0, %s163
      %s165 = sphi 0, %s163
      %s166 = sphi 0, %s165
      %s180 = sphi 0, %s166
      %s184 = sphi 0, %s184
      %s186 = sphi 0, %s184
      %s187 = sphi 0, %s186
      %s201 = sphi 0, %s187
      %s205 = sphi 0, %s205
      %s207 = sphi 0, %s205
      %s208 = sphi 0, %s207
      %s222 = sphi 0, %s208
      %s226 = sphi 0, %s226
      %s228 = sphi 0, %s226
      %s229 = sphi 0, %s228
      %s243 = sphi 0, %s229
      %s247 = sphi 0, %s247
      %s249 = sphi 0, %s247
      %s250 = sphi 0, %s249
      %s264 = sphi 0, %s250
      %s270 = sphi 0, %s272
      %s273 = sphi 0, %s270
      %s274 = sphi 0, %s273
      %s290 = sphi 0, %s274
    $region4: #{tpu_custom_call.1} parent=1 // loop_header_branch
      %27 = sbr.rel (%p25) target = $region8
    $region5: #{tpu_custom_call.1} parent=1 // loop_body
      %s29 = ssub.s32 %s24, 1
      %s30 = ssub.s32 %s24, 2
      %s31 = sadd.s32 %s24, 1
      %s32 = ssub.s32 %s24, %s31
      %p33 = scmp.eq.s32.totalorder %s32, 0
      %s35 = sadd.s32 %s34, 1
      %s36 = scalar_select %p33, %s34, %s35
      %p39 = pneg %p33
      %p40 = scmp.eq.s32.totalorder %s24, 1
      %p41 = por %p39, %p40
      %p42 = scmp.ne.s32.totalorder %s34, %s37
      %p43 = scmp.eq.s32.totalorder %s24, 0
      %p44 = por %p42, %p43
      %p45 = scmp.ne.s32.totalorder %s34, %s37
      %p46 = scmp.eq.s32.totalorder %s29, 1
      %p47 = por %p45, %p46
      %p48 = scmp.ne.s32.totalorder %s37, %s38
      %p49 = scmp.eq.s32.totalorder %s29, 0
      %p50 = por %p48, %p49
      %p51 = scmp.ne.s32.totalorder %s37, %s38
      %p52 = scmp.eq.s32.totalorder %s30, 1
      %p53 = por %p51, %p52
      %p55 = scmp.ne.s32.totalorder %s38, %s54
      %p56 = scmp.eq.s32.totalorder %s30, 0
      %p57 = por %p55, %p56
      %s59 = sadd.s32 %s58, 1
      %p62 = scmp.eq.s32.totalorder %s24, 1
      %p63 = scmp.ne.s32.totalorder %s58, %s60
      %p64 = scmp.eq.s32.totalorder %s24, 0
      %p65 = por %p63, %p64
      %p66 = scmp.ne.s32.totalorder %s58, %s60
      %p67 = scmp.eq.s32.totalorder %s29, 1
      %p68 = por %p66, %p67
      %p69 = scmp.ne.s32.totalorder %s60, %s61
      %p70 = scmp.eq.s32.totalorder %s29, 0
      %p71 = por %p69, %p70
      %p72 = scmp.ne.s32.totalorder %s60, %s61
      %p73 = scmp.eq.s32.totalorder %s30, 1
      %p74 = por %p72, %p73
      %p76 = scmp.ne.s32.totalorder %s61, %s75
      %p77 = scmp.eq.s32.totalorder %s30, 0
      %p78 = por %p76, %p77
      %s80 = sadd.s32 %s79, 1
      %p83 = scmp.eq.s32.totalorder %s24, 1
      %p84 = scmp.ne.s32.totalorder %s79, %s81
      %p85 = scmp.eq.s32.totalorder %s24, 0
      %p86 = por %p84, %p85
      %p87 = scmp.ne.s32.totalorder %s79, %s81
      %p88 = scmp.eq.s32.totalorder %s29, 1
      %p89 = por %p87, %p88
      %p90 = scmp.ne.s32.totalorder %s81, %s82
      %p91 = scmp.eq.s32.totalorder %s29, 0
      %p92 = por %p90, %p91
      %p93 = scmp.ne.s32.totalorder %s81, %s82
      %p94 = scmp.eq.s32.totalorder %s30, 1
      %p95 = por %p93, %p94
      %p97 = scmp.ne.s32.totalorder %s82, %s96
      %p98 = scmp.eq.s32.totalorder %s30, 0
      %p99 = por %p97, %p98
      %s101 = sadd.s32 %s100, 1
      %p104 = scmp.eq.s32.totalorder %s24, 1
      %p105 = scmp.ne.s32.totalorder %s100, %s102
      %p106 = scmp.eq.s32.totalorder %s24, 0
      %p107 = por %p105, %p106
      %p108 = scmp.ne.s32.totalorder %s100, %s102
      %p109 = scmp.eq.s32.totalorder %s29, 1
      %p110 = por %p108, %p109
      %p111 = scmp.ne.s32.totalorder %s102, %s103
      %p112 = scmp.eq.s32.totalorder %s29, 0
      %p113 = por %p111, %p112
      %p114 = scmp.ne.s32.totalorder %s102, %s103
      %p115 = scmp.eq.s32.totalorder %s30, 1
      %p116 = por %p114, %p115
      %p118 = scmp.ne.s32.totalorder %s103, %s117
      %p119 = scmp.eq.s32.totalorder %s30, 0
      %p120 = por %p118, %p119
      %s122 = sadd.s32 %s121, 1
      %p125 = scmp.eq.s32.totalorder %s24, 1
      %p126 = scmp.ne.s32.totalorder %s121, %s123
      %p127 = scmp.eq.s32.totalorder %s24, 0
      %p128 = por %p126, %p127
      %p129 = scmp.ne.s32.totalorder %s121, %s123
      %p130 = scmp.eq.s32.totalorder %s29, 1
      %p131 = por %p129, %p130
      %p132 = scmp.ne.s32.totalorder %s123, %s124
      %p133 = scmp.eq.s32.totalorder %s29, 0
      %p134 = por %p132, %p133
      %p135 = scmp.ne.s32.totalorder %s123, %s124
      %p136 = scmp.eq.s32.totalorder %s30, 1
      %p137 = por %p135, %p136
      %p139 = scmp.ne.s32.totalorder %s124, %s138
      %p140 = scmp.eq.s32.totalorder %s30, 0
      %p141 = por %p139, %p140
      %s143 = sadd.s32 %s142, 1
      %p146 = scmp.eq.s32.totalorder %s24, 1
      %p147 = scmp.ne.s32.totalorder %s142, %s144
      %p148 = scmp.eq.s32.totalorder %s24, 0
      %p149 = por %p147, %p148
      %p150 = scmp.ne.s32.totalorder %s142, %s144
      %p151 = scmp.eq.s32.totalorder %s29, 1
      %p152 = por %p150, %p151
      %p153 = scmp.ne.s32.totalorder %s144, %s145
      %p154 = scmp.eq.s32.totalorder %s29, 0
      %p155 = por %p153, %p154
      %p156 = scmp.ne.s32.totalorder %s144, %s145
      %p157 = scmp.eq.s32.totalorder %s30, 1
      %p158 = por %p156, %p157
      %p160 = scmp.ne.s32.totalorder %s145, %s159
      %p161 = scmp.eq.s32.totalorder %s30, 0
      %p162 = por %p160, %p161
      %s164 = sadd.s32 %s163, 1
      %p167 = scmp.eq.s32.totalorder %s24, 1
      %p168 = scmp.ne.s32.totalorder %s163, %s165
      %p169 = scmp.eq.s32.totalorder %s24, 0
      %p170 = por %p168, %p169
      %p171 = scmp.ne.s32.totalorder %s163, %s165
      %p172 = scmp.eq.s32.totalorder %s29, 1
      %p173 = por %p171, %p172
      %p174 = scmp.ne.s32.totalorder %s165, %s166
      %p175 = scmp.eq.s32.totalorder %s29, 0
      %p176 = por %p174, %p175
      %p177 = scmp.ne.s32.totalorder %s165, %s166
      %p178 = scmp.eq.s32.totalorder %s30, 1
      %p179 = por %p177, %p178
      %p181 = scmp.ne.s32.totalorder %s166, %s180
      %p182 = scmp.eq.s32.totalorder %s30, 0
      %p183 = por %p181, %p182
      %s185 = sadd.s32 %s184, 1
      %p188 = scmp.eq.s32.totalorder %s24, 1
      %p189 = scmp.ne.s32.totalorder %s184, %s186
      %p190 = scmp.eq.s32.totalorder %s24, 0
      %p191 = por %p189, %p190
      %p192 = scmp.ne.s32.totalorder %s184, %s186
      %p193 = scmp.eq.s32.totalorder %s29, 1
      %p194 = por %p192, %p193
      %p195 = scmp.ne.s32.totalorder %s186, %s187
      %p196 = scmp.eq.s32.totalorder %s29, 0
      %p197 = por %p195, %p196
      %p198 = scmp.ne.s32.totalorder %s186, %s187
      %p199 = scmp.eq.s32.totalorder %s30, 1
      %p200 = por %p198, %p199
      %p202 = scmp.ne.s32.totalorder %s187, %s201
      %p203 = scmp.eq.s32.totalorder %s30, 0
      %p204 = por %p202, %p203
      %s206 = sadd.s32 %s205, 1
      %p209 = scmp.eq.s32.totalorder %s24, 1
      %p210 = scmp.ne.s32.totalorder %s205, %s207
      %p211 = scmp.eq.s32.totalorder %s24, 0
      %p212 = por %p210, %p211
      %p213 = scmp.ne.s32.totalorder %s205, %s207
      %p214 = scmp.eq.s32.totalorder %s29, 1
      %p215 = por %p213, %p214
      %p216 = scmp.ne.s32.totalorder %s207, %s208
      %p217 = scmp.eq.s32.totalorder %s29, 0
      %p218 = por %p216, %p217
      %p219 = scmp.ne.s32.totalorder %s207, %s208
      %p220 = scmp.eq.s32.totalorder %s30, 1
      %p221 = por %p219, %p220
      %p223 = scmp.ne.s32.totalorder %s208, %s222
      %p224 = scmp.eq.s32.totalorder %s30, 0
      %p225 = por %p223, %p224
      %s227 = sadd.s32 %s226, 1
      %p230 = scmp.eq.s32.totalorder %s24, 1
      %p231 = scmp.ne.s32.totalorder %s226, %s228
      %p232 = scmp.eq.s32.totalorder %s24, 0
      %p233 = por %p231, %p232
      %p234 = scmp.ne.s32.totalorder %s226, %s228
      %p235 = scmp.eq.s32.totalorder %s29, 1
      %p236 = por %p234, %p235
      %p237 = scmp.ne.s32.totalorder %s228, %s229
      %p238 = scmp.eq.s32.totalorder %s29, 0
      %p239 = por %p237, %p238
      %p240 = scmp.ne.s32.totalorder %s228, %s229
      %p241 = scmp.eq.s32.totalorder %s30, 1
      %p242 = por %p240, %p241
      %p244 = scmp.ne.s32.totalorder %s229, %s243
      %p245 = scmp.eq.s32.totalorder %s30, 0
      %p246 = por %p244, %p245
      %s248 = sadd.s32 %s247, 1
      %p251 = scmp.eq.s32.totalorder %s24, 1
      %p252 = scmp.ne.s32.totalorder %s247, %s249
      %p253 = scmp.eq.s32.totalorder %s24, 0
      %p254 = por %p252, %p253
      %p255 = scmp.ne.s32.totalorder %s247, %s249
      %p256 = scmp.eq.s32.totalorder %s29, 1
      %p257 = por %p255, %p256
      %p258 = scmp.ne.s32.totalorder %s249, %s250
      %p259 = scmp.eq.s32.totalorder %s29, 0
      %p260 = por %p258, %p259
      %p261 = scmp.ne.s32.totalorder %s249, %s250
      %p262 = scmp.eq.s32.totalorder %s30, 1
      %p263 = por %p261, %p262
      %p265 = scmp.ne.s32.totalorder %s250, %s264
      %p266 = scmp.eq.s32.totalorder %s30, 0
      %p267 = por %p265, %p266
      %s268 = ssub.s32 %s24, %s31
      %p269 = scmp.eq.s32.totalorder %s268, 0
      %s271 = sadd.s32 %s270, 1
      %s272 = scalar_select %p269, %s270, %s271
      %p275 = pneg %p269
      %p276 = scmp.eq.s32.totalorder %s24, 1
      %p277 = por %p275, %p276
      %p278 = scmp.ne.s32.totalorder %s270, %s273
      %p279 = scmp.eq.s32.totalorder %s24, 0
      %p280 = por %p278, %p279
      %p281 = scmp.ne.s32.totalorder %s270, %s273
      %p282 = scmp.eq.s32.totalorder %s29, 1
      %p283 = por %p281, %p282
      %p284 = scmp.ne.s32.totalorder %s273, %s274
      %p285 = scmp.eq.s32.totalorder %s29, 0
      %p286 = por %p284, %p285
      %p287 = scmp.ne.s32.totalorder %s273, %s274
      %p288 = scmp.eq.s32.totalorder %s30, 1
      %p289 = por %p287, %p288
      %p291 = scmp.ne.s32.totalorder %s274, %s290
      %p292 = scmp.eq.s32.totalorder %s30, 0
      %p293 = por %p291, %p292
      %p294 = scmp.le.s32.totalorder 1, %s24
      %p295 = scmp.lt.s32.totalorder %s24, 3
      %p296 = pnand %p294, %p295
      %p297 = pneg %p296
      // Predicated region
      $region9: #{tpu_custom_call.1} parent=5 // pred_check
        _
      $region10: #{tpu_custom_call.1} parent=5 // pred_check_branch
        %299 = sbr.rel (%p296) target = $region12
      $region11: #{tpu_custom_call.1} parent=5 // pred_region
        %s300 = ssub.s32 %s24, 1
        // Predicated region
        $region13: #{tpu_custom_call.1} parent=11 // pred_check
          %p301 = pneg %p71
        $region14: #{tpu_custom_call.1} parent=11 // pred_check_branch
          %303 = sbr.rel (%p301) target = $region16
        $region15: #{tpu_custom_call.1} parent=11 // pred_region
          _
        $region16: #{tpu_custom_call.1} parent=11 // pred_fallthru
          _
        // Predicated region
        $region17: #{tpu_custom_call.1} parent=11 // pred_check
          %p304 = pneg %p92
        $region18: #{tpu_custom_call.1} parent=11 // pred_check_branch
          %306 = sbr.rel (%p304) target = $region20
        $region19: #{tpu_custom_call.1} parent=11 // pred_region
          %s308 = ssub.s32 64, 64
          %309 = vsyncadd [#allocation3], %s308
          %s311 = sshll.u32 [#allocation2], 4
          %s312 = int_to_ptr.vmem [resolvable:$true] %s311
          %314 = dma.hbm_to_vmem [thread:$0]  %s2, 64, %s312, [#allocation3]
        $region20: #{tpu_custom_call.1} parent=11 // pred_fallthru
          _
        // Predicated region
        $region21: #{tpu_custom_call.1} parent=11 // pred_check
          %p315 = pneg %p113
        $region22: #{tpu_custom_call.1} parent=11 // pred_check_branch
          %317 = sbr.rel (%p315) target = $region24
        $region23: #{tpu_custom_call.1} parent=11 // pred_region
          %s319 = ssub.s32 8192, 8192
          %320 = vsyncadd [#allocation6], %s319
          %s321 = sshll.u32 [#allocation5], 4
          %s322 = int_to_ptr.vmem [resolvable:$true] %s321
          %327 = dma.hbm_to_vmem [thread:$0]  %s3, 8192, %s322, [#allocation6], 128, 128, 8
        $region24: #{tpu_custom_call.1} parent=11 // pred_fallthru
          _
        // Predicated region
        $region25: #{tpu_custom_call.1} parent=11 // pred_check
          %p328 = pneg %p134
        $region26: #{tpu_custom_call.1} parent=11 // pred_check_branch
          %330 = sbr.rel (%p328) target = $region28
        $region27: #{tpu_custom_call.1} parent=11 // pred_region
          _
        $region28: #{tpu_custom_call.1} parent=11 // pred_fallthru
          _
        // Predicated region
        $region29: #{tpu_custom_call.1} parent=11 // pred_check
          %p331 = pneg %p155
        $region30: #{tpu_custom_call.1} parent=11 // pred_check_branch
          %333 = sbr.rel (%p331) target = $region32
        $region31: #{tpu_custom_call.1} parent=11 // pred_region
          _
        $region32: #{tpu_custom_call.1} parent=11 // pred_fallthru
          _
        // Predicated region
        $region33: #{tpu_custom_call.1} parent=11 // pred_check
          %p334 = pneg %p176
        $region34: #{tpu_custom_call.1} parent=11 // pred_check_branch
          %336 = sbr.rel (%p334) target = $region36
        $region35: #{tpu_custom_call.1} parent=11 // pred_region
          %s338 = ssub.s32 16, 16
          %339 = vsyncadd [#allocation6], %s338
          %s341 = sshll.u32 [#allocation7], 4
          %s342 = int_to_ptr.vmem [resolvable:$true] %s341
          %344 = dma.hbm_to_vmem [thread:$0]  %s6, 16, %s342, [#allocation6]
        $region36: #{tpu_custom_call.1} parent=11 // pred_fallthru
          _
        // Predicated region
        $region37: #{tpu_custom_call.1} parent=11 // pred_check
          %p345 = pneg %p197
        $region38: #{tpu_custom_call.1} parent=11 // pred_check_branch
          %347 = sbr.rel (%p345) target = $region40
        $region39: #{tpu_custom_call.1} parent=11 // pred_region
          %s349 = ssub.s32 1024, 1024
          %350 = vsyncadd [#allocation9], %s349
          %s351 = sshll.u32 [#allocation8], 4
          %s352 = int_to_ptr.vmem [resolvable:$true] %s351
          %357 = dma.hbm_to_vmem [thread:$0]  %s7, 1024, %s352, [#allocation9], 64, 64, 4
        $region40: #{tpu_custom_call.1} parent=11 // pred_fallthru
          _
        // Predicated region
        $region41: #{tpu_custom_call.1} parent=11 // pred_check
          %p358 = pneg %p218
        $region42: #{tpu_custom_call.1} parent=11 // pred_check_branch
          %360 = sbr.rel (%p358) target = $region44
        $region43: #{tpu_custom_call.1} parent=11 // pred_region
          %s362 = ssub.s32 16, 16
          %363 = vsyncadd [#allocation9], %s362
          %s365 = sshll.u32 [#allocation10], 4
          %s366 = int_to_ptr.vmem [resolvable:$true] %s365
          %368 = dma.hbm_to_vmem [thread:$0]  %s8, 16, %s366, [#allocation9]
        $region44: #{tpu_custom_call.1} parent=11 // pred_fallthru
          _
        // Predicated region
        $region45: #{tpu_custom_call.1} parent=11 // pred_check
          %p369 = pneg %p239
        $region46: #{tpu_custom_call.1} parent=11 // pred_check_branch
          %371 = sbr.rel (%p369) target = $region48
        $region47: #{tpu_custom_call.1} parent=11 // pred_region
          %s373 = ssub.s32 1024, 1024
          %374 = vsyncadd [#allocation12], %s373
          %s375 = sshll.u32 [#allocation11], 4
          %s376 = int_to_ptr.vmem [resolvable:$true] %s375
          %381 = dma.hbm_to_vmem [thread:$0]  %s9, 1024, %s376, [#allocation12], 64, 64, 4
        $region48: #{tpu_custom_call.1} parent=11 // pred_fallthru
          _
        // Predicated region
        $region49: #{tpu_custom_call.1} parent=11 // pred_check
          %p382 = pneg %p260
        $region50: #{tpu_custom_call.1} parent=11 // pred_check_branch
          %384 = sbr.rel (%p382) target = $region52
        $region51: #{tpu_custom_call.1} parent=11 // pred_region
          _
        $region52: #{tpu_custom_call.1} parent=11 // pred_fallthru
          _
      $region12: #{tpu_custom_call.1} parent=5 // pred_fallthru
        _
      %p385 = scmp.lt.s32.totalorder %s24, 2
      // Predicated region
      $region53: #{tpu_custom_call.1} parent=5 // pred_check
        %p386 = pneg %p385
      $region54: #{tpu_custom_call.1} parent=5 // pred_check_branch
        %388 = sbr.rel (%p386) target = $region56
      $region55: #{tpu_custom_call.1} parent=5 // pred_region
        // Predicated region
        $region57: #{tpu_custom_call.1} parent=55 // pred_check
          %p389 = pneg %p44
        $region58: #{tpu_custom_call.1} parent=55 // pred_check_branch
          %391 = sbr.rel (%p389) target = $region60
        $region59: #{tpu_custom_call.1} parent=55 // pred_region
          %s392 = smul.u32 16, %s24
          %p393 = scmp.lt.s32.totalorder %s392, 31
          %s394 = scalar_select %p393, %s392, 31
          %s395 = smul.addr %s394, 7
          %s396 = smul.addr %s395, 4
          %s397 = scalar_lea.vmem %s0, %s396
          %s398 = smul.u32 16, %s24
        $region60: #{tpu_custom_call.1} parent=55 // pred_fallthru
          _
      $region56: #{tpu_custom_call.1} parent=5 // pred_fallthru
        _
      %p399 = scmp.le.s32.totalorder 1, %s24
      %p400 = scmp.lt.s32.totalorder %s24, 3
      %p401 = pnand %p399, %p400
      %p402 = pneg %p401
      // Predicated region
      $region61: #{tpu_custom_call.1} parent=5 // pred_check
        _
      $region62: #{tpu_custom_call.1} parent=5 // pred_check_branch
        %404 = sbr.rel (%p401) target = $region64
      $region63: #{tpu_custom_call.1} parent=5 // pred_region
        %s405 = ssub.s32 %s24, 1
        // Predicated region
        $region65: #{tpu_custom_call.1} parent=63 // pred_check
          %p406 = pneg %p92
        $region66: #{tpu_custom_call.1} parent=63 // pred_check_branch
          %408 = sbr.rel (%p406) target = $region68
        $region67: #{tpu_custom_call.1} parent=63 // pred_region
          %409 = dma.done [#allocation3], 64
        $region68: #{tpu_custom_call.1} parent=63 // pred_fallthru
          _
        // Predicated region
        $region69: #{tpu_custom_call.1} parent=63 // pred_check
          %p410 = pneg %p113
        $region70: #{tpu_custom_call.1} parent=63 // pred_check_branch
          %412 = sbr.rel (%p410) target = $region72
        $region71: #{tpu_custom_call.1} parent=63 // pred_region
          %413 = dma.done [#allocation6], 8192
        $region72: #{tpu_custom_call.1} parent=63 // pred_fallthru
          _
        // Predicated region
        $region73: #{tpu_custom_call.1} parent=63 // pred_check
          %p414 = pneg %p176
        $region74: #{tpu_custom_call.1} parent=63 // pred_check_branch
          %416 = sbr.rel (%p414) target = $region76
        $region75: #{tpu_custom_call.1} parent=63 // pred_region
          %417 = dma.done [#allocation6], 16
        $region76: #{tpu_custom_call.1} parent=63 // pred_fallthru
          _
        // Predicated region
        $region77: #{tpu_custom_call.1} parent=63 // pred_check
          %p418 = pneg %p197
        $region78: #{tpu_custom_call.1} parent=63 // pred_check_branch
          %420 = sbr.rel (%p418) target = $region80
        $region79: #{tpu_custom_call.1} parent=63 // pred_region
          %421 = dma.done [#allocation9], 1024
        $region80: #{tpu_custom_call.1} parent=63 // pred_fallthru
          _
        // Predicated region
        $region81: #{tpu_custom_call.1} parent=63 // pred_check
          %p422 = pneg %p218
        $region82: #{tpu_custom_call.1} parent=63 // pred_check_branch
          %424 = sbr.rel (%p422) target = $region84
        $region83: #{tpu_custom_call.1} parent=63 // pred_region
          %425 = dma.done [#allocation9], 16
        $region84: #{tpu_custom_call.1} parent=63 // pred_fallthru
          _
        // Predicated region
        $region85: #{tpu_custom_call.1} parent=63 // pred_check
          %p426 = pneg %p239
        $region86: #{tpu_custom_call.1} parent=63 // pred_check_branch
          %428 = sbr.rel (%p426) target = $region88
        $region87: #{tpu_custom_call.1} parent=63 // pred_region
          %429 = dma.done [#allocation12], 1024
        $region88: #{tpu_custom_call.1} parent=63 // pred_fallthru
          _
        %s430 = smul.u32 16, %s29
        %p431 = scmp.lt.s32.totalorder %s430, 31
        %s432 = scalar_select %p431, %s430, 31
        %s433 = smul.addr %s432, 7
        %s434 = smul.addr %s433, 4
        %s435 = scalar_lea.vmem %s0, %s434
        %p436 = pneg %p50
        %p437 = pneg %p47
        %p438 = pneg %p71
        %p439 = pneg %p68
        %p440 = pneg %p92
        %p441 = pneg %p89
        %p442 = pneg %p113
        %p443 = pneg %p110
        %p444 = pneg %p134
        %p445 = pneg %p131
        %p446 = pneg %p155
        %p447 = pneg %p152
        %p448 = pneg %p176
        %p449 = pneg %p173
        %p450 = pneg %p197
        %p451 = pneg %p194
        %p452 = pneg %p218
        %p453 = pneg %p215
        %p454 = pneg %p239
        %p455 = pneg %p236
        %p456 = pneg %p260
        %p457 = pneg %p257
        %p458 = pneg %p286
        %p459 = pneg %p283
        %s460 = sand.u32 %s273, 1
        %s461 = scalar_lea.sflag [#allocation4], %s460
        %s462 = sand.u32 %s273, 1
        %s463 = smul.addr %s462, 128
        %s464 = scalar_lea.vmem [#allocation13], %s463
        %s465 = smul.u32 16, %s29
        %p466 = scmp.lt.s32.totalorder %s465, 31
        %s467 = scalar_select %p466, %s465, 31
        %s468 = smul.addr %s467, 7
        %s469 = smul.addr %s468, 4
        %s470 = scalar_lea.vmem %s0, %s469
        %s471 = smul.u32 16, %s29
        %s472 = smul.u32 16, %s29
        %v474 = vld [vmem:[%s470] sm:$0xff]
        %v475 = vld [vmem:[%s470 + $0x8] sm:$0xff]
        %v476 = vld [vmem:[%s470 + $0x10] sm:$0xff]
        %v477 = vld [vmem:[%s470 + $0x18] sm:$0xf]
        %v478 = vld [vmem:[%s470 + $0x1c] sm:$0xff]
        %v479 = vld [vmem:[%s470 + $0x24] sm:$0xff]
        %v480 = vld [vmem:[%s470 + $0x2c] sm:$0xff]
        %v481 = vld [vmem:[%s470 + $0x34] sm:$0xf]
        %v482 = vld [vmem:[%s470 + $0x38] sm:$0xff]
        %v483 = vld [vmem:[%s470 + $0x40] sm:$0xff]
        %v484 = vld [vmem:[%s470 + $0x48] sm:$0xff]
        %v485 = vld [vmem:[%s470 + $0x50] sm:$0xf]
        %v486 = vld [vmem:[%s470 + $0x54] sm:$0xff]
        %v487 = vld [vmem:[%s470 + $0x5c] sm:$0xff]
        %v488 = vld [vmem:[%s470 + $0x64] sm:$0xff]
        %v489 = vld [vmem:[%s470 + $0x6c] sm:$0xf]
        %v490 = vld [vmem:[%s470 + $0x70] sm:$0xff]
        %v491 = vld [vmem:[%s470 + $0x78] sm:$0xff]
        %v492 = vld [vmem:[%s470 + $0x80] sm:$0xff]
        %v493 = vld [vmem:[%s470 + $0x88] sm:$0xf]
        %v494 = vld [vmem:[%s470 + $0x8c] sm:$0xff]
        %v495 = vld [vmem:[%s470 + $0x94] sm:$0xff]
        %v496 = vld [vmem:[%s470 + $0x9c] sm:$0xff]
        %v497 = vld [vmem:[%s470 + $0xa4] sm:$0xf]
        %v498 = vld [vmem:[%s470 + $0xa8] sm:$0xff]
        %v499 = vld [vmem:[%s470 + $0xb0] sm:$0xff]
        %v500 = vld [vmem:[%s470 + $0xb8] sm:$0xff]
        %v501 = vld [vmem:[%s470 + $0xc0] sm:$0xf]
        %v502 = vld [vmem:[%s470 + $0xc4] sm:$0xff]
        %v503 = vld [vmem:[%s470 + $0xcc] sm:$0xff]
        %v504 = vld [vmem:[%s470 + $0xd4] sm:$0xff]
        %v505 = vld [vmem:[%s470 + $0xdc] sm:$0xf]
        %v506 = vld [vmem:[%s470 + $0xe0] sm:$0xff]
        %v507 = vld [vmem:[%s470 + $0xe8] sm:$0xff]
        %v508 = vld [vmem:[%s470 + $0xf0] sm:$0xff]
        %v509 = vld [vmem:[%s470 + $0xf8] sm:$0xf]
        %v510 = vld [vmem:[%s470 + $0xfc] sm:$0xff]
        %v511 = vld [vmem:[%s470 + $0x104] sm:$0xff]
        %v512 = vld [vmem:[%s470 + $0x10c] sm:$0xff]
        %v513 = vld [vmem:[%s470 + $0x114] sm:$0xf]
        %v514 = vld [vmem:[%s470 + $0x118] sm:$0xff]
        %v515 = vld [vmem:[%s470 + $0x120] sm:$0xff]
        %v516 = vld [vmem:[%s470 + $0x128] sm:$0xff]
        %v517 = vld [vmem:[%s470 + $0x130] sm:$0xf]
        %v518 = vld [vmem:[%s470 + $0x134] sm:$0xff]
        %v519 = vld [vmem:[%s470 + $0x13c] sm:$0xff]
        %v520 = vld [vmem:[%s470 + $0x144] sm:$0xff]
        %v521 = vld [vmem:[%s470 + $0x14c] sm:$0xf]
        %v522 = vld [vmem:[%s470 + $0x150] sm:$0xff]
        %v523 = vld [vmem:[%s470 + $0x158] sm:$0xff]
        %v524 = vld [vmem:[%s470 + $0x160] sm:$0xff]
        %v525 = vld [vmem:[%s470 + $0x168] sm:$0xf]
        %v526 = vld [vmem:[%s470 + $0x16c] sm:$0xff]
        %v527 = vld [vmem:[%s470 + $0x174] sm:$0xff]
        %v528 = vld [vmem:[%s470 + $0x17c] sm:$0xff]
        %v529 = vld [vmem:[%s470 + $0x184] sm:$0xf]
        %v530 = vld [vmem:[%s470 + $0x188] sm:$0xff]
        %v531 = vld [vmem:[%s470 + $0x190] sm:$0xff]
        %v532 = vld [vmem:[%s470 + $0x198] sm:$0xff]
        %v533 = vld [vmem:[%s470 + $0x1a0] sm:$0xf]
        %v534 = vld [vmem:[%s470 + $0x1a4] sm:$0xff]
        %v535 = vld [vmem:[%s470 + $0x1ac] sm:$0xff]
        %v536 = vld [vmem:[%s470 + $0x1b4] sm:$0xff]
        %v537 = vld [vmem:[%s470 + $0x1bc] sm:$0xf]
        %v538 = vld [vmem:[%s1] sm:$0xff]
        %v539 = vld [vmem:[%s1 + $0x8] sm:$0xff]
        %v540 = vld [vmem:[%s1 + $0x10] sm:$0xff]
        %v541 = vld [vmem:[%s1 + $0x18] sm:$0xff]
        %v542 = vld [vmem:[%s1 + $0x20] sm:$0xff]
        %v543 = vld [vmem:[%s1 + $0x28] sm:$0xff]
        %v544 = vld [vmem:[%s1 + $0x30] sm:$0xff]
        %v545 = vld [vmem:[%s1 + $0x38] sm:$0xff]
        %v546 = vld [vmem:[%s1 + $0x40] sm:$0xff]
        %v547 = vld [vmem:[%s1 + $0x48] sm:$0xff]
        %v548 = vld [vmem:[%s1 + $0x50] sm:$0xff]
        %v549 = vld [vmem:[%s1 + $0x58] sm:$0xff]
        %v550 = vld [vmem:[%s1 + $0x60] sm:$0xff]
        %v551 = vld [vmem:[%s1 + $0x68] sm:$0xff]
        %v552 = vld [vmem:[%s1 + $0x70] sm:$0xff]
        %v553 = vld [vmem:[%s1 + $0x78] sm:$0xff]
        %v554 = vld [vmem:[%s1 + $0x80] sm:$0xff]
        %v555 = vld [vmem:[%s1 + $0x88] sm:$0xff]
        %v556 = vld [vmem:[%s1 + $0x90] sm:$0xff]
        %v557 = vld [vmem:[%s1 + $0x98] sm:$0xff]
        %v558 = vld [vmem:[%s1 + $0xa0] sm:$0xff]
        %v559 = vld [vmem:[%s1 + $0xa8] sm:$0xff]
        %v560 = vld [vmem:[%s1 + $0xb0] sm:$0xff]
        %v561 = vld [vmem:[%s1 + $0xb8] sm:$0xff]
        %v562 = vld [vmem:[%s1 + $0xc0] sm:$0xff]
        %v563 = vld [vmem:[%s1 + $0xc8] sm:$0xff]
        %v564 = vld [vmem:[%s1 + $0xd0] sm:$0xff]
        %v565 = vld [vmem:[%s1 + $0xd8] sm:$0xff]
        %v566 = vld [vmem:[%s1 + $0xe0] sm:$0xff]
        %v567 = vld [vmem:[%s1 + $0xe8] sm:$0xff]
        %v568 = vld [vmem:[%s1 + $0xf0] sm:$0xff]
        %v569 = vld [vmem:[%s1 + $0xf8] sm:$0xff]
        %v570 = vld [vmem:[%s1 + $0x100] sm:$0xff]
        %v571 = vld [vmem:[%s1 + $0x108] sm:$0xff]
        %v572 = vld [vmem:[%s1 + $0x110] sm:$0xff]
        %v573 = vld [vmem:[%s1 + $0x118] sm:$0xff]
        %v574 = vld [vmem:[%s1 + $0x120] sm:$0xff]
        %v575 = vld [vmem:[%s1 + $0x128] sm:$0xff]
        %v576 = vld [vmem:[%s1 + $0x130] sm:$0xff]
        %v577 = vld [vmem:[%s1 + $0x138] sm:$0xff]
        %v578 = vld [vmem:[%s1 + $0x140] sm:$0xff]
        %v579 = vld [vmem:[%s1 + $0x148] sm:$0xff]
        %v580 = vld [vmem:[%s1 + $0x150] sm:$0xff]
        %v581 = vld [vmem:[%s1 + $0x158] sm:$0xff]
        %v582 = vld [vmem:[%s1 + $0x160] sm:$0xff]
        %v583 = vld [vmem:[%s1 + $0x168] sm:$0xff]
        %v584 = vld [vmem:[%s1 + $0x170] sm:$0xff]
        %v585 = vld [vmem:[%s1 + $0x178] sm:$0xff]
        %v586 = vld [vmem:[%s1 + $0x180] sm:$0xff]
        %v587 = vld [vmem:[%s1 + $0x188] sm:$0xff]
        %v588 = vld [vmem:[%s1 + $0x190] sm:$0xff]
        %v589 = vld [vmem:[%s1 + $0x198] sm:$0xff]
        %v590 = vld [vmem:[%s1 + $0x1a0] sm:$0xff]
        %v591 = vld [vmem:[%s1 + $0x1a8] sm:$0xff]
        %v592 = vld [vmem:[%s1 + $0x1b0] sm:$0xff]
        %v593 = vld [vmem:[%s1 + $0x1b8] sm:$0xff]
        %v594 = vld [vmem:[%s1 + $0x1c0] sm:$0xff]
        %v595 = vld [vmem:[%s1 + $0x1c8] sm:$0xff]
        %v596 = vld [vmem:[%s1 + $0x1d0] sm:$0xff]
        %v597 = vld [vmem:[%s1 + $0x1d8] sm:$0xff]
        %v598 = vld [vmem:[%s1 + $0x1e0] sm:$0xff]
        %v599 = vld [vmem:[%s1 + $0x1e8] sm:$0xff]
        %v600 = vld [vmem:[%s1 + $0x1f0] sm:$0xff]
        %v601 = vld [vmem:[%s1 + $0x1f8] sm:$0xff]
        %v602 = vld [vmem:[%s1 + $0x200] sm:$0xff]
        %v603 = vld [vmem:[%s1 + $0x208] sm:$0xff]
        %v604 = vld [vmem:[%s1 + $0x210] sm:$0xff]
        %v605 = vld [vmem:[%s1 + $0x218] sm:$0xff]
        %v606 = vld [vmem:[%s1 + $0x220] sm:$0xff]
        %v607 = vld [vmem:[%s1 + $0x228] sm:$0xff]
        %v608 = vld [vmem:[%s1 + $0x230] sm:$0xff]
        %v609 = vld [vmem:[%s1 + $0x238] sm:$0xff]
        %v610 = vld [vmem:[%s1 + $0x240] sm:$0xff]
        %v611 = vld [vmem:[%s1 + $0x248] sm:$0xff]
        %v612 = vld [vmem:[%s1 + $0x250] sm:$0xff]
        %v613 = vld [vmem:[%s1 + $0x258] sm:$0xff]
        %v614 = vld [vmem:[%s1 + $0x260] sm:$0xff]
        %v615 = vld [vmem:[%s1 + $0x268] sm:$0xff]
        %v616 = vld [vmem:[%s1 + $0x270] sm:$0xff]
        %v617 = vld [vmem:[%s1 + $0x278] sm:$0xff]
        %v618 = vld [vmem:[%s1 + $0x280] sm:$0xff]
        %v619 = vld [vmem:[%s1 + $0x288] sm:$0xff]
        %v620 = vld [vmem:[%s1 + $0x290] sm:$0xff]
        %v621 = vld [vmem:[%s1 + $0x298] sm:$0xff]
        %v622 = vld [vmem:[%s1 + $0x2a0] sm:$0xff]
        %v623 = vld [vmem:[%s1 + $0x2a8] sm:$0xff]
        %v624 = vld [vmem:[%s1 + $0x2b0] sm:$0xff]
        %v625 = vld [vmem:[%s1 + $0x2b8] sm:$0xff]
        %v626 = vld [vmem:[%s1 + $0x2c0] sm:$0xff]
        %v627 = vld [vmem:[%s1 + $0x2c8] sm:$0xff]
        %v628 = vld [vmem:[%s1 + $0x2d0] sm:$0xff]
        %v629 = vld [vmem:[%s1 + $0x2d8] sm:$0xff]
        %v630 = vld [vmem:[%s1 + $0x2e0] sm:$0xff]
        %v631 = vld [vmem:[%s1 + $0x2e8] sm:$0xff]
        %v632 = vld [vmem:[%s1 + $0x2f0] sm:$0xff]
        %v633 = vld [vmem:[%s1 + $0x2f8] sm:$0xff]
        %v634 = vld [vmem:[%s1 + $0x300] sm:$0xff]
        %v635 = vld [vmem:[%s1 + $0x308] sm:$0xff]
        %v636 = vld [vmem:[%s1 + $0x310] sm:$0xff]
        %v637 = vld [vmem:[%s1 + $0x318] sm:$0xff]
        %v638 = vld [vmem:[%s1 + $0x320] sm:$0xff]
        %v639 = vld [vmem:[%s1 + $0x328] sm:$0xff]
        %v640 = vld [vmem:[%s1 + $0x330] sm:$0xff]
        %v641 = vld [vmem:[%s1 + $0x338] sm:$0xff]
        %v642 = vld [vmem:[%s1 + $0x340] sm:$0xff]
        %v643 = vld [vmem:[%s1 + $0x348] sm:$0xff]
        %v644 = vld [vmem:[%s1 + $0x350] sm:$0xff]
        %v645 = vld [vmem:[%s1 + $0x358] sm:$0xff]
        %v646 = vld [vmem:[%s1 + $0x360] sm:$0xff]
        %v647 = vld [vmem:[%s1 + $0x368] sm:$0xff]
        %v648 = vld [vmem:[%s1 + $0x370] sm:$0xff]
        %v649 = vld [vmem:[%s1 + $0x378] sm:$0xff]
        %v650 = vld [vmem:[%s1 + $0x380] sm:$0xff]
        %v651 = vld [vmem:[%s1 + $0x388] sm:$0xff]
        %v652 = vld [vmem:[%s1 + $0x390] sm:$0xff]
        %v653 = vld [vmem:[%s1 + $0x398] sm:$0xff]
        %v654 = vld [vmem:[%s1 + $0x3a0] sm:$0xff]
        %v655 = vld [vmem:[%s1 + $0x3a8] sm:$0xff]
        %v656 = vld [vmem:[%s1 + $0x3b0] sm:$0xff]
        %v657 = vld [vmem:[%s1 + $0x3b8] sm:$0xff]
        %v658 = vld [vmem:[%s1 + $0x3c0] sm:$0xff]
        %v659 = vld [vmem:[%s1 + $0x3c8] sm:$0xff]
        %v660 = vld [vmem:[%s1 + $0x3d0] sm:$0xff]
        %v661 = vld [vmem:[%s1 + $0x3d8] sm:$0xff]
        %v662 = vld [vmem:[%s1 + $0x3e0] sm:$0xff]
        %v663 = vld [vmem:[%s1 + $0x3e8] sm:$0xff]
        %v664 = vld [vmem:[%s1 + $0x3f0] sm:$0xff]
        %v665 = vld [vmem:[%s1 + $0x3f8] sm:$0xff]
        %v666 = vld [vmem:[%s1 + $0x400] sm:$0xff]
        %v667 = vld [vmem:[%s1 + $0x408] sm:$0xff]
        %v668 = vld [vmem:[%s1 + $0x410] sm:$0xff]
        %v669 = vld [vmem:[%s1 + $0x418] sm:$0xff]
        %v670 = vld [vmem:[%s1 + $0x420] sm:$0xff]
        %v671 = vld [vmem:[%s1 + $0x428] sm:$0xff]
        %v672 = vld [vmem:[%s1 + $0x430] sm:$0xff]
        %v673 = vld [vmem:[%s1 + $0x438] sm:$0xff]
        %v674 = vld [vmem:[%s1 + $0x440] sm:$0xff]
        %v675 = vld [vmem:[%s1 + $0x448] sm:$0xff]
        %v676 = vld [vmem:[%s1 + $0x450] sm:$0xff]
        %v677 = vld [vmem:[%s1 + $0x458] sm:$0xff]
        %v678 = vld [vmem:[%s1 + $0x460] sm:$0xff]
        %v679 = vld [vmem:[%s1 + $0x468] sm:$0xff]
        %v680 = vld [vmem:[%s1 + $0x470] sm:$0xff]
        %v681 = vld [vmem:[%s1 + $0x478] sm:$0xff]
        %v682 = vld [vmem:[%s1 + $0x480] sm:$0xff]
        %v683 = vld [vmem:[%s1 + $0x488] sm:$0xff]
        %v684 = vld [vmem:[%s1 + $0x490] sm:$0xff]
        %v685 = vld [vmem:[%s1 + $0x498] sm:$0xff]
        %v686 = vld [vmem:[%s1 + $0x4a0] sm:$0xff]
        %v687 = vld [vmem:[%s1 + $0x4a8] sm:$0xff]
        %v688 = vld [vmem:[%s1 + $0x4b0] sm:$0xff]
        %v689 = vld [vmem:[%s1 + $0x4b8] sm:$0xff]
        %v690 = vld [vmem:[%s1 + $0x4c0] sm:$0xff]
        %v691 = vld [vmem:[%s1 + $0x4c8] sm:$0xff]
        %v692 = vld [vmem:[%s1 + $0x4d0] sm:$0xff]
        %v693 = vld [vmem:[%s1 + $0x4d8] sm:$0xff]
        %v694 = vld [vmem:[%s1 + $0x4e0] sm:$0xff]
        %v695 = vld [vmem:[%s1 + $0x4e8] sm:$0xff]
        %v696 = vld [vmem:[%s1 + $0x4f0] sm:$0xff]
        %v697 = vld [vmem:[%s1 + $0x4f8] sm:$0xff]
        %v698 = vld [vmem:[%s1 + $0x500] sm:$0xff]
        %v699 = vld [vmem:[%s1 + $0x508] sm:$0xff]
        %v700 = vld [vmem:[%s1 + $0x510] sm:$0xff]
        %v701 = vld [vmem:[%s1 + $0x518] sm:$0xff]
        %v702 = vld [vmem:[%s1 + $0x520] sm:$0xff]
        %v703 = vld [vmem:[%s1 + $0x528] sm:$0xff]
        %v704 = vld [vmem:[%s1 + $0x530] sm:$0xff]
        %v705 = vld [vmem:[%s1 + $0x538] sm:$0xff]
        %v706 = vld [vmem:[%s1 + $0x540] sm:$0xff]
        %v707 = vld [vmem:[%s1 + $0x548] sm:$0xff]
        %v708 = vld [vmem:[%s1 + $0x550] sm:$0xff]
        %v709 = vld [vmem:[%s1 + $0x558] sm:$0xff]
        %v710 = vld [vmem:[%s1 + $0x560] sm:$0xff]
        %v711 = vld [vmem:[%s1 + $0x568] sm:$0xff]
        %v712 = vld [vmem:[%s1 + $0x570] sm:$0xff]
        %v713 = vld [vmem:[%s1 + $0x578] sm:$0xff]
        %v714 = vld [vmem:[%s1 + $0x580] sm:$0xff]
        %v715 = vld [vmem:[%s1 + $0x588] sm:$0xff]
        %v716 = vld [vmem:[%s1 + $0x590] sm:$0xff]
        %v717 = vld [vmem:[%s1 + $0x598] sm:$0xff]
        %v718 = vld [vmem:[%s1 + $0x5a0] sm:$0xff]
        %v719 = vld [vmem:[%s1 + $0x5a8] sm:$0xff]
        %v720 = vld [vmem:[%s1 + $0x5b0] sm:$0xff]
        %v721 = vld [vmem:[%s1 + $0x5b8] sm:$0xff]
        %v722 = vld [vmem:[%s1 + $0x5c0] sm:$0xff]
        %v723 = vld [vmem:[%s1 + $0x5c8] sm:$0xff]
        %v724 = vld [vmem:[%s1 + $0x5d0] sm:$0xff]
        %v725 = vld [vmem:[%s1 + $0x5d8] sm:$0xff]
        %v726 = vld [vmem:[%s1 + $0x5e0] sm:$0xff]
        %v727 = vld [vmem:[%s1 + $0x5e8] sm:$0xff]
        %v728 = vld [vmem:[%s1 + $0x5f0] sm:$0xff]
        %v729 = vld [vmem:[%s1 + $0x5f8] sm:$0xff]
        %v730 = vld [vmem:[%s1 + $0x600] sm:$0xff]
        %v731 = vld [vmem:[%s1 + $0x608] sm:$0xff]
        %v732 = vld [vmem:[%s1 + $0x610] sm:$0xff]
        %v733 = vld [vmem:[%s1 + $0x618] sm:$0xff]
        %v734 = vld [vmem:[#allocation2] sm:$0xf]
        %v736 = vlaneseq
        %v737 = vshrl.u32 %v736, 7
        %v738 = vsub.s32 0, %v737
        %v739 = vrot.slane %v734, %v738
        %v740 = vlaneseq
        %v741 = vshrl.u32 %v740, 7
        %v742 = vsub.s32 1, %v741
        %v743 = vrot.slane %v734, %v742
        %v744 = vlaneseq
        %v745 = vshrl.u32 %v744, 7
        %v746 = vsub.s32 2, %v745
        %v747 = vrot.slane %v734, %v746
        %v748 = vlaneseq
        %v749 = vshrl.u32 %v748, 7
        %v750 = vsub.s32 3, %v749
        %v751 = vrot.slane %v734, %v750
        %v820 = vunpack.c.l.b16 %v474
        %v821 = vunpack.c.h.b16 %v474
        %v822 = vunpack.c.l.b16 %v475
        %v823 = vunpack.c.h.b16 %v475
        %v824 = vunpack.c.l.b16 %v476
        %v825 = vunpack.c.h.b16 %v476
        %v826 = vunpack.c.l.b16 %v477
        %v827 = vunpack.c.l.b16 %v478
        %v828 = vunpack.c.h.b16 %v478
        %v829 = vunpack.c.l.b16 %v479
        %v830 = vunpack.c.h.b16 %v479
        %v831 = vunpack.c.l.b16 %v480
        %v832 = vunpack.c.h.b16 %v480
        %v833 = vunpack.c.l.b16 %v481
        %v834 = vunpack.c.l.b16 %v482
        %v835 = vunpack.c.h.b16 %v482
        %v836 = vunpack.c.l.b16 %v483
        %v837 = vunpack.c.h.b16 %v483
        %v838 = vunpack.c.l.b16 %v484
        %v839 = vunpack.c.h.b16 %v484
        %v840 = vunpack.c.l.b16 %v485
        %v841 = vunpack.c.l.b16 %v486
        %v842 = vunpack.c.h.b16 %v486
        %v843 = vunpack.c.l.b16 %v487
        %v844 = vunpack.c.h.b16 %v487
        %v845 = vunpack.c.l.b16 %v488
        %v846 = vunpack.c.h.b16 %v488
        %v847 = vunpack.c.l.b16 %v489
        %v848 = vunpack.c.l.b16 %v490
        %v849 = vunpack.c.h.b16 %v490
        %v850 = vunpack.c.l.b16 %v491
        %v851 = vunpack.c.h.b16 %v491
        %v852 = vunpack.c.l.b16 %v492
        %v853 = vunpack.c.h.b16 %v492
        %v854 = vunpack.c.l.b16 %v493
        %v855 = vunpack.c.l.b16 %v494
        %v856 = vunpack.c.h.b16 %v494
        %v857 = vunpack.c.l.b16 %v495
        %v858 = vunpack.c.h.b16 %v495
        %v859 = vunpack.c.l.b16 %v496
        %v860 = vunpack.c.h.b16 %v496
        %v861 = vunpack.c.l.b16 %v497
        %v862 = vunpack.c.l.b16 %v498
        %v863 = vunpack.c.h.b16 %v498
        %v864 = vunpack.c.l.b16 %v499
        %v865 = vunpack.c.h.b16 %v499
        %v866 = vunpack.c.l.b16 %v500
        %v867 = vunpack.c.h.b16 %v500
        %v868 = vunpack.c.l.b16 %v501
        %v869 = vunpack.c.l.b16 %v502
        %v870 = vunpack.c.h.b16 %v502
        %v871 = vunpack.c.l.b16 %v503
        %v872 = vunpack.c.h.b16 %v503
        %v873 = vunpack.c.l.b16 %v504
        %v874 = vunpack.c.h.b16 %v504
        %v875 = vunpack.c.l.b16 %v505
        %v876 = vunpack.c.l.b16 %v506
        %v877 = vunpack.c.h.b16 %v506
        %v878 = vunpack.c.l.b16 %v507
        %v879 = vunpack.c.h.b16 %v507
        %v880 = vunpack.c.l.b16 %v508
        %v881 = vunpack.c.h.b16 %v508
        %v882 = vunpack.c.l.b16 %v509
        %v883 = vunpack.c.l.b16 %v510
        %v884 = vunpack.c.h.b16 %v510
        %v885 = vunpack.c.l.b16 %v511
        %v886 = vunpack.c.h.b16 %v511
        %v887 = vunpack.c.l.b16 %v512
        %v888 = vunpack.c.h.b16 %v512
        %v889 = vunpack.c.l.b16 %v513
        %v890 = vunpack.c.l.b16 %v514
        %v891 = vunpack.c.h.b16 %v514
        %v892 = vunpack.c.l.b16 %v515
        %v893 = vunpack.c.h.b16 %v515
        %v894 = vunpack.c.l.b16 %v516
        %v895 = vunpack.c.h.b16 %v516
        %v896 = vunpack.c.l.b16 %v517
        %v897 = vunpack.c.l.b16 %v518
        %v898 = vunpack.c.h.b16 %v518
        %v899 = vunpack.c.l.b16 %v519
        %v900 = vunpack.c.h.b16 %v519
        %v901 = vunpack.c.l.b16 %v520
        %v902 = vunpack.c.h.b16 %v520
        %v903 = vunpack.c.l.b16 %v521
        %v904 = vunpack.c.l.b16 %v522
        %v905 = vunpack.c.h.b16 %v522
        %v906 = vunpack.c.l.b16 %v523
        %v907 = vunpack.c.h.b16 %v523
        %v908 = vunpack.c.l.b16 %v524
        %v909 = vunpack.c.h.b16 %v524
        %v910 = vunpack.c.l.b16 %v525
        %v911 = vunpack.c.l.b16 %v526
        %v912 = vunpack.c.h.b16 %v526
        %v913 = vunpack.c.l.b16 %v527
        %v914 = vunpack.c.h.b16 %v527
        %v915 = vunpack.c.l.b16 %v528
        %v916 = vunpack.c.h.b16 %v528
        %v917 = vunpack.c.l.b16 %v529
        %v918 = vunpack.c.l.b16 %v530
        %v919 = vunpack.c.h.b16 %v530
        %v920 = vunpack.c.l.b16 %v531
        %v921 = vunpack.c.h.b16 %v531
        %v922 = vunpack.c.l.b16 %v532
        %v923 = vunpack.c.h.b16 %v532
        %v924 = vunpack.c.l.b16 %v533
        %v925 = vunpack.c.l.b16 %v534
        %v926 = vunpack.c.h.b16 %v534
        %v927 = vunpack.c.l.b16 %v535
        %v928 = vunpack.c.h.b16 %v535
        %v929 = vunpack.c.l.b16 %v536
        %v930 = vunpack.c.h.b16 %v536
        %v931 = vunpack.c.l.b16 %v537
        %v932 = vpack.c.b16 %v827, %v820
        %v933 = vpack.c.b16 %v828, %v821
        %v934 = vpack.c.b16 %v829, %v822
        %v935 = vpack.c.b16 %v830, %v823
        %v936 = vpack.c.b16 %v831, %v824
        %v937 = vpack.c.b16 %v832, %v825
        %v938 = vpack.c.b16 %v833, %v826
        %v939 = vpack.c.b16 %v841, %v834
        %v940 = vpack.c.b16 %v842, %v835
        %v941 = vpack.c.b16 %v843, %v836
        %v942 = vpack.c.b16 %v844, %v837
        %v943 = vpack.c.b16 %v845, %v838
        %v944 = vpack.c.b16 %v846, %v839
        %v945 = vpack.c.b16 %v847, %v840
        %v946 = vpack.c.b16 %v855, %v848
        %v947 = vpack.c.b16 %v856, %v849
        %v948 = vpack.c.b16 %v857, %v850
        %v949 = vpack.c.b16 %v858, %v851
        %v950 = vpack.c.b16 %v859, %v852
        %v951 = vpack.c.b16 %v860, %v853
        %v952 = vpack.c.b16 %v861, %v854
        %v953 = vpack.c.b16 %v869, %v862
        %v954 = vpack.c.b16 %v870, %v863
        %v955 = vpack.c.b16 %v871, %v864
        %v956 = vpack.c.b16 %v872, %v865
        %v957 = vpack.c.b16 %v873, %v866
        %v958 = vpack.c.b16 %v874, %v867
        %v959 = vpack.c.b16 %v875, %v868
        %v960 = vpack.c.b16 %v883, %v876
        %v961 = vpack.c.b16 %v884, %v877
        %v962 = vpack.c.b16 %v885, %v878
        %v963 = vpack.c.b16 %v886, %v879
        %v964 = vpack.c.b16 %v887, %v880
        %v965 = vpack.c.b16 %v888, %v881
        %v966 = vpack.c.b16 %v889, %v882
        %v967 = vpack.c.b16 %v897, %v890
        %v968 = vpack.c.b16 %v898, %v891
        %v969 = vpack.c.b16 %v899, %v892
        %v970 = vpack.c.b16 %v900, %v893
        %v971 = vpack.c.b16 %v901, %v894
        %v972 = vpack.c.b16 %v902, %v895
        %v973 = vpack.c.b16 %v903, %v896
        %v974 = vpack.c.b16 %v911, %v904
        %v975 = vpack.c.b16 %v912, %v905
        %v976 = vpack.c.b16 %v913, %v906
        %v977 = vpack.c.b16 %v914, %v907
        %v978 = vpack.c.b16 %v915, %v908
        %v979 = vpack.c.b16 %v916, %v909
        %v980 = vpack.c.b16 %v917, %v910
        %v981 = vpack.c.b16 %v925, %v918
        %v982 = vpack.c.b16 %v926, %v919
        %v983 = vpack.c.b16 %v927, %v920
        %v984 = vpack.c.b16 %v928, %v921
        %v985 = vpack.c.b16 %v929, %v922
        %v986 = vpack.c.b16 %v930, %v923
        %v987 = vpack.c.b16 %v931, %v924
        %v1232 = vunpack.c.l.b16 %v538
        %v1233 = vunpack.c.h.b16 %v538
        %v1234 = vunpack.c.l.b16 %v539
        %v1235 = vunpack.c.h.b16 %v539
        %v1236 = vunpack.c.l.b16 %v540
        %v1237 = vunpack.c.h.b16 %v540
        %v1238 = vunpack.c.l.b16 %v541
        %v1239 = vunpack.c.h.b16 %v541
        %v1240 = vunpack.c.l.b16 %v542
        %v1241 = vunpack.c.h.b16 %v542
        %v1242 = vunpack.c.l.b16 %v543
        %v1243 = vunpack.c.h.b16 %v543
        %v1244 = vunpack.c.l.b16 %v544
        %v1245 = vunpack.c.h.b16 %v544
        %v1246 = vunpack.c.l.b16 %v545
        %v1247 = vunpack.c.h.b16 %v545
        %v1248 = vunpack.c.l.b16 %v546
        %v1249 = vunpack.c.h.b16 %v546
        %v1250 = vunpack.c.l.b16 %v547
        %v1251 = vunpack.c.h.b16 %v547
        %v1252 = vunpack.c.l.b16 %v548
        %v1253 = vunpack.c.h.b16 %v548
        %v1254 = vunpack.c.l.b16 %v549
        %v1255 = vunpack.c.h.b16 %v549
        %v1256 = vunpack.c.l.b16 %v550
        %v1257 = vunpack.c.h.b16 %v550
        %v1258 = vunpack.c.l.b16 %v551
        %v1259 = vunpack.c.h.b16 %v551
        %v1260 = vunpack.c.l.b16 %v552
        %v1261 = vunpack.c.h.b16 %v552
        %v1262 = vunpack.c.l.b16 %v553
        %v1263 = vunpack.c.h.b16 %v553
        %v1264 = vunpack.c.l.b16 %v554
        %v1265 = vunpack.c.h.b16 %v554
        %v1266 = vunpack.c.l.b16 %v555
        %v1267 = vunpack.c.h.b16 %v555
        %v1268 = vunpack.c.l.b16 %v556
        %v1269 = vunpack.c.h.b16 %v556
        %v1270 = vunpack.c.l.b16 %v557
        %v1271 = vunpack.c.h.b16 %v557
        %v1272 = vunpack.c.l.b16 %v558
        %v1273 = vunpack.c.h.b16 %v558
        %v1274 = vunpack.c.l.b16 %v559
        %v1275 = vunpack.c.h.b16 %v559
        %v1276 = vunpack.c.l.b16 %v560
        %v1277 = vunpack.c.h.b16 %v560
        %v1278 = vunpack.c.l.b16 %v561
        %v1279 = vunpack.c.h.b16 %v561
        %v1280 = vunpack.c.l.b16 %v562
        %v1281 = vunpack.c.h.b16 %v562
        %v1282 = vunpack.c.l.b16 %v563
        %v1283 = vunpack.c.h.b16 %v563
        %v1284 = vunpack.c.l.b16 %v564
        %v1285 = vunpack.c.h.b16 %v564
        %v1286 = vunpack.c.l.b16 %v565
        %v1287 = vunpack.c.h.b16 %v565
        %v1288 = vunpack.c.l.b16 %v566
        %v1289 = vunpack.c.h.b16 %v566
        %v1290 = vunpack.c.l.b16 %v567
        %v1291 = vunpack.c.h.b16 %v567
        %v1292 = vunpack.c.l.b16 %v568
        %v1293 = vunpack.c.h.b16 %v568
        %v1294 = vunpack.c.l.b16 %v569
        %v1295 = vunpack.c.h.b16 %v569
        %v1296 = vunpack.c.l.b16 %v570
        %v1297 = vunpack.c.h.b16 %v570
        %v1298 = vunpack.c.l.b16 %v571
        %v1299 = vunpack.c.h.b16 %v571
        %v1300 = vunpack.c.l.b16 %v572
        %v1301 = vunpack.c.h.b16 %v572
        %v1302 = vunpack.c.l.b16 %v573
        %v1303 = vunpack.c.h.b16 %v573
        %v1304 = vunpack.c.l.b16 %v574
        %v1305 = vunpack.c.h.b16 %v574
        %v1306 = vunpack.c.l.b16 %v575
        %v1307 = vunpack.c.h.b16 %v575
        %v1308 = vunpack.c.l.b16 %v576
        %v1309 = vunpack.c.h.b16 %v576
        %v1310 = vunpack.c.l.b16 %v577
        %v1311 = vunpack.c.h.b16 %v577
        %v1312 = vunpack.c.l.b16 %v578
        %v1313 = vunpack.c.h.b16 %v578
        %v1314 = vunpack.c.l.b16 %v579
        %v1315 = vunpack.c.h.b16 %v579
        %v1316 = vunpack.c.l.b16 %v580
        %v1317 = vunpack.c.h.b16 %v580
        %v1318 = vunpack.c.l.b16 %v581
        %v1319 = vunpack.c.h.b16 %v581
        %v1320 = vunpack.c.l.b16 %v582
        %v1321 = vunpack.c.h.b16 %v582
        %v1322 = vunpack.c.l.b16 %v583
        %v1323 = vunpack.c.h.b16 %v583
        %v1324 = vunpack.c.l.b16 %v584
        %v1325 = vunpack.c.h.b16 %v584
        %v1326 = vunpack.c.l.b16 %v585
        %v1327 = vunpack.c.h.b16 %v585
        %v1328 = vunpack.c.l.b16 %v586
        %v1329 = vunpack.c.h.b16 %v586
        %v1330 = vunpack.c.l.b16 %v587
        %v1331 = vunpack.c.h.b16 %v587
        %v1332 = vunpack.c.l.b16 %v588
        %v1333 = vunpack.c.h.b16 %v588
        %v1334 = vunpack.c.l.b16 %v589
        %v1335 = vunpack.c.h.b16 %v589
        %v1336 = vunpack.c.l.b16 %v590
        %v1337 = vunpack.c.h.b16 %v590
        %v1338 = vunpack.c.l.b16 %v591
        %v1339 = vunpack.c.h.b16 %v591
        %v1340 = vunpack.c.l.b16 %v592
        %v1341 = vunpack.c.h.b16 %v592
        %v1342 = vunpack.c.l.b16 %v593
        %v1343 = vunpack.c.h.b16 %v593
        %v1344 = vunpack.c.l.b16 %v594
        %v1345 = vunpack.c.h.b16 %v594
        %v1346 = vunpack.c.l.b16 %v595
        %v1347 = vunpack.c.h.b16 %v595
        %v1348 = vunpack.c.l.b16 %v596
        %v1349 = vunpack.c.h.b16 %v596
        %v1350 = vunpack.c.l.b16 %v597
        %v1351 = vunpack.c.h.b16 %v597
        %v1352 = vunpack.c.l.b16 %v598
        %v1353 = vunpack.c.h.b16 %v598
        %v1354 = vunpack.c.l.b16 %v599
        %v1355 = vunpack.c.h.b16 %v599
        %v1356 = vunpack.c.l.b16 %v600
        %v1357 = vunpack.c.h.b16 %v600
        %v1358 = vunpack.c.l.b16 %v601
        %v1359 = vunpack.c.h.b16 %v601
        %v1360 = vunpack.c.l.b16 %v602
        %v1361 = vunpack.c.h.b16 %v602
        %v1362 = vunpack.c.l.b16 %v603
        %v1363 = vunpack.c.h.b16 %v603
        %v1364 = vunpack.c.l.b16 %v604
        %v1365 = vunpack.c.h.b16 %v604
        %v1366 = vunpack.c.l.b16 %v605
        %v1367 = vunpack.c.h.b16 %v605
        %v1368 = vunpack.c.l.b16 %v606
        %v1369 = vunpack.c.h.b16 %v606
        %v1370 = vunpack.c.l.b16 %v607
        %v1371 = vunpack.c.h.b16 %v607
        %v1372 = vunpack.c.l.b16 %v608
        %v1373 = vunpack.c.h.b16 %v608
        %v1374 = vunpack.c.l.b16 %v609
        %v1375 = vunpack.c.h.b16 %v609
        %v1376 = vunpack.c.l.b16 %v610
        %v1377 = vunpack.c.h.b16 %v610
        %v1378 = vunpack.c.l.b16 %v611
        %v1379 = vunpack.c.h.b16 %v611
        %v1380 = vunpack.c.l.b16 %v612
        %v1381 = vunpack.c.h.b16 %v612
        %v1382 = vunpack.c.l.b16 %v613
        %v1383 = vunpack.c.h.b16 %v613
        %v1384 = vunpack.c.l.b16 %v614
        %v1385 = vunpack.c.h.b16 %v614
        %v1386 = vunpack.c.l.b16 %v615
        %v1387 = vunpack.c.h.b16 %v615
        %v1388 = vunpack.c.l.b16 %v616
        %v1389 = vunpack.c.h.b16 %v616
        %v1390 = vunpack.c.l.b16 %v617
        %v1391 = vunpack.c.h.b16 %v617
        %v1392 = vunpack.c.l.b16 %v618
        %v1393 = vunpack.c.h.b16 %v618
        %v1394 = vunpack.c.l.b16 %v619
        %v1395 = vunpack.c.h.b16 %v619
        %v1396 = vunpack.c.l.b16 %v620
        %v1397 = vunpack.c.h.b16 %v620
        %v1398 = vunpack.c.l.b16 %v621
        %v1399 = vunpack.c.h.b16 %v621
        %v1400 = vunpack.c.l.b16 %v622
        %v1401 = vunpack.c.h.b16 %v622
        %v1402 = vunpack.c.l.b16 %v623
        %v1403 = vunpack.c.h.b16 %v623
        %v1404 = vunpack.c.l.b16 %v624
        %v1405 = vunpack.c.h.b16 %v624
        %v1406 = vunpack.c.l.b16 %v625
        %v1407 = vunpack.c.h.b16 %v625
        %v1408 = vunpack.c.l.b16 %v626
        %v1409 = vunpack.c.h.b16 %v626
        %v1410 = vunpack.c.l.b16 %v627
        %v1411 = vunpack.c.h.b16 %v627
        %v1412 = vunpack.c.l.b16 %v628
        %v1413 = vunpack.c.h.b16 %v628
        %v1414 = vunpack.c.l.b16 %v629
        %v1415 = vunpack.c.h.b16 %v629
        %v1416 = vunpack.c.l.b16 %v630
        %v1417 = vunpack.c.h.b16 %v630
        %v1418 = vunpack.c.l.b16 %v631
        %v1419 = vunpack.c.h.b16 %v631
        %v1420 = vunpack.c.l.b16 %v632
        %v1421 = vunpack.c.h.b16 %v632
        %v1422 = vunpack.c.l.b16 %v633
        %v1423 = vunpack.c.h.b16 %v633
        %v1424 = vunpack.c.l.b16 %v634
        %v1425 = vunpack.c.h.b16 %v634
        %v1426 = vunpack.c.l.b16 %v635
        %v1427 = vunpack.c.h.b16 %v635
        %v1428 = vunpack.c.l.b16 %v636
        %v1429 = vunpack.c.h.b16 %v636
        %v1430 = vunpack.c.l.b16 %v637
        %v1431 = vunpack.c.h.b16 %v637
        %v1432 = vunpack.c.l.b16 %v638
        %v1433 = vunpack.c.h.b16 %v638
        %v1434 = vunpack.c.l.b16 %v639
        %v1435 = vunpack.c.h.b16 %v639
        %v1436 = vunpack.c.l.b16 %v640
        %v1437 = vunpack.c.h.b16 %v640
        %v1438 = vunpack.c.l.b16 %v641
        %v1439 = vunpack.c.h.b16 %v641
        %v1440 = vunpack.c.l.b16 %v642
        %v1441 = vunpack.c.h.b16 %v642
        %v1442 = vunpack.c.l.b16 %v643
        %v1443 = vunpack.c.h.b16 %v643
        %v1444 = vunpack.c.l.b16 %v644
        %v1445 = vunpack.c.h.b16 %v644
        %v1446 = vunpack.c.l.b16 %v645
        %v1447 = vunpack.c.h.b16 %v645
        %v1448 = vunpack.c.l.b16 %v646
        %v1449 = vunpack.c.h.b16 %v646
        %v1450 = vunpack.c.l.b16 %v647
        %v1451 = vunpack.c.h.b16 %v647
        %v1452 = vunpack.c.l.b16 %v648
        %v1453 = vunpack.c.h.b16 %v648
        %v1454 = vunpack.c.l.b16 %v649
        %v1455 = vunpack.c.h.b16 %v649
        %v1456 = vunpack.c.l.b16 %v650
        %v1457 = vunpack.c.h.b16 %v650
        %v1458 = vunpack.c.l.b16 %v651
        %v1459 = vunpack.c.h.b16 %v651
        %v1460 = vunpack.c.l.b16 %v652
        %v1461 = vunpack.c.h.b16 %v652
        %v1462 = vunpack.c.l.b16 %v653
        %v1463 = vunpack.c.h.b16 %v653
        %v1464 = vunpack.c.l.b16 %v654
        %v1465 = vunpack.c.h.b16 %v654
        %v1466 = vunpack.c.l.b16 %v655
        %v1467 = vunpack.c.h.b16 %v655
        %v1468 = vunpack.c.l.b16 %v656
        %v1469 = vunpack.c.h.b16 %v656
        %v1470 = vunpack.c.l.b16 %v657
        %v1471 = vunpack.c.h.b16 %v657
        %v1472 = vunpack.c.l.b16 %v658
        %v1473 = vunpack.c.h.b16 %v658
        %v1474 = vunpack.c.l.b16 %v659
        %v1475 = vunpack.c.h.b16 %v659
        %v1476 = vunpack.c.l.b16 %v660
        %v1477 = vunpack.c.h.b16 %v660
        %v1478 = vunpack.c.l.b16 %v661
        %v1479 = vunpack.c.h.b16 %v661
        %v1480 = vunpack.c.l.b16 %v662
        %v1481 = vunpack.c.h.b16 %v662
        %v1482 = vunpack.c.l.b16 %v663
        %v1483 = vunpack.c.h.b16 %v663
        %v1484 = vunpack.c.l.b16 %v664
        %v1485 = vunpack.c.h.b16 %v664
        %v1486 = vunpack.c.l.b16 %v665
        %v1487 = vunpack.c.h.b16 %v665
        %v1488 = vunpack.c.l.b16 %v666
        %v1489 = vunpack.c.h.b16 %v666
        %v1490 = vunpack.c.l.b16 %v667
        %v1491 = vunpack.c.h.b16 %v667
        %v1492 = vunpack.c.l.b16 %v668
        %v1493 = vunpack.c.h.b16 %v668
        %v1494 = vunpack.c.l.b16 %v669
        %v1495 = vunpack.c.h.b16 %v669
        %v1496 = vunpack.c.l.b16 %v670
        %v1497 = vunpack.c.h.b16 %v670
        %v1498 = vunpack.c.l.b16 %v671
        %v1499 = vunpack.c.h.b16 %v671
        %v1500 = vunpack.c.l.b16 %v672
        %v1501 = vunpack.c.h.b16 %v672
        %v1502 = vunpack.c.l.b16 %v673
        %v1503 = vunpack.c.h.b16 %v673
        %v1504 = vunpack.c.l.b16 %v674
        %v1505 = vunpack.c.h.b16 %v674
        %v1506 = vunpack.c.l.b16 %v675
        %v1507 = vunpack.c.h.b16 %v675
        %v1508 = vunpack.c.l.b16 %v676
        %v1509 = vunpack.c.h.b16 %v676
        %v1510 = vunpack.c.l.b16 %v677
        %v1511 = vunpack.c.h.b16 %v677
        %v1512 = vunpack.c.l.b16 %v678
        %v1513 = vunpack.c.h.b16 %v678
        %v1514 = vunpack.c.l.b16 %v679
        %v1515 = vunpack.c.h.b16 %v679
        %v1516 = vunpack.c.l.b16 %v680
        %v1517 = vunpack.c.h.b16 %v680
        %v1518 = vunpack.c.l.b16 %v681
        %v1519 = vunpack.c.h.b16 %v681
        %v1520 = vunpack.c.l.b16 %v682
        %v1521 = vunpack.c.h.b16 %v682
        %v1522 = vunpack.c.l.b16 %v683
        %v1523 = vunpack.c.h.b16 %v683
        %v1524 = vunpack.c.l.b16 %v684
        %v1525 = vunpack.c.h.b16 %v684
        %v1526 = vunpack.c.l.b16 %v685
        %v1527 = vunpack.c.h.b16 %v685
        %v1528 = vunpack.c.l.b16 %v686
        %v1529 = vunpack.c.h.b16 %v686
        %v1530 = vunpack.c.l.b16 %v687
        %v1531 = vunpack.c.h.b16 %v687
        %v1532 = vunpack.c.l.b16 %v688
        %v1533 = vunpack.c.h.b16 %v688
        %v1534 = vunpack.c.l.b16 %v689
        %v1535 = vunpack.c.h.b16 %v689
        %v1536 = vunpack.c.l.b16 %v690
        %v1537 = vunpack.c.h.b16 %v690
        %v1538 = vunpack.c.l.b16 %v691
        %v1539 = vunpack.c.h.b16 %v691
        %v1540 = vunpack.c.l.b16 %v692
        %v1541 = vunpack.c.h.b16 %v692
        %v1542 = vunpack.c.l.b16 %v693
        %v1543 = vunpack.c.h.b16 %v693
        %v1544 = vunpack.c.l.b16 %v694
        %v1545 = vunpack.c.h.b16 %v694
        %v1546 = vunpack.c.l.b16 %v695
        %v1547 = vunpack.c.h.b16 %v695
        %v1548 = vunpack.c.l.b16 %v696
        %v1549 = vunpack.c.h.b16 %v696
        %v1550 = vunpack.c.l.b16 %v697
        %v1551 = vunpack.c.h.b16 %v697
        %v1552 = vunpack.c.l.b16 %v698
        %v1553 = vunpack.c.h.b16 %v698
        %v1554 = vunpack.c.l.b16 %v699
        %v1555 = vunpack.c.h.b16 %v699
        %v1556 = vunpack.c.l.b16 %v700
        %v1557 = vunpack.c.h.b16 %v700
        %v1558 = vunpack.c.l.b16 %v701
        %v1559 = vunpack.c.h.b16 %v701
        %v1560 = vunpack.c.l.b16 %v702
        %v1561 = vunpack.c.h.b16 %v702
        %v1562 = vunpack.c.l.b16 %v703
        %v1563 = vunpack.c.h.b16 %v703
        %v1564 = vunpack.c.l.b16 %v704
        %v1565 = vunpack.c.h.b16 %v704
        %v1566 = vunpack.c.l.b16 %v705
        %v1567 = vunpack.c.h.b16 %v705
        %v1568 = vunpack.c.l.b16 %v706
        %v1569 = vunpack.c.h.b16 %v706
        %v1570 = vunpack.c.l.b16 %v707
        %v1571 = vunpack.c.h.b16 %v707
        %v1572 = vunpack.c.l.b16 %v708
        %v1573 = vunpack.c.h.b16 %v708
        %v1574 = vunpack.c.l.b16 %v709
        %v1575 = vunpack.c.h.b16 %v709
        %v1576 = vunpack.c.l.b16 %v710
        %v1577 = vunpack.c.h.b16 %v710
        %v1578 = vunpack.c.l.b16 %v711
        %v1579 = vunpack.c.h.b16 %v711
        %v1580 = vunpack.c.l.b16 %v712
        %v1581 = vunpack.c.h.b16 %v712
        %v1582 = vunpack.c.l.b16 %v713
        %v1583 = vunpack.c.h.b16 %v713
        %v1584 = vunpack.c.l.b16 %v714
        %v1585 = vunpack.c.h.b16 %v714
        %v1586 = vunpack.c.l.b16 %v715
        %v1587 = vunpack.c.h.b16 %v715
        %v1588 = vunpack.c.l.b16 %v716
        %v1589 = vunpack.c.h.b16 %v716
        %v1590 = vunpack.c.l.b16 %v717
        %v1591 = vunpack.c.h.b16 %v717
        %v1592 = vunpack.c.l.b16 %v718
        %v1593 = vunpack.c.h.b16 %v718
        %v1594 = vunpack.c.l.b16 %v719
        %v1595 = vunpack.c.h.b16 %v719
        %v1596 = vunpack.c.l.b16 %v720
        %v1597 = vunpack.c.h.b16 %v720
        %v1598 = vunpack.c.l.b16 %v721
        %v1599 = vunpack.c.h.b16 %v721
        %v1600 = vunpack.c.l.b16 %v722
        %v1601 = vunpack.c.h.b16 %v722
        %v1602 = vunpack.c.l.b16 %v723
        %v1603 = vunpack.c.h.b16 %v723
        %v1604 = vunpack.c.l.b16 %v724
        %v1605 = vunpack.c.h.b16 %v724
        %v1606 = vunpack.c.l.b16 %v725
        %v1607 = vunpack.c.h.b16 %v725
        %v1608 = vunpack.c.l.b16 %v726
        %v1609 = vunpack.c.h.b16 %v726
        %v1610 = vunpack.c.l.b16 %v727
        %v1611 = vunpack.c.h.b16 %v727
        %v1612 = vunpack.c.l.b16 %v728
        %v1613 = vunpack.c.h.b16 %v728
        %v1614 = vunpack.c.l.b16 %v729
        %v1615 = vunpack.c.h.b16 %v729
        %v1616 = vunpack.c.l.b16 %v730
        %v1617 = vunpack.c.h.b16 %v730
        %v1618 = vunpack.c.l.b16 %v731
        %v1619 = vunpack.c.h.b16 %v731
        %v1620 = vunpack.c.l.b16 %v732
        %v1621 = vunpack.c.h.b16 %v732
        %v1622 = vunpack.c.l.b16 %v733
        %v1623 = vunpack.c.h.b16 %v733
        %v1624 = vpack.c.b16 %v1236, %v1232
        %v1625 = vpack.c.b16 %v1237, %v1233
        %v1626 = vpack.c.b16 %v1238, %v1234
        %v1627 = vpack.c.b16 %v1239, %v1235
        %v1628 = vpack.c.b16 %v1244, %v1240
        %v1629 = vpack.c.b16 %v1245, %v1241
        %v1630 = vpack.c.b16 %v1246, %v1242
        %v1631 = vpack.c.b16 %v1247, %v1243
        %v1632 = vpack.c.b16 %v1252, %v1248
        %v1633 = vpack.c.b16 %v1253, %v1249
        %v1634 = vpack.c.b16 %v1254, %v1250
        %v1635 = vpack.c.b16 %v1255, %v1251
        %v1636 = vpack.c.b16 %v1260, %v1256
        %v1637 = vpack.c.b16 %v1261, %v1257
        %v1638 = vpack.c.b16 %v1262, %v1258
        %v1639 = vpack.c.b16 %v1263, %v1259
        %v1640 = vpack.c.b16 %v1268, %v1264
        %v1641 = vpack.c.b16 %v1269, %v1265
        %v1642 = vpack.c.b16 %v1270, %v1266
        %v1643 = vpack.c.b16 %v1271, %v1267
        %v1644 = vpack.c.b16 %v1276, %v1272
        %v1645 = vpack.c.b16 %v1277, %v1273
        %v1646 = vpack.c.b16 %v1278, %v1274
        %v1647 = vpack.c.b16 %v1279, %v1275
        %v1648 = vpack.c.b16 %v1284, %v1280
        %v1649 = vpack.c.b16 %v1285, %v1281
        %v1650 = vpack.c.b16 %v1286, %v1282
        %v1651 = vpack.c.b16 %v1287, %v1283
        %v1652 = vpack.c.b16 %v1292, %v1288
        %v1653 = vpack.c.b16 %v1293, %v1289
        %v1654 = vpack.c.b16 %v1294, %v1290
        %v1655 = vpack.c.b16 %v1295, %v1291
        %v1656 = vpack.c.b16 %v1300, %v1296
        %v1657 = vpack.c.b16 %v1301, %v1297
        %v1658 = vpack.c.b16 %v1302, %v1298
        %v1659 = vpack.c.b16 %v1303, %v1299
        %v1660 = vpack.c.b16 %v1308, %v1304
        %v1661 = vpack.c.b16 %v1309, %v1305
        %v1662 = vpack.c.b16 %v1310, %v1306
        %v1663 = vpack.c.b16 %v1311, %v1307
        %v1664 = vpack.c.b16 %v1316, %v1312
        %v1665 = vpack.c.b16 %v1317, %v1313
        %v1666 = vpack.c.b16 %v1318, %v1314
        %v1667 = vpack.c.b16 %v1319, %v1315
        %v1668 = vpack.c.b16 %v1324, %v1320
        %v1669 = vpack.c.b16 %v1325, %v1321
        %v1670 = vpack.c.b16 %v1326, %v1322
        %v1671 = vpack.c.b16 %v1327, %v1323
        %v1672 = vpack.c.b16 %v1332, %v1328
        %v1673 = vpack.c.b16 %v1333, %v1329
        %v1674 = vpack.c.b16 %v1334, %v1330
        %v1675 = vpack.c.b16 %v1335, %v1331
        %v1676 = vpack.c.b16 %v1340, %v1336
        %v1677 = vpack.c.b16 %v1341, %v1337
        %v1678 = vpack.c.b16 %v1342, %v1338
        %v1679 = vpack.c.b16 %v1343, %v1339
        %v1680 = vpack.c.b16 %v1348, %v1344
        %v1681 = vpack.c.b16 %v1349, %v1345
        %v1682 = vpack.c.b16 %v1350, %v1346
        %v1683 = vpack.c.b16 %v1351, %v1347
        %v1684 = vpack.c.b16 %v1356, %v1352
        %v1685 = vpack.c.b16 %v1357, %v1353
        %v1686 = vpack.c.b16 %v1358, %v1354
        %v1687 = vpack.c.b16 %v1359, %v1355
        %v1688 = vpack.c.b16 %v1364, %v1360
        %v1689 = vpack.c.b16 %v1365, %v1361
        %v1690 = vpack.c.b16 %v1366, %v1362
        %v1691 = vpack.c.b16 %v1367, %v1363
        %v1692 = vpack.c.b16 %v1372, %v1368
        %v1693 = vpack.c.b16 %v1373, %v1369
        %v1694 = vpack.c.b16 %v1374, %v1370
        %v1695 = vpack.c.b16 %v1375, %v1371
        %v1696 = vpack.c.b16 %v1380, %v1376
        %v1697 = vpack.c.b16 %v1381, %v1377
        %v1698 = vpack.c.b16 %v1382, %v1378
        %v1699 = vpack.c.b16 %v1383, %v1379
        %v1700 = vpack.c.b16 %v1388, %v1384
        %v1701 = vpack.c.b16 %v1389, %v1385
        %v1702 = vpack.c.b16 %v1390, %v1386
        %v1703 = vpack.c.b16 %v1391, %v1387
        %v1704 = vpack.c.b16 %v1396, %v1392
        %v1705 = vpack.c.b16 %v1397, %v1393
        %v1706 = vpack.c.b16 %v1398, %v1394
        %v1707 = vpack.c.b16 %v1399, %v1395
        %v1708 = vpack.c.b16 %v1404, %v1400
        %v1709 = vpack.c.b16 %v1405, %v1401
        %v1710 = vpack.c.b16 %v1406, %v1402
        %v1711 = vpack.c.b16 %v1407, %v1403
        %v1712 = vpack.c.b16 %v1412, %v1408
        %v1713 = vpack.c.b16 %v1413, %v1409
        %v1714 = vpack.c.b16 %v1414, %v1410
        %v1715 = vpack.c.b16 %v1415, %v1411
        %v1716 = vpack.c.b16 %v1420, %v1416
        %v1717 = vpack.c.b16 %v1421, %v1417
        %v1718 = vpack.c.b16 %v1422, %v1418
        %v1719 = vpack.c.b16 %v1423, %v1419
        %v1720 = vpack.c.b16 %v1428, %v1424
        %v1721 = vpack.c.b16 %v1429, %v1425
        %v1722 = vpack.c.b16 %v1430, %v1426
        %v1723 = vpack.c.b16 %v1431, %v1427
        %v1724 = vpack.c.b16 %v1436, %v1432
        %v1725 = vpack.c.b16 %v1437, %v1433
        %v1726 = vpack.c.b16 %v1438, %v1434
        %v1727 = vpack.c.b16 %v1439, %v1435
        %v1728 = vpack.c.b16 %v1444, %v1440
        %v1729 = vpack.c.b16 %v1445, %v1441
        %v1730 = vpack.c.b16 %v1446, %v1442
        %v1731 = vpack.c.b16 %v1447, %v1443
        %v1732 = vpack.c.b16 %v1452, %v1448
        %v1733 = vpack.c.b16 %v1453, %v1449
        %v1734 = vpack.c.b16 %v1454, %v1450
        %v1735 = vpack.c.b16 %v1455, %v1451
        %v1736 = vpack.c.b16 %v1460, %v1456
        %v1737 = vpack.c.b16 %v1461, %v1457
        %v1738 = vpack.c.b16 %v1462, %v1458
        %v1739 = vpack.c.b16 %v1463, %v1459
        %v1740 = vpack.c.b16 %v1468, %v1464
        %v1741 = vpack.c.b16 %v1469, %v1465
        %v1742 = vpack.c.b16 %v1470, %v1466
        %v1743 = vpack.c.b16 %v1471, %v1467
        %v1744 = vpack.c.b16 %v1476, %v1472
        %v1745 = vpack.c.b16 %v1477, %v1473
        %v1746 = vpack.c.b16 %v1478, %v1474
        %v1747 = vpack.c.b16 %v1479, %v1475
        %v1748 = vpack.c.b16 %v1484, %v1480
        %v1749 = vpack.c.b16 %v1485, %v1481
        %v1750 = vpack.c.b16 %v1486, %v1482
        %v1751 = vpack.c.b16 %v1487, %v1483
        %v1752 = vpack.c.b16 %v1492, %v1488
        %v1753 = vpack.c.b16 %v1493, %v1489
        %v1754 = vpack.c.b16 %v1494, %v1490
        %v1755 = vpack.c.b16 %v1495, %v1491
        %v1756 = vpack.c.b16 %v1500, %v1496
        %v1757 = vpack.c.b16 %v1501, %v1497
        %v1758 = vpack.c.b16 %v1502, %v1498
        %v1759 = vpack.c.b16 %v1503, %v1499
        %v1760 = vpack.c.b16 %v1508, %v1504
        %v1761 = vpack.c.b16 %v1509, %v1505
        %v1762 = vpack.c.b16 %v1510, %v1506
        %v1763 = vpack.c.b16 %v1511, %v1507
        %v1764 = vpack.c.b16 %v1516, %v1512
        %v1765 = vpack.c.b16 %v1517, %v1513
        %v1766 = vpack.c.b16 %v1518, %v1514
        %v1767 = vpack.c.b16 %v1519, %v1515
        %v1768 = vpack.c.b16 %v1524, %v1520
        %v1769 = vpack.c.b16 %v1525, %v1521
        %v1770 = vpack.c.b16 %v1526, %v1522
        %v1771 = vpack.c.b16 %v1527, %v1523
        %v1772 = vpack.c.b16 %v1532, %v1528
        %v1773 = vpack.c.b16 %v1533, %v1529
        %v1774 = vpack.c.b16 %v1534, %v1530
        %v1775 = vpack.c.b16 %v1535, %v1531
        %v1776 = vpack.c.b16 %v1540, %v1536
        %v1777 = vpack.c.b16 %v1541, %v1537
        %v1778 = vpack.c.b16 %v1542, %v1538
        %v1779 = vpack.c.b16 %v1543, %v1539
        %v1780 = vpack.c.b16 %v1548, %v1544
        %v1781 = vpack.c.b16 %v1549, %v1545
        %v1782 = vpack.c.b16 %v1550, %v1546
        %v1783 = vpack.c.b16 %v1551, %v1547
        %v1784 = vpack.c.b16 %v1556, %v1552
        %v1785 = vpack.c.b16 %v1557, %v1553
        %v1786 = vpack.c.b16 %v1558, %v1554
        %v1787 = vpack.c.b16 %v1559, %v1555
        %v1788 = vpack.c.b16 %v1564, %v1560
        %v1789 = vpack.c.b16 %v1565, %v1561
        %v1790 = vpack.c.b16 %v1566, %v1562
        %v1791 = vpack.c.b16 %v1567, %v1563
        %v1792 = vpack.c.b16 %v1572, %v1568
        %v1793 = vpack.c.b16 %v1573, %v1569
        %v1794 = vpack.c.b16 %v1574, %v1570
        %v1795 = vpack.c.b16 %v1575, %v1571
        %v1796 = vpack.c.b16 %v1580, %v1576
        %v1797 = vpack.c.b16 %v1581, %v1577
        %v1798 = vpack.c.b16 %v1582, %v1578
        %v1799 = vpack.c.b16 %v1583, %v1579
        %v1800 = vpack.c.b16 %v1588, %v1584
        %v1801 = vpack.c.b16 %v1589, %v1585
        %v1802 = vpack.c.b16 %v1590, %v1586
        %v1803 = vpack.c.b16 %v1591, %v1587
        %v1804 = vpack.c.b16 %v1596, %v1592
        %v1805 = vpack.c.b16 %v1597, %v1593
        %v1806 = vpack.c.b16 %v1598, %v1594
        %v1807 = vpack.c.b16 %v1599, %v1595
        %v1808 = vpack.c.b16 %v1604, %v1600
        %v1809 = vpack.c.b16 %v1605, %v1601
        %v1810 = vpack.c.b16 %v1606, %v1602
        %v1811 = vpack.c.b16 %v1607, %v1603
        %v1812 = vpack.c.b16 %v1612, %v1608
        %v1813 = vpack.c.b16 %v1613, %v1609
        %v1814 = vpack.c.b16 %v1614, %v1610
        %v1815 = vpack.c.b16 %v1615, %v1611
        %v1816 = vpack.c.b16 %v1620, %v1616
        %v1817 = vpack.c.b16 %v1621, %v1617
        %v1818 = vpack.c.b16 %v1622, %v1618
        %v1819 = vpack.c.b16 %v1623, %v1619
        %vm2016 = vcmask 130048
        %v2018 = vsel %vm2016, %v938, 0
        %v2021 = vsel %vm2016, %v945, 0
        %v2024 = vsel %vm2016, %v952, 0
        %v2027 = vsel %vm2016, %v959, 0
        %v2030 = vsel %vm2016, %v966, 0
        %v2033 = vsel %vm2016, %v973, 0
        %v2036 = vsel %vm2016, %v980, 0
        %v2039 = vsel %vm2016, %v987, 0
        %2041 = vmatprep.subr.bf16.mxu0 %v1625
        %2042 = vmatpush1.bf16.msra.mxu0 %v1624
        %2043 = vmatprep.subr.bf16.mxu0 %v1629
        %2044 = vmatpush1.bf16.msra.mxu0 %v1628
        %2045 = vmatprep.subr.bf16.mxu0 %v1633
        %2046 = vmatpush1.bf16.msra.mxu0 %v1632
        %2047 = vmatprep.subr.bf16.mxu0 %v1637
        %2048 = vmatpush1.bf16.msra.mxu0 %v1636
        %2049 = vmatprep.subr.bf16.mxu0 %v1641
        %2050 = vmatpush1.bf16.msra.mxu0 %v1640
        %2051 = vmatprep.subr.bf16.mxu0 %v1645
        %2052 = vmatpush1.bf16.msra.mxu0 %v1644
        %2053 = vmatprep.subr.bf16.mxu0 %v1649
        %2054 = vmatpush1.bf16.msra.mxu0 %v1648
        %2055 = vmatprep.subr.bf16.mxu0 %v1653
        %2056 = vmatpush1.bf16.msra.mxu0 %v1652
        %2057 = vmatprep.subr.bf16.mxu0 %v1657
        %2058 = vmatpush1.bf16.msra.mxu0 %v1656
        %2059 = vmatprep.subr.bf16.mxu0 %v1661
        %2060 = vmatpush1.bf16.msra.mxu0 %v1660
        %2061 = vmatprep.subr.bf16.mxu0 %v1665
        %2062 = vmatpush1.bf16.msra.mxu0 %v1664
        %2063 = vmatprep.subr.bf16.mxu0 %v1669
        %2064 = vmatpush1.bf16.msra.mxu0 %v1668
        %2065 = vmatprep.subr.bf16.mxu0 %v1673
        %2066 = vmatpush1.bf16.msra.mxu0 %v1672
        %2067 = vmatprep.subr.bf16.mxu0 %v1677
        %2068 = vmatpush1.bf16.msra.mxu0 %v1676
        %2069 = vmatprep.subr.bf16.mxu0 %v1681
        %2070 = vmatpush1.bf16.msra.mxu0 %v1680
        %2071 = vmatprep.subr.bf16.mxu0 %v1685
        %2072 = vmatpush1.bf16.msra.mxu0 %v1684
        %2073 = vmatprep.mubr.bf16.mxu0 %v933
        %2074 = vmatmul.mubr.bf16.gmra.mrb[0].mxu0 %v932
        %v2075 = vpop.f32.mrb[0].mxu0
        %v2076 = vadd.f32 %v739, %v2075
        %v2077 = vpop.f32.mrb[0].mxu0
        %v2078 = vadd.f32 %v743, %v2077
        %v2079 = vpop.f32.mrb[0].mxu0
        %v2080 = vadd.f32 %v739, %v2079
        %v2081 = vpop.f32.mrb[0].mxu0
        %v2082 = vadd.f32 %v743, %v2081
        %2083 = vmatprep.mubr.bf16.mxu0 %v940
        %2084 = vmatmul.mubr.bf16.gmra.mrb[0].mxu0 %v939
        %v2085 = vpop.f32.mrb[0].mxu0
        %v2086 = vadd.f32 %v739, %v2085
        %v2087 = vpop.f32.mrb[0].mxu0
        %v2088 = vadd.f32 %v743, %v2087
        %v2089 = vpop.f32.mrb[0].mxu0
        %v2090 = vadd.f32 %v739, %v2089
        %v2091 = vpop.f32.mrb[0].mxu0
        %v2092 = vadd.f32 %v743, %v2091
        %2093 = vmatprep.mubr.bf16.mxu0 %v947
        %2094 = vmatmul.mubr.bf16.gmra.mrb[0].mxu0 %v946
        %v2095 = vpop.f32.mrb[0].mxu0
        %v2096 = vadd.f32 %v739, %v2095
        %v2097 = vpop.f32.mrb[0].mxu0
        %v2098 = vadd.f32 %v743, %v2097
        %v2099 = vpop.f32.mrb[0].mxu0
        %v2100 = vadd.f32 %v739, %v2099
        %v2101 = vpop.f32.mrb[0].mxu0
        %v2102 = vadd.f32 %v743, %v2101
        %2103 = vmatprep.mubr.bf16.mxu0 %v954
        %2104 = vmatmul.mubr.bf16.gmra.mrb[0].mxu0 %v953
        %v2105 = vpop.f32.mrb[0].mxu0
        %v2106 = vadd.f32 %v739, %v2105
        %v2107 = vpop.f32.mrb[0].mxu0
        %v2108 = vadd.f32 %v743, %v2107
        %v2109 = vpop.f32.mrb[0].mxu0
        %v2110 = vadd.f32 %v739, %v2109
        %v2111 = vpop.f32.mrb[0].mxu0
        %v2112 = vadd.f32 %v743, %v2111
        %2113 = vmatprep.mubr.bf16.mxu0 %v961
        %2114 = vmatmul.mubr.bf16.gmra.mrb[0].mxu0 %v960
        %v2115 = vpop.f32.mrb[0].mxu0
        %v2116 = vadd.f32 %v739, %v2115
        %v2117 = vpop.f32.mrb[0].mxu0
        %v2118 = vadd.f32 %v743, %v2117
        %v2119 = vpop.f32.mrb[0].mxu0
        %v2120 = vadd.f32 %v739, %v2119
        %v2121 = vpop.f32.mrb[0].mxu0
        %v2122 = vadd.f32 %v743, %v2121
        %2123 = vmatprep.mubr.bf16.mxu0 %v968
        %2124 = vmatmul.mubr.bf16.gmra.mrb[0].mxu0 %v967
        %v2125 = vpop.f32.mrb[0].mxu0
        %v2126 = vadd.f32 %v739, %v2125
        %v2127 = vpop.f32.mrb[0].mxu0
        %v2128 = vadd.f32 %v743, %v2127
        %v2129 = vpop.f32.mrb[0].mxu0
        %v2130 = vadd.f32 %v739, %v2129
        %v2131 = vpop.f32.mrb[0].mxu0
        %v2132 = vadd.f32 %v743, %v2131
        %2133 = vmatprep.mubr.bf16.mxu0 %v975
        %2134 = vmatmul.mubr.bf16.gmra.mrb[0].mxu0 %v974
        %v2135 = vpop.f32.mrb[0].mxu0
        %v2136 = vadd.f32 %v739, %v2135
        %v2137 = vpop.f32.mrb[0].mxu0
        %v2138 = vadd.f32 %v743, %v2137
        %v2139 = vpop.f32.mrb[0].mxu0
        %v2140 = vadd.f32 %v739, %v2139
        %v2141 = vpop.f32.mrb[0].mxu0
        %v2142 = vadd.f32 %v743, %v2141
        %2143 = vmatprep.mubr.bf16.mxu0 %v982
        %2144 = vmatmul.mubr.bf16.gmra.mrb[0].mxu0 %v981
        %v2145 = vpop.f32.mrb[0].mxu0
        %v2146 = vadd.f32 %v739, %v2145
        %v2147 = vpop.f32.mrb[0].mxu0
        %v2148 = vadd.f32 %v743, %v2147
        %v2149 = vpop.f32.mrb[0].mxu0
        %v2150 = vadd.f32 %v739, %v2149
        %v2151 = vpop.f32.mrb[0].mxu0
        %v2152 = vadd.f32 %v743, %v2151
        %2153 = vdwg.mxu0
        %2154 = vmatprep.subr.bf16.mxu0 %v1689
        %2155 = vmatpush1.bf16.msra.mxu0 %v1688
        %2156 = vmatprep.subr.bf16.mxu0 %v1693
        %2157 = vmatpush1.bf16.msra.mxu0 %v1692
        %2158 = vmatprep.subr.bf16.mxu0 %v1697
        %2159 = vmatpush1.bf16.msra.mxu0 %v1696
        %2160 = vmatprep.subr.bf16.mxu0 %v1701
        %2161 = vmatpush1.bf16.msra.mxu0 %v1700
        %2162 = vmatprep.subr.bf16.mxu0 %v1705
        %2163 = vmatpush1.bf16.msra.mxu0 %v1704
        %2164 = vmatprep.subr.bf16.mxu0 %v1709
        %2165 = vmatpush1.bf16.msra.mxu0 %v1708
        %2166 = vmatprep.subr.bf16.mxu0 %v1713
        %2167 = vmatpush1.bf16.msra.mxu0 %v1712
        %2168 = vmatprep.subr.bf16.mxu0 %v1717
        %2169 = vmatpush1.bf16.msra.mxu0 %v1716
        %2170 = vmatprep.subr.bf16.mxu0 %v1721
        %2171 = vmatpush1.bf16.msra.mxu0 %v1720
        %2172 = vmatprep.subr.bf16.mxu0 %v1725
        %2173 = vmatpush1.bf16.msra.mxu0 %v1724
        %2174 = vmatprep.subr.bf16.mxu0 %v1729
        %2175 = vmatpush1.bf16.msra.mxu0 %v1728
        %2176 = vmatprep.subr.bf16.mxu0 %v1733
        %2177 = vmatpush1.bf16.msra.mxu0 %v1732
        %2178 = vmatprep.subr.bf16.mxu0 %v1737
        %2179 = vmatpush1.bf16.msra.mxu0 %v1736
        %2180 = vmatprep.subr.bf16.mxu0 %v1741
        %2181 = vmatpush1.bf16.msra.mxu0 %v1740
        %2182 = vmatprep.subr.bf16.mxu0 %v1745
        %2183 = vmatpush1.bf16.msra.mxu0 %v1744
        %2184 = vmatprep.subr.bf16.mxu0 %v1749
        %2185 = vmatpush1.bf16.msra.mxu0 %v1748
        %2186 = vmatprep.mubr.bf16.mxu0 %v935
        %2187 = vmatmul.mubr.bf16.gmra.mrb[0].mxu0 %v934
        %v2188 = vpop.f32.mrb[0].mxu0
        %v2189 = vadd.f32 %v2076, %v2188
        %v2190 = vpop.f32.mrb[0].mxu0
        %v2191 = vadd.f32 %v2078, %v2190
        %v2192 = vpop.f32.mrb[0].mxu0
        %v2193 = vadd.f32 %v2080, %v2192
        %v2194 = vpop.f32.mrb[0].mxu0
        %v2195 = vadd.f32 %v2082, %v2194
        %2196 = vmatprep.mubr.bf16.mxu0 %v942
        %2197 = vmatmul.mubr.bf16.gmra.mrb[0].mxu0 %v941
        %v2198 = vpop.f32.mrb[0].mxu0
        %v2199 = vadd.f32 %v2086, %v2198
        %v2200 = vpop.f32.mrb[0].mxu0
        %v2201 = vadd.f32 %v2088, %v2200
        %v2202 = vpop.f32.mrb[0].mxu0
        %v2203 = vadd.f32 %v2090, %v2202
        %v2204 = vpop.f32.mrb[0].mxu0
        %v2205 = vadd.f32 %v2092, %v2204
        %2206 = vmatprep.mubr.bf16.mxu0 %v949
        %2207 = vmatmul.mubr.bf16.gmra.mrb[0].mxu0 %v948
        %v2208 = vpop.f32.mrb[0].mxu0
        %v2209 = vadd.f32 %v2096, %v2208
        %v2210 = vpop.f32.mrb[0].mxu0
        %v2211 = vadd.f32 %v2098, %v2210
        %v2212 = vpop.f32.mrb[0].mxu0
        %v2213 = vadd.f32 %v2100, %v2212
        %v2214 = vpop.f32.mrb[0].mxu0
        %v2215 = vadd.f32 %v2102, %v2214
        %2216 = vmatprep.mubr.bf16.mxu0 %v956
        %2217 = vmatmul.mubr.bf16.gmra.mrb[0].mxu0 %v955
        %v2218 = vpop.f32.mrb[0].mxu0
        %v2219 = vadd.f32 %v2106, %v2218
        %v2220 = vpop.f32.mrb[0].mxu0
        %v2221 = vadd.f32 %v2108, %v2220
        %v2222 = vpop.f32.mrb[0].mxu0
        %v2223 = vadd.f32 %v2110, %v2222
        %v2224 = vpop.f32.mrb[0].mxu0
        %v2225 = vadd.f32 %v2112, %v2224
        %2226 = vmatprep.mubr.bf16.mxu0 %v963
        %2227 = vmatmul.mubr.bf16.gmra.mrb[0].mxu0 %v962
        %v2228 = vpop.f32.mrb[0].mxu0
        %v2229 = vadd.f32 %v2116, %v2228
        %v2230 = vpop.f32.mrb[0].mxu0
        %v2231 = vadd.f32 %v2118, %v2230
        %v2232 = vpop.f32.mrb[0].mxu0
        %v2233 = vadd.f32 %v2120, %v2232
        %v2234 = vpop.f32.mrb[0].mxu0
        %v2235 = vadd.f32 %v2122, %v2234
        %2236 = vmatprep.mubr.bf16.mxu0 %v970
        %2237 = vmatmul.mubr.bf16.gmra.mrb[0].mxu0 %v969
        %v2238 = vpop.f32.mrb[0].mxu0
        %v2239 = vadd.f32 %v2126, %v2238
        %v2240 = vpop.f32.mrb[0].mxu0
        %v2241 = vadd.f32 %v2128, %v2240
        %v2242 = vpop.f32.mrb[0].mxu0
        %v2243 = vadd.f32 %v2130, %v2242
        %v2244 = vpop.f32.mrb[0].mxu0
        %v2245 = vadd.f32 %v2132, %v2244
        %2246 = vmatprep.mubr.bf16.mxu0 %v977
        %2247 = vmatmul.mubr.bf16.gmra.mrb[0].mxu0 %v976
        %v2248 = vpop.f32.mrb[0].mxu0
        %v2249 = vadd.f32 %v2136, %v2248
        %v2250 = vpop.f32.mrb[0].mxu0
        %v2251 = vadd.f32 %v2138, %v2250
        %v2252 = vpop.f32.mrb[0].mxu0
        %v2253 = vadd.f32 %v2140, %v2252
        %v2254 = vpop.f32.mrb[0].mxu0
        %v2255 = vadd.f32 %v2142, %v2254
        %2256 = vmatprep.mubr.bf16.mxu0 %v984
        %2257 = vmatmul.mubr.bf16.gmra.mrb[0].mxu0 %v983
        %v2258 = vpop.f32.mrb[0].mxu0
        %v2259 = vadd.f32 %v2146, %v2258
        %v2260 = vpop.f32.mrb[0].mxu0
        %v2261 = vadd.f32 %v2148, %v2260
        %v2262 = vpop.f32.mrb[0].mxu0
        %v2263 = vadd.f32 %v2150, %v2262
        %v2264 = vpop.f32.mrb[0].mxu0
        %v2265 = vadd.f32 %v2152, %v2264
        %2266 = vdwg.mxu0
        %2267 = vmatprep.subr.bf16.mxu0 %v1753
        %2268 = vmatpush1.bf16.msra.mxu0 %v1752
        %2269 = vmatprep.subr.bf16.mxu0 %v1757
        %2270 = vmatpush1.bf16.msra.mxu0 %v1756
        %2271 = vmatprep.subr.bf16.mxu0 %v1761
        %2272 = vmatpush1.bf16.msra.mxu0 %v1760
        %2273 = vmatprep.subr.bf16.mxu0 %v1765
        %2274 = vmatpush1.bf16.msra.mxu0 %v1764
        %2275 = vmatprep.subr.bf16.mxu0 %v1769
        %2276 = vmatpush1.bf16.msra.mxu0 %v1768
        %2277 = vmatprep.subr.bf16.mxu0 %v1773
        %2278 = vmatpush1.bf16.msra.mxu0 %v1772
        %2279 = vmatprep.subr.bf16.mxu0 %v1777
        %2280 = vmatpush1.bf16.msra.mxu0 %v1776
        %2281 = vmatprep.subr.bf16.mxu0 %v1781
        %2282 = vmatpush1.bf16.msra.mxu0 %v1780
        %2283 = vmatprep.subr.bf16.mxu0 %v1785
        %2284 = vmatpush1.bf16.msra.mxu0 %v1784
        %2285 = vmatprep.subr.bf16.mxu0 %v1789
        %2286 = vmatpush1.bf16.msra.mxu0 %v1788
        %2287 = vmatprep.subr.bf16.mxu0 %v1793
        %2288 = vmatpush1.bf16.msra.mxu0 %v1792
        %2289 = vmatprep.subr.bf16.mxu0 %v1797
        %2290 = vmatpush1.bf16.msra.mxu0 %v1796
        %2291 = vmatprep.subr.bf16.mxu0 %v1801
        %2292 = vmatpush1.bf16.msra.mxu0 %v1800
        %2293 = vmatprep.subr.bf16.mxu0 %v1805
        %2294 = vmatpush1.bf16.msra.mxu0 %v1804
        %2295 = vmatprep.subr.bf16.mxu0 %v1809
        %2296 = vmatpush1.bf16.msra.mxu0 %v1808
        %2297 = vmatprep.subr.bf16.mxu0 %v1813
        %2298 = vmatpush1.bf16.msra.mxu0 %v1812
        %2299 = vmatprep.mubr.bf16.mxu0 %v937
        %2300 = vmatmul.mubr.bf16.gmra.mrb[0].mxu0 %v936
        %v2301 = vpop.f32.mrb[0].mxu0
        %v2302 = vadd.f32 %v2189, %v2301
        %v2303 = vpop.f32.mrb[0].mxu0
        %v2304 = vadd.f32 %v2191, %v2303
        %v2305 = vpop.f32.mrb[0].mxu0
        %v2306 = vadd.f32 %v2193, %v2305
        %v2307 = vpop.f32.mrb[0].mxu0
        %v2308 = vadd.f32 %v2195, %v2307
        %2309 = vmatprep.mubr.bf16.mxu0 %v944
        %2310 = vmatmul.mubr.bf16.gmra.mrb[0].mxu0 %v943
        %v2311 = vpop.f32.mrb[0].mxu0
        %v2312 = vadd.f32 %v2199, %v2311
        %v2313 = vpop.f32.mrb[0].mxu0
        %v2314 = vadd.f32 %v2201, %v2313
        %v2315 = vpop.f32.mrb[0].mxu0
        %v2316 = vadd.f32 %v2203, %v2315
        %v2317 = vpop.f32.mrb[0].mxu0
        %v2318 = vadd.f32 %v2205, %v2317
        %2319 = vmatprep.mubr.bf16.mxu0 %v951
        %2320 = vmatmul.mubr.bf16.gmra.mrb[0].mxu0 %v950
        %v2321 = vpop.f32.mrb[0].mxu0
        %v2322 = vadd.f32 %v2209, %v2321
        %v2323 = vpop.f32.mrb[0].mxu0
        %v2324 = vadd.f32 %v2211, %v2323
        %v2325 = vpop.f32.mrb[0].mxu0
        %v2326 = vadd.f32 %v2213, %v2325
        %v2327 = vpop.f32.mrb[0].mxu0
        %v2328 = vadd.f32 %v2215, %v2327
        %2329 = vmatprep.mubr.bf16.mxu0 %v958
        %2330 = vmatmul.mubr.bf16.gmra.mrb[0].mxu0 %v957
        %v2331 = vpop.f32.mrb[0].mxu0
        %v2332 = vadd.f32 %v2219, %v2331
        %v2333 = vpop.f32.mrb[0].mxu0
        %v2334 = vadd.f32 %v2221, %v2333
        %v2335 = vpop.f32.mrb[0].mxu0
        %v2336 = vadd.f32 %v2223, %v2335
        %v2337 = vpop.f32.mrb[0].mxu0
        %v2338 = vadd.f32 %v2225, %v2337
        %2339 = vmatprep.mubr.bf16.mxu0 %v965
        %2340 = vmatmul.mubr.bf16.gmra.mrb[0].mxu0 %v964
        %v2341 = vpop.f32.mrb[0].mxu0
        %v2342 = vadd.f32 %v2229, %v2341
        %v2343 = vpop.f32.mrb[0].mxu0
        %v2344 = vadd.f32 %v2231, %v2343
        %v2345 = vpop.f32.mrb[0].mxu0
        %v2346 = vadd.f32 %v2233, %v2345
        %v2347 = vpop.f32.mrb[0].mxu0
        %v2348 = vadd.f32 %v2235, %v2347
        %2349 = vmatprep.mubr.bf16.mxu0 %v972
        %2350 = vmatmul.mubr.bf16.gmra.mrb[0].mxu0 %v971
        %v2351 = vpop.f32.mrb[0].mxu0
        %v2352 = vadd.f32 %v2239, %v2351
        %v2353 = vpop.f32.mrb[0].mxu0
        %v2354 = vadd.f32 %v2241, %v2353
        %v2355 = vpop.f32.mrb[0].mxu0
        %v2356 = vadd.f32 %v2243, %v2355
        %v2357 = vpop.f32.mrb[0].mxu0
        %v2358 = vadd.f32 %v2245, %v2357
        %2359 = vmatprep.mubr.bf16.mxu0 %v979
        %2360 = vmatmul.mubr.bf16.gmra.mrb[0].mxu0 %v978
        %v2361 = vpop.f32.mrb[0].mxu0
        %v2362 = vadd.f32 %v2249, %v2361
        %v2363 = vpop.f32.mrb[0].mxu0
        %v2364 = vadd.f32 %v2251, %v2363
        %v2365 = vpop.f32.mrb[0].mxu0
        %v2366 = vadd.f32 %v2253, %v2365
        %v2367 = vpop.f32.mrb[0].mxu0
        %v2368 = vadd.f32 %v2255, %v2367
        %2369 = vmatprep.mubr.bf16.mxu0 %v986
        %2370 = vmatmul.mubr.bf16.gmra.mrb[0].mxu0 %v985
        %v2371 = vpop.f32.mrb[0].mxu0
        %v2372 = vadd.f32 %v2259, %v2371
        %v2373 = vpop.f32.mrb[0].mxu0
        %v2374 = vadd.f32 %v2261, %v2373
        %v2375 = vpop.f32.mrb[0].mxu0
        %v2376 = vadd.f32 %v2263, %v2375
        %v2377 = vpop.f32.mrb[0].mxu0
        %v2378 = vadd.f32 %v2265, %v2377
        %2379 = vdwg.mxu0
        %2380 = vmatprep.subr.bf16.mxu0 %v1817
        %2381 = vmatpush1.bf16.msra.mxu0 %v1816
        %2382 = vmatprep.subr.bf16.mxu0 0
        %2383 = vmatpush1.bf16.msra.mxu0 0
        %2384 = vmatprep.subr.bf16.mxu0 0
        %2385 = vmatpush1.bf16.msra.mxu0 0
        %2386 = vmatprep.subr.bf16.mxu0 0
        %2387 = vmatpush1.bf16.msra.mxu0 0
        %2388 = vmatprep.subr.bf16.mxu0 0
        %2389 = vmatpush1.bf16.msra.mxu0 0
        %2390 = vmatprep.subr.bf16.mxu0 0
        %2391 = vmatpush1.bf16.msra.mxu0 0
        %2392 = vmatprep.subr.bf16.mxu0 0
        %2393 = vmatpush1.bf16.msra.mxu0 0
        %2394 = vmatprep.subr.bf16.mxu0 0
        %2395 = vmatpush1.bf16.msra.mxu0 0
        %2396 = vmatprep.subr.bf16.mxu0 0
        %2397 = vmatpush1.bf16.msra.mxu0 0
        %2398 = vmatprep.subr.bf16.mxu0 0
        %2399 = vmatpush1.bf16.msra.mxu0 0
        %2400 = vmatprep.subr.bf16.mxu0 0
        %2401 = vmatpush1.bf16.msra.mxu0 0
        %2402 = vmatprep.subr.bf16.mxu0 0
        %2403 = vmatpush1.bf16.msra.mxu0 0
        %2404 = vmatprep.subr.bf16.mxu0 0
        %2405 = vmatpush1.bf16.msra.mxu0 0
        %2406 = vmatprep.subr.bf16.mxu0 0
        %2407 = vmatpush1.bf16.msra.mxu0 0
        %2408 = vmatprep.subr.bf16.mxu0 0
        %2409 = vmatpush1.bf16.msra.mxu0 0
        %2410 = vmatprep.subr.bf16.mxu0 0
        %2411 = vmatpush1.bf16.msra.mxu0 0
        %2412 = vmatprep.mubr.bf16.mxu0 0
        %2413 = vmatmul.mubr.bf16.gmra.mrb[0].mxu0 %v2018
        %v2414 = vpop.f32.mrb[0].mxu0
        %v2415 = vadd.f32 %v2302, %v2414
        %v2416 = vpop.f32.mrb[0].mxu0
        %v2417 = vadd.f32 %v2304, %v2416
        %v2418 = vpop.f32.mrb[0].mxu0
        %v2419 = vadd.f32 %v2306, %v2418
        %v2420 = vpop.f32.mrb[0].mxu0
        %v2421 = vadd.f32 %v2308, %v2420
        %2422 = vmatprep.mubr.bf16.mxu0 0
        %2423 = vmatmul.mubr.bf16.gmra.mrb[0].mxu0 %v2021
        %v2424 = vpop.f32.mrb[0].mxu0
        %v2425 = vadd.f32 %v2312, %v2424
        %v2426 = vpop.f32.mrb[0].mxu0
        %v2427 = vadd.f32 %v2314, %v2426
        %v2428 = vpop.f32.mrb[0].mxu0
        %v2429 = vadd.f32 %v2316, %v2428
        %v2430 = vpop.f32.mrb[0].mxu0
        %v2431 = vadd.f32 %v2318, %v2430
        %2432 = vmatprep.mubr.bf16.mxu0 0
        %2433 = vmatmul.mubr.bf16.gmra.mrb[0].mxu0 %v2024
        %v2434 = vpop.f32.mrb[0].mxu0
        %v2435 = vadd.f32 %v2322, %v2434
        %v2436 = vpop.f32.mrb[0].mxu0
        %v2437 = vadd.f32 %v2324, %v2436
        %v2438 = vpop.f32.mrb[0].mxu0
        %v2439 = vadd.f32 %v2326, %v2438
        %v2440 = vpop.f32.mrb[0].mxu0
        %v2441 = vadd.f32 %v2328, %v2440
        %2442 = vmatprep.mubr.bf16.mxu0 0
        %2443 = vmatmul.mubr.bf16.gmra.mrb[0].mxu0 %v2027
        %v2444 = vpop.f32.mrb[0].mxu0
        %v2445 = vadd.f32 %v2332, %v2444
        %v2446 = vpop.f32.mrb[0].mxu0
        %v2447 = vadd.f32 %v2334, %v2446
        %v2448 = vpop.f32.mrb[0].mxu0
        %v2449 = vadd.f32 %v2336, %v2448
        %v2450 = vpop.f32.mrb[0].mxu0
        %v2451 = vadd.f32 %v2338, %v2450
        %2452 = vmatprep.mubr.bf16.mxu0 0
        %2453 = vmatmul.mubr.bf16.gmra.mrb[0].mxu0 %v2030
        %v2454 = vpop.f32.mrb[0].mxu0
        %v2455 = vadd.f32 %v2342, %v2454
        %v2456 = vpop.f32.mrb[0].mxu0
        %v2457 = vadd.f32 %v2344, %v2456
        %v2458 = vpop.f32.mrb[0].mxu0
        %v2459 = vadd.f32 %v2346, %v2458
        %v2460 = vpop.f32.mrb[0].mxu0
        %v2461 = vadd.f32 %v2348, %v2460
        %2462 = vmatprep.mubr.bf16.mxu0 0
        %2463 = vmatmul.mubr.bf16.gmra.mrb[0].mxu0 %v2033
        %v2464 = vpop.f32.mrb[0].mxu0
        %v2465 = vadd.f32 %v2352, %v2464
        %v2466 = vpop.f32.mrb[0].mxu0
        %v2467 = vadd.f32 %v2354, %v2466
        %v2468 = vpop.f32.mrb[0].mxu0
        %v2469 = vadd.f32 %v2356, %v2468
        %v2470 = vpop.f32.mrb[0].mxu0
        %v2471 = vadd.f32 %v2358, %v2470
        %2472 = vmatprep.mubr.bf16.mxu0 0
        %2473 = vmatmul.mubr.bf16.gmra.mrb[0].mxu0 %v2036
        %v2474 = vpop.f32.mrb[0].mxu0
        %v2475 = vadd.f32 %v2362, %v2474
        %v2476 = vpop.f32.mrb[0].mxu0
        %v2477 = vadd.f32 %v2364, %v2476
        %v2478 = vpop.f32.mrb[0].mxu0
        %v2479 = vadd.f32 %v2366, %v2478
        %v2480 = vpop.f32.mrb[0].mxu0
        %v2481 = vadd.f32 %v2368, %v2480
        %2482 = vmatprep.mubr.bf16.mxu0 0
        %2483 = vmatmul.mubr.bf16.gmra.mrb[0].mxu0 %v2039
        %v2484 = vpop.f32.mrb[0].mxu0
        %v2485 = vadd.f32 %v2372, %v2484
        %v2486 = vpop.f32.mrb[0].mxu0
        %v2487 = vadd.f32 %v2374, %v2486
        %v2488 = vpop.f32.mrb[0].mxu0
        %v2489 = vadd.f32 %v2376, %v2488
        %v2490 = vpop.f32.mrb[0].mxu0
        %v2491 = vadd.f32 %v2378, %v2490
        %2492 = vdwg.mxu0
        %2493 = vmatprep.subr.bf16.mxu0 %v1627
        %2494 = vmatpush1.bf16.msra.mxu0 %v1626
        %2495 = vmatprep.subr.bf16.mxu0 %v1631
        %2496 = vmatpush1.bf16.msra.mxu0 %v1630
        %2497 = vmatprep.subr.bf16.mxu0 %v1635
        %2498 = vmatpush1.bf16.msra.mxu0 %v1634
        %2499 = vmatprep.subr.bf16.mxu0 %v1639
        %2500 = vmatpush1.bf16.msra.mxu0 %v1638
        %2501 = vmatprep.subr.bf16.mxu0 %v1643
        %2502 = vmatpush1.bf16.msra.mxu0 %v1642
        %2503 = vmatprep.subr.bf16.mxu0 %v1647
        %2504 = vmatpush1.bf16.msra.mxu0 %v1646
        %2505 = vmatprep.subr.bf16.mxu0 %v1651
        %2506 = vmatpush1.bf16.msra.mxu0 %v1650
        %2507 = vmatprep.subr.bf16.mxu0 %v1655
        %2508 = vmatpush1.bf16.msra.mxu0 %v1654
        %2509 = vmatprep.subr.bf16.mxu0 %v1659
        %2510 = vmatpush1.bf16.msra.mxu0 %v1658
        %2511 = vmatprep.subr.bf16.mxu0 %v1663
        %2512 = vmatpush1.bf16.msra.mxu0 %v1662
        %2513 = vmatprep.subr.bf16.mxu0 %v1667
        %2514 = vmatpush1.bf16.msra.mxu0 %v1666
        %2515 = vmatprep.subr.bf16.mxu0 %v1671
        %2516 = vmatpush1.bf16.msra.mxu0 %v1670
        %2517 = vmatprep.subr.bf16.mxu0 %v1675
        %2518 = vmatpush1.bf16.msra.mxu0 %v1674
        %2519 = vmatprep.subr.bf16.mxu0 %v1679
        %2520 = vmatpush1.bf16.msra.mxu0 %v1678
        %2521 = vmatprep.subr.bf16.mxu0 %v1683
        %2522 = vmatpush1.bf16.msra.mxu0 %v1682
        %2523 = vmatprep.subr.bf16.mxu0 %v1687
        %2524 = vmatpush1.bf16.msra.mxu0 %v1686
        %2525 = vmatprep.mubr.bf16.mxu0 %v933
        %2526 = vmatmul.mubr.bf16.gmra.mrb[0].mxu0 %v932
        %v2527 = vpop.f32.mrb[0].mxu0
        %v2528 = vadd.f32 %v747, %v2527
        %v2529 = vpop.f32.mrb[0].mxu0
        %v2530 = vadd.f32 %v751, %v2529
        %v2531 = vpop.f32.mrb[0].mxu0
        %v2532 = vadd.f32 %v747, %v2531
        %v2533 = vpop.f32.mrb[0].mxu0
        %v2534 = vadd.f32 %v751, %v2533
        %2535 = vmatprep.mubr.bf16.mxu0 %v940
        %2536 = vmatmul.mubr.bf16.gmra.mrb[0].mxu0 %v939
        %v2537 = vpop.f32.mrb[0].mxu0
        %v2538 = vadd.f32 %v747, %v2537
        %v2539 = vpop.f32.mrb[0].mxu0
        %v2540 = vadd.f32 %v751, %v2539
        %v2541 = vpop.f32.mrb[0].mxu0
        %v2542 = vadd.f32 %v747, %v2541
        %v2543 = vpop.f32.mrb[0].mxu0
        %v2544 = vadd.f32 %v751, %v2543
        %2545 = vmatprep.mubr.bf16.mxu0 %v947
        %2546 = vmatmul.mubr.bf16.gmra.mrb[0].mxu0 %v946
        %v2547 = vpop.f32.mrb[0].mxu0
        %v2548 = vadd.f32 %v747, %v2547
        %v2549 = vpop.f32.mrb[0].mxu0
        %v2550 = vadd.f32 %v751, %v2549
        %v2551 = vpop.f32.mrb[0].mxu0
        %v2552 = vadd.f32 %v747, %v2551
        %v2553 = vpop.f32.mrb[0].mxu0
        %v2554 = vadd.f32 %v751, %v2553
        %2555 = vmatprep.mubr.bf16.mxu0 %v954
        %2556 = vmatmul.mubr.bf16.gmra.mrb[0].mxu0 %v953
        %v2557 = vpop.f32.mrb[0].mxu0
        %v2558 = vadd.f32 %v747, %v2557
        %v2559 = vpop.f32.mrb[0].mxu0
        %v2560 = vadd.f32 %v751, %v2559
        %v2561 = vpop.f32.mrb[0].mxu0
        %v2562 = vadd.f32 %v747, %v2561
        %v2563 = vpop.f32.mrb[0].mxu0
        %v2564 = vadd.f32 %v751, %v2563
        %2565 = vmatprep.mubr.bf16.mxu0 %v961
        %2566 = vmatmul.mubr.bf16.gmra.mrb[0].mxu0 %v960
        %v2567 = vpop.f32.mrb[0].mxu0
        %v2568 = vadd.f32 %v747, %v2567
        %v2569 = vpop.f32.mrb[0].mxu0
        %v2570 = vadd.f32 %v751, %v2569
        %v2571 = vpop.f32.mrb[0].mxu0
        %v2572 = vadd.f32 %v747, %v2571
        %v2573 = vpop.f32.mrb[0].mxu0
        %v2574 = vadd.f32 %v751, %v2573
        %2575 = vmatprep.mubr.bf16.mxu0 %v968
        %2576 = vmatmul.mubr.bf16.gmra.mrb[0].mxu0 %v967
        %v2577 = vpop.f32.mrb[0].mxu0
        %v2578 = vadd.f32 %v747, %v2577
        %v2579 = vpop.f32.mrb[0].mxu0
        %v2580 = vadd.f32 %v751, %v2579
        %v2581 = vpop.f32.mrb[0].mxu0
        %v2582 = vadd.f32 %v747, %v2581
        %v2583 = vpop.f32.mrb[0].mxu0
        %v2584 = vadd.f32 %v751, %v2583
        %2585 = vmatprep.mubr.bf16.mxu0 %v975
        %2586 = vmatmul.mubr.bf16.gmra.mrb[0].mxu0 %v974
        %v2587 = vpop.f32.mrb[0].mxu0
        %v2588 = vadd.f32 %v747, %v2587
        %v2589 = vpop.f32.mrb[0].mxu0
        %v2590 = vadd.f32 %v751, %v2589
        %v2591 = vpop.f32.mrb[0].mxu0
        %v2592 = vadd.f32 %v747, %v2591
        %v2593 = vpop.f32.mrb[0].mxu0
        %v2594 = vadd.f32 %v751, %v2593
        %2595 = vmatprep.mubr.bf16.mxu0 %v982
        %2596 = vmatmul.mubr.bf16.gmra.mrb[0].mxu0 %v981
        %v2597 = vpop.f32.mrb[0].mxu0
        %v2598 = vadd.f32 %v747, %v2597
        %v2599 = vpop.f32.mrb[0].mxu0
        %v2600 = vadd.f32 %v751, %v2599
        %v2601 = vpop.f32.mrb[0].mxu0
        %v2602 = vadd.f32 %v747, %v2601
        %v2603 = vpop.f32.mrb[0].mxu0
        %v2604 = vadd.f32 %v751, %v2603
        %2605 = vdwg.mxu0
        %2606 = vmatprep.subr.bf16.mxu0 %v1691
        %2607 = vmatpush1.bf16.msra.mxu0 %v1690
        %2608 = vmatprep.subr.bf16.mxu0 %v1695
        %2609 = vmatpush1.bf16.msra.mxu0 %v1694
        %2610 = vmatprep.subr.bf16.mxu0 %v1699
        %2611 = vmatpush1.bf16.msra.mxu0 %v1698
        %2612 = vmatprep.subr.bf16.mxu0 %v1703
        %2613 = vmatpush1.bf16.msra.mxu0 %v1702
        %2614 = vmatprep.subr.bf16.mxu0 %v1707
        %2615 = vmatpush1.bf16.msra.mxu0 %v1706
        %2616 = vmatprep.subr.bf16.mxu0 %v1711
        %2617 = vmatpush1.bf16.msra.mxu0 %v1710
        %2618 = vmatprep.subr.bf16.mxu0 %v1715
        %2619 = vmatpush1.bf16.msra.mxu0 %v1714
        %2620 = vmatprep.subr.bf16.mxu0 %v1719
        %2621 = vmatpush1.bf16.msra.mxu0 %v1718
        %2622 = vmatprep.subr.bf16.mxu0 %v1723
        %2623 = vmatpush1.bf16.msra.mxu0 %v1722
        %2624 = vmatprep.subr.bf16.mxu0 %v1727
        %2625 = vmatpush1.bf16.msra.mxu0 %v1726
        %2626 = vmatprep.subr.bf16.mxu0 %v1731
        %2627 = vmatpush1.bf16.msra.mxu0 %v1730
        %2628 = vmatprep.subr.bf16.mxu0 %v1735
        %2629 = vmatpush1.bf16.msra.mxu0 %v1734
        %2630 = vmatprep.subr.bf16.mxu0 %v1739
        %2631 = vmatpush1.bf16.msra.mxu0 %v1738
        %2632 = vmatprep.subr.bf16.mxu0 %v1743
        %2633 = vmatpush1.bf16.msra.mxu0 %v1742
        %2634 = vmatprep.subr.bf16.mxu0 %v1747
        %2635 = vmatpush1.bf16.msra.mxu0 %v1746
        %2636 = vmatprep.subr.bf16.mxu0 %v1751
        %2637 = vmatpush1.bf16.msra.mxu0 %v1750
        %2638 = vmatprep.mubr.bf16.mxu0 %v935
        %2639 = vmatmul.mubr.bf16.gmra.mrb[0].mxu0 %v934
        %v2640 = vpop.f32.mrb[0].mxu0
        %v2641 = vadd.f32 %v2528, %v2640
        %v2642 = vpop.f32.mrb[0].mxu0
        %v2643 = vadd.f32 %v2530, %v2642
        %v2644 = vpop.f32.mrb[0].mxu0
        %v2645 = vadd.f32 %v2532, %v2644
        %v2646 = vpop.f32.mrb[0].mxu0
        %v2647 = vadd.f32 %v2534, %v2646
        %2648 = vmatprep.mubr.bf16.mxu0 %v942
        %2649 = vmatmul.mubr.bf16.gmra.mrb[0].mxu0 %v941
        %v2650 = vpop.f32.mrb[0].mxu0
        %v2651 = vadd.f32 %v2538, %v2650
        %v2652 = vpop.f32.mrb[0].mxu0
        %v2653 = vadd.f32 %v2540, %v2652
        %v2654 = vpop.f32.mrb[0].mxu0
        %v2655 = vadd.f32 %v2542, %v2654
        %v2656 = vpop.f32.mrb[0].mxu0
        %v2657 = vadd.f32 %v2544, %v2656
        %2658 = vmatprep.mubr.bf16.mxu0 %v949
        %2659 = vmatmul.mubr.bf16.gmra.mrb[0].mxu0 %v948
        %v2660 = vpop.f32.mrb[0].mxu0
        %v2661 = vadd.f32 %v2548, %v2660
        %v2662 = vpop.f32.mrb[0].mxu0
        %v2663 = vadd.f32 %v2550, %v2662
        %v2664 = vpop.f32.mrb[0].mxu0
        %v2665 = vadd.f32 %v2552, %v2664
        %v2666 = vpop.f32.mrb[0].mxu0
        %v2667 = vadd.f32 %v2554, %v2666
        %2668 = vmatprep.mubr.bf16.mxu0 %v956
        %2669 = vmatmul.mubr.bf16.gmra.mrb[0].mxu0 %v955
        %v2670 = vpop.f32.mrb[0].mxu0
        %v2671 = vadd.f32 %v2558, %v2670
        %v2672 = vpop.f32.mrb[0].mxu0
        %v2673 = vadd.f32 %v2560, %v2672
        %v2674 = vpop.f32.mrb[0].mxu0
        %v2675 = vadd.f32 %v2562, %v2674
        %v2676 = vpop.f32.mrb[0].mxu0
        %v2677 = vadd.f32 %v2564, %v2676
        %2678 = vmatprep.mubr.bf16.mxu0 %v963
        %2679 = vmatmul.mubr.bf16.gmra.mrb[0].mxu0 %v962
        %v2680 = vpop.f32.mrb[0].mxu0
        %v2681 = vadd.f32 %v2568, %v2680
        %v2682 = vpop.f32.mrb[0].mxu0
        %v2683 = vadd.f32 %v2570, %v2682
        %v2684 = vpop.f32.mrb[0].mxu0
        %v2685 = vadd.f32 %v2572, %v2684
        %v2686 = vpop.f32.mrb[0].mxu0
        %v2687 = vadd.f32 %v2574, %v2686
        %2688 = vmatprep.mubr.bf16.mxu0 %v970
        %2689 = vmatmul.mubr.bf16.gmra.mrb[0].mxu0 %v969
        %v2690 = vpop.f32.mrb[0].mxu0
        %v2691 = vadd.f32 %v2578, %v2690
        %v2692 = vpop.f32.mrb[0].mxu0
        %v2693 = vadd.f32 %v2580, %v2692
        %v2694 = vpop.f32.mrb[0].mxu0
        %v2695 = vadd.f32 %v2582, %v2694
        %v2696 = vpop.f32.mrb[0].mxu0
        %v2697 = vadd.f32 %v2584, %v2696
        %2698 = vmatprep.mubr.bf16.mxu0 %v977
        %2699 = vmatmul.mubr.bf16.gmra.mrb[0].mxu0 %v976
        %v2700 = vpop.f32.mrb[0].mxu0
        %v2701 = vadd.f32 %v2588, %v2700
        %v2702 = vpop.f32.mrb[0].mxu0
        %v2703 = vadd.f32 %v2590, %v2702
        %v2704 = vpop.f32.mrb[0].mxu0
        %v2705 = vadd.f32 %v2592, %v2704
        %v2706 = vpop.f32.mrb[0].mxu0
        %v2707 = vadd.f32 %v2594, %v2706
        %2708 = vmatprep.mubr.bf16.mxu0 %v984
        %2709 = vmatmul.mubr.bf16.gmra.mrb[0].mxu0 %v983
        %v2710 = vpop.f32.mrb[0].mxu0
        %v2711 = vadd.f32 %v2598, %v2710
        %v2712 = vpop.f32.mrb[0].mxu0
        %v2713 = vadd.f32 %v2600, %v2712
        %v2714 = vpop.f32.mrb[0].mxu0
        %v2715 = vadd.f32 %v2602, %v2714
        %v2716 = vpop.f32.mrb[0].mxu0
        %v2717 = vadd.f32 %v2604, %v2716
        %2718 = vdwg.mxu0
        %2719 = vmatprep.subr.bf16.mxu0 %v1755
        %2720 = vmatpush1.bf16.msra.mxu0 %v1754
        %2721 = vmatprep.subr.bf16.mxu0 %v1759
        %2722 = vmatpush1.bf16.msra.mxu0 %v1758
        %2723 = vmatprep.subr.bf16.mxu0 %v1763
        %2724 = vmatpush1.bf16.msra.mxu0 %v1762
        %2725 = vmatprep.subr.bf16.mxu0 %v1767
        %2726 = vmatpush1.bf16.msra.mxu0 %v1766
        %2727 = vmatprep.subr.bf16.mxu0 %v1771
        %2728 = vmatpush1.bf16.msra.mxu0 %v1770
        %2729 = vmatprep.subr.bf16.mxu0 %v1775
        %2730 = vmatpush1.bf16.msra.mxu0 %v1774
        %2731 = vmatprep.subr.bf16.mxu0 %v1779
        %2732 = vmatpush1.bf16.msra.mxu0 %v1778
        %2733 = vmatprep.subr.bf16.mxu0 %v1783
        %2734 = vmatpush1.bf16.msra.mxu0 %v1782
        %2735 = vmatprep.subr.bf16.mxu0 %v1787
        %2736 = vmatpush1.bf16.msra.mxu0 %v1786
        %2737 = vmatprep.subr.bf16.mxu0 %v1791
        %2738 = vmatpush1.bf16.msra.mxu0 %v1790
        %2739 = vmatprep.subr.bf16.mxu0 %v1795
        %2740 = vmatpush1.bf16.msra.mxu0 %v1794
        %2741 = vmatprep.subr.bf16.mxu0 %v1799
        %2742 = vmatpush1.bf16.msra.mxu0 %v1798
        %2743 = vmatprep.subr.bf16.mxu0 %v1803
        %2744 = vmatpush1.bf16.msra.mxu0 %v1802
        %2745 = vmatprep.subr.bf16.mxu0 %v1807
        %2746 = vmatpush1.bf16.msra.mxu0 %v1806
        %2747 = vmatprep.subr.bf16.mxu0 %v1811
        %2748 = vmatpush1.bf16.msra.mxu0 %v1810
        %2749 = vmatprep.subr.bf16.mxu0 %v1815
        %2750 = vmatpush1.bf16.msra.mxu0 %v1814
        %2751 = vmatprep.mubr.bf16.mxu0 %v937
        %2752 = vmatmul.mubr.bf16.gmra.mrb[0].mxu0 %v936
        %v2753 = vpop.f32.mrb[0].mxu0
        %v2754 = vadd.f32 %v2641, %v2753
        %v2755 = vpop.f32.mrb[0].mxu0
        %v2756 = vadd.f32 %v2643, %v2755
        %v2757 = vpop.f32.mrb[0].mxu0
        %v2758 = vadd.f32 %v2645, %v2757
        %v2759 = vpop.f32.mrb[0].mxu0
        %v2760 = vadd.f32 %v2647, %v2759
        %2761 = vmatprep.mubr.bf16.mxu0 %v944
        %2762 = vmatmul.mubr.bf16.gmra.mrb[0].mxu0 %v943
        %v2763 = vpop.f32.mrb[0].mxu0
        %v2764 = vadd.f32 %v2651, %v2763
        %v2765 = vpop.f32.mrb[0].mxu0
        %v2766 = vadd.f32 %v2653, %v2765
        %v2767 = vpop.f32.mrb[0].mxu0
        %v2768 = vadd.f32 %v2655, %v2767
        %v2769 = vpop.f32.mrb[0].mxu0
        %v2770 = vadd.f32 %v2657, %v2769
        %2771 = vmatprep.mubr.bf16.mxu0 %v951
        %2772 = vmatmul.mubr.bf16.gmra.mrb[0].mxu0 %v950
        %v2773 = vpop.f32.mrb[0].mxu0
        %v2774 = vadd.f32 %v2661, %v2773
        %v2775 = vpop.f32.mrb[0].mxu0
        %v2776 = vadd.f32 %v2663, %v2775
        %v2777 = vpop.f32.mrb[0].mxu0
        %v2778 = vadd.f32 %v2665, %v2777
        %v2779 = vpop.f32.mrb[0].mxu0
        %v2780 = vadd.f32 %v2667, %v2779
        %2781 = vmatprep.mubr.bf16.mxu0 %v958
        %2782 = vmatmul.mubr.bf16.gmra.mrb[0].mxu0 %v957
        %v2783 = vpop.f32.mrb[0].mxu0
        %v2784 = vadd.f32 %v2671, %v2783
        %v2785 = vpop.f32.mrb[0].mxu0
        %v2786 = vadd.f32 %v2673, %v2785
        %v2787 = vpop.f32.mrb[0].mxu0
        %v2788 = vadd.f32 %v2675, %v2787
        %v2789 = vpop.f32.mrb[0].mxu0
        %v2790 = vadd.f32 %v2677, %v2789
        %2791 = vmatprep.mubr.bf16.mxu0 %v965
        %2792 = vmatmul.mubr.bf16.gmra.mrb[0].mxu0 %v964
        %v2793 = vpop.f32.mrb[0].mxu0
        %v2794 = vadd.f32 %v2681, %v2793
        %v2795 = vpop.f32.mrb[0].mxu0
        %v2796 = vadd.f32 %v2683, %v2795
        %v2797 = vpop.f32.mrb[0].mxu0
        %v2798 = vadd.f32 %v2685, %v2797
        %v2799 = vpop.f32.mrb[0].mxu0
        %v2800 = vadd.f32 %v2687, %v2799
        %2801 = vmatprep.mubr.bf16.mxu0 %v972
        %2802 = vmatmul.mubr.bf16.gmra.mrb[0].mxu0 %v971
        %v2803 = vpop.f32.mrb[0].mxu0
        %v2804 = vadd.f32 %v2691, %v2803
        %v2805 = vpop.f32.mrb[0].mxu0
        %v2806 = vadd.f32 %v2693, %v2805
        %v2807 = vpop.f32.mrb[0].mxu0
        %v2808 = vadd.f32 %v2695, %v2807
        %v2809 = vpop.f32.mrb[0].mxu0
        %v2810 = vadd.f32 %v2697, %v2809
        %2811 = vmatprep.mubr.bf16.mxu0 %v979
        %2812 = vmatmul.mubr.bf16.gmra.mrb[0].mxu0 %v978
        %v2813 = vpop.f32.mrb[0].mxu0
        %v2814 = vadd.f32 %v2701, %v2813
        %v2815 = vpop.f32.mrb[0].mxu0
        %v2816 = vadd.f32 %v2703, %v2815
        %v2817 = vpop.f32.mrb[0].mxu0
        %v2818 = vadd.f32 %v2705, %v2817
        %v2819 = vpop.f32.mrb[0].mxu0
        %v2820 = vadd.f32 %v2707, %v2819
        %2821 = vmatprep.mubr.bf16.mxu0 %v986
        %2822 = vmatmul.mubr.bf16.gmra.mrb[0].mxu0 %v985
        %v2823 = vpop.f32.mrb[0].mxu0
        %v2824 = vadd.f32 %v2711, %v2823
        %v2825 = vpop.f32.mrb[0].mxu0
        %v2826 = vadd.f32 %v2713, %v2825
        %v2827 = vpop.f32.mrb[0].mxu0
        %v2828 = vadd.f32 %v2715, %v2827
        %v2829 = vpop.f32.mrb[0].mxu0
        %v2830 = vadd.f32 %v2717, %v2829
        %2831 = vdwg.mxu0
        %2832 = vmatprep.subr.bf16.mxu0 %v1819
        %2833 = vmatpush1.bf16.msra.mxu0 %v1818
        %2834 = vmatprep.subr.bf16.mxu0 0
        %2835 = vmatpush1.bf16.msra.mxu0 0
        %2836 = vmatprep.subr.bf16.mxu0 0
        %2837 = vmatpush1.bf16.msra.mxu0 0
        %2838 = vmatprep.subr.bf16.mxu0 0
        %2839 = vmatpush1.bf16.msra.mxu0 0
        %2840 = vmatprep.subr.bf16.mxu0 0
        %2841 = vmatpush1.bf16.msra.mxu0 0
        %2842 = vmatprep.subr.bf16.mxu0 0
        %2843 = vmatpush1.bf16.msra.mxu0 0
        %2844 = vmatprep.subr.bf16.mxu0 0
        %2845 = vmatpush1.bf16.msra.mxu0 0
        %2846 = vmatprep.subr.bf16.mxu0 0
        %2847 = vmatpush1.bf16.msra.mxu0 0
        %2848 = vmatprep.subr.bf16.mxu0 0
        %2849 = vmatpush1.bf16.msra.mxu0 0
        %2850 = vmatprep.subr.bf16.mxu0 0
        %2851 = vmatpush1.bf16.msra.mxu0 0
        %2852 = vmatprep.subr.bf16.mxu0 0
        %2853 = vmatpush1.bf16.msra.mxu0 0
        %2854 = vmatprep.subr.bf16.mxu0 0
        %2855 = vmatpush1.bf16.msra.mxu0 0
        %2856 = vmatprep.subr.bf16.mxu0 0
        %2857 = vmatpush1.bf16.msra.mxu0 0
        %2858 = vmatprep.subr.bf16.mxu0 0
        %2859 = vmatpush1.bf16.msra.mxu0 0
        %2860 = vmatprep.subr.bf16.mxu0 0
        %2861 = vmatpush1.bf16.msra.mxu0 0
        %2862 = vmatprep.subr.bf16.mxu0 0
        %2863 = vmatpush1.bf16.msra.mxu0 0
        %2864 = vmatprep.mubr.bf16.mxu0 0
        %2865 = vmatmul.mubr.bf16.gmra.mrb[0].mxu0 %v2018
        %v2866 = vpop.f32.mrb[0].mxu0
        %v2867 = vadd.f32 %v2754, %v2866
        %v2868 = vpop.f32.mrb[0].mxu0
        %v2869 = vadd.f32 %v2756, %v2868
        %v2870 = vpop.f32.mrb[0].mxu0
        %v2871 = vadd.f32 %v2758, %v2870
        %v2872 = vpop.f32.mrb[0].mxu0
        %v2873 = vadd.f32 %v2760, %v2872
        %2874 = vmatprep.mubr.bf16.mxu0 0
        %2875 = vmatmul.mubr.bf16.gmra.mrb[0].mxu0 %v2021
        %v2876 = vpop.f32.mrb[0].mxu0
        %v2877 = vadd.f32 %v2764, %v2876
        %v2878 = vpop.f32.mrb[0].mxu0
        %v2879 = vadd.f32 %v2766, %v2878
        %v2880 = vpop.f32.mrb[0].mxu0
        %v2881 = vadd.f32 %v2768, %v2880
        %v2882 = vpop.f32.mrb[0].mxu0
        %v2883 = vadd.f32 %v2770, %v2882
        %2884 = vmatprep.mubr.bf16.mxu0 0
        %2885 = vmatmul.mubr.bf16.gmra.mrb[0].mxu0 %v2024
        %v2886 = vpop.f32.mrb[0].mxu0
        %v2887 = vadd.f32 %v2774, %v2886
        %v2888 = vpop.f32.mrb[0].mxu0
        %v2889 = vadd.f32 %v2776, %v2888
        %v2890 = vpop.f32.mrb[0].mxu0
        %v2891 = vadd.f32 %v2778, %v2890
        %v2892 = vpop.f32.mrb[0].mxu0
        %v2893 = vadd.f32 %v2780, %v2892
        %2894 = vmatprep.mubr.bf16.mxu0 0
        %2895 = vmatmul.mubr.bf16.gmra.mrb[0].mxu0 %v2027
        %v2896 = vpop.f32.mrb[0].mxu0
        %v2897 = vadd.f32 %v2784, %v2896
        %v2898 = vpop.f32.mrb[0].mxu0
        %v2899 = vadd.f32 %v2786, %v2898
        %v2900 = vpop.f32.mrb[0].mxu0
        %v2901 = vadd.f32 %v2788, %v2900
        %v2902 = vpop.f32.mrb[0].mxu0
        %v2903 = vadd.f32 %v2790, %v2902
        %2904 = vmatprep.mubr.bf16.mxu0 0
        %2905 = vmatmul.mubr.bf16.gmra.mrb[0].mxu0 %v2030
        %v2906 = vpop.f32.mrb[0].mxu0
        %v2907 = vadd.f32 %v2794, %v2906
        %v2908 = vpop.f32.mrb[0].mxu0
        %v2909 = vadd.f32 %v2796, %v2908
        %v2910 = vpop.f32.mrb[0].mxu0
        %v2911 = vadd.f32 %v2798, %v2910
        %v2912 = vpop.f32.mrb[0].mxu0
        %v2913 = vadd.f32 %v2800, %v2912
        %2914 = vmatprep.mubr.bf16.mxu0 0
        %2915 = vmatmul.mubr.bf16.gmra.mrb[0].mxu0 %v2033
        %v2916 = vpop.f32.mrb[0].mxu0
        %v2917 = vadd.f32 %v2804, %v2916
        %v2918 = vpop.f32.mrb[0].mxu0
        %v2919 = vadd.f32 %v2806, %v2918
        %v2920 = vpop.f32.mrb[0].mxu0
        %v2921 = vadd.f32 %v2808, %v2920
        %v2922 = vpop.f32.mrb[0].mxu0
        %v2923 = vadd.f32 %v2810, %v2922
        %2924 = vmatprep.mubr.bf16.mxu0 0
        %2925 = vmatmul.mubr.bf16.gmra.mrb[0].mxu0 %v2036
        %v2926 = vpop.f32.mrb[0].mxu0
        %v2927 = vadd.f32 %v2814, %v2926
        %v2928 = vpop.f32.mrb[0].mxu0
        %v2929 = vadd.f32 %v2816, %v2928
        %v2930 = vpop.f32.mrb[0].mxu0
        %v2931 = vadd.f32 %v2818, %v2930
        %v2932 = vpop.f32.mrb[0].mxu0
        %v2933 = vadd.f32 %v2820, %v2932
        %2934 = vmatprep.mubr.bf16.mxu0 0
        %2935 = vmatmul.mubr.bf16.gmra.mrb[0].mxu0 %v2039
        %v2936 = vpop.f32.mrb[0].mxu0
        %v2937 = vadd.f32 %v2824, %v2936
        %v2938 = vpop.f32.mrb[0].mxu0
        %v2939 = vadd.f32 %v2826, %v2938
        %v2940 = vpop.f32.mrb[0].mxu0
        %v2941 = vadd.f32 %v2828, %v2940
        %v2942 = vpop.f32.mrb[0].mxu0
        %v2943 = vadd.f32 %v2830, %v2942
        %2944 = vdwg.mxu0
        %v2945 = vmax.f32 %v2415, 0.0
        %v2946 = vmax.f32 %v2417, 0.0
        %v2947 = vmax.f32 %v2867, 0.0
        %v2948 = vmax.f32 %v2869, 0.0
        %v2949 = vmax.f32 %v2419, 0.0
        %v2950 = vmax.f32 %v2421, 0.0
        %v2951 = vmax.f32 %v2871, 0.0
        %v2952 = vmax.f32 %v2873, 0.0
        %v2953 = vmax.f32 %v2425, 0.0
        %v2954 = vmax.f32 %v2427, 0.0
        %v2955 = vmax.f32 %v2877, 0.0
        %v2956 = vmax.f32 %v2879, 0.0
        %v2957 = vmax.f32 %v2429, 0.0
        %v2958 = vmax.f32 %v2431, 0.0
        %v2959 = vmax.f32 %v2881, 0.0
        %v2960 = vmax.f32 %v2883, 0.0
        %v2961 = vmax.f32 %v2435, 0.0
        %v2962 = vmax.f32 %v2437, 0.0
        %v2963 = vmax.f32 %v2887, 0.0
        %v2964 = vmax.f32 %v2889, 0.0
        %v2965 = vmax.f32 %v2439, 0.0
        %v2966 = vmax.f32 %v2441, 0.0
        %v2967 = vmax.f32 %v2891, 0.0
        %v2968 = vmax.f32 %v2893, 0.0
        %v2969 = vmax.f32 %v2445, 0.0
        %v2970 = vmax.f32 %v2447, 0.0
        %v2971 = vmax.f32 %v2897, 0.0
        %v2972 = vmax.f32 %v2899, 0.0
        %v2973 = vmax.f32 %v2449, 0.0
        %v2974 = vmax.f32 %v2451, 0.0
        %v2975 = vmax.f32 %v2901, 0.0
        %v2976 = vmax.f32 %v2903, 0.0
        %v2977 = vmax.f32 %v2455, 0.0
        %v2978 = vmax.f32 %v2457, 0.0
        %v2979 = vmax.f32 %v2907, 0.0
        %v2980 = vmax.f32 %v2909, 0.0
        %v2981 = vmax.f32 %v2459, 0.0
        %v2982 = vmax.f32 %v2461, 0.0
        %v2983 = vmax.f32 %v2911, 0.0
        %v2984 = vmax.f32 %v2913, 0.0
        %v2985 = vmax.f32 %v2465, 0.0
        %v2986 = vmax.f32 %v2467, 0.0
        %v2987 = vmax.f32 %v2917, 0.0
        %v2988 = vmax.f32 %v2919, 0.0
        %v2989 = vmax.f32 %v2469, 0.0
        %v2990 = vmax.f32 %v2471, 0.0
        %v2991 = vmax.f32 %v2921, 0.0
        %v2992 = vmax.f32 %v2923, 0.0
        %v2993 = vmax.f32 %v2475, 0.0
        %v2994 = vmax.f32 %v2477, 0.0
        %v2995 = vmax.f32 %v2927, 0.0
        %v2996 = vmax.f32 %v2929, 0.0
        %v2997 = vmax.f32 %v2479, 0.0
        %v2998 = vmax.f32 %v2481, 0.0
        %v2999 = vmax.f32 %v2931, 0.0
        %v3000 = vmax.f32 %v2933, 0.0
        %v3001 = vmax.f32 %v2485, 0.0
        %v3002 = vmax.f32 %v2487, 0.0
        %v3003 = vmax.f32 %v2937, 0.0
        %v3004 = vmax.f32 %v2939, 0.0
        %v3005 = vmax.f32 %v2489, 0.0
        %v3006 = vmax.f32 %v2491, 0.0
        %v3007 = vmax.f32 %v2941, 0.0
        %v3008 = vmax.f32 %v2943, 0.0
        %v3009 = vpack.c.bf16 %v2949, %v2945
        %v3010 = vpack.c.bf16 %v2950, %v2946
        %v3011 = vpack.c.bf16 %v2951, %v2947
        %v3012 = vpack.c.bf16 %v2952, %v2948
        %v3013 = vpack.c.bf16 %v2957, %v2953
        %v3014 = vpack.c.bf16 %v2958, %v2954
        %v3015 = vpack.c.bf16 %v2959, %v2955
        %v3016 = vpack.c.bf16 %v2960, %v2956
        %v3017 = vpack.c.bf16 %v2965, %v2961
        %v3018 = vpack.c.bf16 %v2966, %v2962
        %v3019 = vpack.c.bf16 %v2967, %v2963
        %v3020 = vpack.c.bf16 %v2968, %v2964
        %v3021 = vpack.c.bf16 %v2973, %v2969
        %v3022 = vpack.c.bf16 %v2974, %v2970
        %v3023 = vpack.c.bf16 %v2975, %v2971
        %v3024 = vpack.c.bf16 %v2976, %v2972
        %v3025 = vpack.c.bf16 %v2981, %v2977
        %v3026 = vpack.c.bf16 %v2982, %v2978
        %v3027 = vpack.c.bf16 %v2983, %v2979
        %v3028 = vpack.c.bf16 %v2984, %v2980
        %v3029 = vpack.c.bf16 %v2989, %v2985
        %v3030 = vpack.c.bf16 %v2990, %v2986
        %v3031 = vpack.c.bf16 %v2991, %v2987
        %v3032 = vpack.c.bf16 %v2992, %v2988
        %v3033 = vpack.c.bf16 %v2997, %v2993
        %v3034 = vpack.c.bf16 %v2998, %v2994
        %v3035 = vpack.c.bf16 %v2999, %v2995
        %v3036 = vpack.c.bf16 %v3000, %v2996
        %v3037 = vpack.c.bf16 %v3005, %v3001
        %v3038 = vpack.c.bf16 %v3006, %v3002
        %v3039 = vpack.c.bf16 %v3007, %v3003
        %v3040 = vpack.c.bf16 %v3008, %v3004
        %v3041 = vld [vmem:[#allocation5] sm:$0xff]
        %v3042 = vld [vmem:[#allocation5 + $0x8] sm:$0xff]
        %v3043 = vld [vmem:[#allocation5 + $0x10] sm:$0xff]
        %v3044 = vld [vmem:[#allocation5 + $0x18] sm:$0xff]
        %v3045 = vld [vmem:[#allocation5 + $0x20] sm:$0xff]
        %v3046 = vld [vmem:[#allocation5 + $0x28] sm:$0xff]
        %v3047 = vld [vmem:[#allocation5 + $0x30] sm:$0xff]
        %v3048 = vld [vmem:[#allocation5 + $0x38] sm:$0xff]
        %v3049 = vld [vmem:[#allocation5 + $0x40] sm:$0xff]
        %v3050 = vld [vmem:[#allocation5 + $0x48] sm:$0xff]
        %v3051 = vld [vmem:[#allocation5 + $0x50] sm:$0xff]
        %v3052 = vld [vmem:[#allocation5 + $0x58] sm:$0xff]
        %v3053 = vld [vmem:[#allocation5 + $0x60] sm:$0xff]
        %v3054 = vld [vmem:[#allocation5 + $0x68] sm:$0xff]
        %v3055 = vld [vmem:[#allocation5 + $0x70] sm:$0xff]
        %v3056 = vld [vmem:[#allocation5 + $0x78] sm:$0xff]
        %v3057 = vld [vmem:[#allocation5 + $0x80] sm:$0xff]
        %v3058 = vld [vmem:[#allocation5 + $0x88] sm:$0xff]
        %v3059 = vld [vmem:[#allocation5 + $0x90] sm:$0xff]
        %v3060 = vld [vmem:[#allocation5 + $0x98] sm:$0xff]
        %v3061 = vld [vmem:[#allocation5 + $0xa0] sm:$0xff]
        %v3062 = vld [vmem:[#allocation5 + $0xa8] sm:$0xff]
        %v3063 = vld [vmem:[#allocation5 + $0xb0] sm:$0xff]
        %v3064 = vld [vmem:[#allocation5 + $0xb8] sm:$0xff]
        %v3065 = vld [vmem:[#allocation5 + $0xc0] sm:$0xff]
        %v3066 = vld [vmem:[#allocation5 + $0xc8] sm:$0xff]
        %v3067 = vld [vmem:[#allocation5 + $0xd0] sm:$0xff]
        %v3068 = vld [vmem:[#allocation5 + $0xd8] sm:$0xff]
        %v3069 = vld [vmem:[#allocation5 + $0xe0] sm:$0xff]
        %v3070 = vld [vmem:[#allocation5 + $0xe8] sm:$0xff]
        %v3071 = vld [vmem:[#allocation5 + $0xf0] sm:$0xff]
        %v3072 = vld [vmem:[#allocation5 + $0xf8] sm:$0xff]
        %v3073 = vld [vmem:[#allocation5 + $0x100] sm:$0xff]
        %v3074 = vld [vmem:[#allocation5 + $0x108] sm:$0xff]
        %v3075 = vld [vmem:[#allocation5 + $0x110] sm:$0xff]
        %v3076 = vld [vmem:[#allocation5 + $0x118] sm:$0xff]
        %v3077 = vld [vmem:[#allocation5 + $0x120] sm:$0xff]
        %v3078 = vld [vmem:[#allocation5 + $0x128] sm:$0xff]
        %v3079 = vld [vmem:[#allocation5 + $0x130] sm:$0xff]
        %v3080 = vld [vmem:[#allocation5 + $0x138] sm:$0xff]
        %v3081 = vld [vmem:[#allocation5 + $0x140] sm:$0xff]
        %v3082 = vld [vmem:[#allocation5 + $0x148] sm:$0xff]
        %v3083 = vld [vmem:[#allocation5 + $0x150] sm:$0xff]
        %v3084 = vld [vmem:[#allocation5 + $0x158] sm:$0xff]
        %v3085 = vld [vmem:[#allocation5 + $0x160] sm:$0xff]
        %v3086 = vld [vmem:[#allocation5 + $0x168] sm:$0xff]
        %v3087 = vld [vmem:[#allocation5 + $0x170] sm:$0xff]
        %v3088 = vld [vmem:[#allocation5 + $0x178] sm:$0xff]
        %v3089 = vld [vmem:[#allocation5 + $0x180] sm:$0xff]
        %v3090 = vld [vmem:[#allocation5 + $0x188] sm:$0xff]
        %v3091 = vld [vmem:[#allocation5 + $0x190] sm:$0xff]
        %v3092 = vld [vmem:[#allocation5 + $0x198] sm:$0xff]
        %v3093 = vld [vmem:[#allocation5 + $0x1a0] sm:$0xff]
        %v3094 = vld [vmem:[#allocation5 + $0x1a8] sm:$0xff]
        %v3095 = vld [vmem:[#allocation5 + $0x1b0] sm:$0xff]
        %v3096 = vld [vmem:[#allocation5 + $0x1b8] sm:$0xff]
        %v3097 = vld [vmem:[#allocation5 + $0x1c0] sm:$0xff]
        %v3098 = vld [vmem:[#allocation5 + $0x1c8] sm:$0xff]
        %v3099 = vld [vmem:[#allocation5 + $0x1d0] sm:$0xff]
        %v3100 = vld [vmem:[#allocation5 + $0x1d8] sm:$0xff]
        %v3101 = vld [vmem:[#allocation5 + $0x1e0] sm:$0xff]
        %v3102 = vld [vmem:[#allocation5 + $0x1e8] sm:$0xff]
        %v3103 = vld [vmem:[#allocation5 + $0x1f0] sm:$0xff]
        %v3104 = vld [vmem:[#allocation5 + $0x1f8] sm:$0xff]
        %v3105 = vld [vmem:[%s4] sm:$0x3]
        %v3107 = vlaneseq
        %v3108 = vshrl.u32 %v3107, 7
        %v3109 = vsub.s32 0, %v3108
        %v3110 = vrot.slane %v3105, %v3109
        %v3111 = vlaneseq
        %v3112 = vshrl.u32 %v3111, 7
        %v3113 = vsub.s32 1, %v3112
        %v3114 = vrot.slane %v3105, %v3113
        %v3181 = vunpack.c.l.b16 %v3041
        %v3182 = vunpack.c.h.b16 %v3041
        %v3183 = vunpack.c.l.b16 %v3042
        %v3184 = vunpack.c.h.b16 %v3042
        %v3185 = vunpack.c.l.b16 %v3043
        %v3186 = vunpack.c.h.b16 %v3043
        %v3187 = vunpack.c.l.b16 %v3044
        %v3188 = vunpack.c.h.b16 %v3044
        %v3189 = vunpack.c.l.b16 %v3045
        %v3190 = vunpack.c.h.b16 %v3045
        %v3191 = vunpack.c.l.b16 %v3046
        %v3192 = vunpack.c.h.b16 %v3046
        %v3193 = vunpack.c.l.b16 %v3047
        %v3194 = vunpack.c.h.b16 %v3047
        %v3195 = vunpack.c.l.b16 %v3048
        %v3196 = vunpack.c.h.b16 %v3048
        %v3197 = vunpack.c.l.b16 %v3049
        %v3198 = vunpack.c.h.b16 %v3049
        %v3199 = vunpack.c.l.b16 %v3050
        %v3200 = vunpack.c.h.b16 %v3050
        %v3201 = vunpack.c.l.b16 %v3051
        %v3202 = vunpack.c.h.b16 %v3051
        %v3203 = vunpack.c.l.b16 %v3052
        %v3204 = vunpack.c.h.b16 %v3052
        %v3205 = vunpack.c.l.b16 %v3053
        %v3206 = vunpack.c.h.b16 %v3053
        %v3207 = vunpack.c.l.b16 %v3054
        %v3208 = vunpack.c.h.b16 %v3054
        %v3209 = vunpack.c.l.b16 %v3055
        %v3210 = vunpack.c.h.b16 %v3055
        %v3211 = vunpack.c.l.b16 %v3056
        %v3212 = vunpack.c.h.b16 %v3056
        %v3213 = vunpack.c.l.b16 %v3057
        %v3214 = vunpack.c.h.b16 %v3057
        %v3215 = vunpack.c.l.b16 %v3058
        %v3216 = vunpack.c.h.b16 %v3058
        %v3217 = vunpack.c.l.b16 %v3059
        %v3218 = vunpack.c.h.b16 %v3059
        %v3219 = vunpack.c.l.b16 %v3060
        %v3220 = vunpack.c.h.b16 %v3060
        %v3221 = vunpack.c.l.b16 %v3061
        %v3222 = vunpack.c.h.b16 %v3061
        %v3223 = vunpack.c.l.b16 %v3062
        %v3224 = vunpack.c.h.b16 %v3062
        %v3225 = vunpack.c.l.b16 %v3063
        %v3226 = vunpack.c.h.b16 %v3063
        %v3227 = vunpack.c.l.b16 %v3064
        %v3228 = vunpack.c.h.b16 %v3064
        %v3229 = vunpack.c.l.b16 %v3065
        %v3230 = vunpack.c.h.b16 %v3065
        %v3231 = vunpack.c.l.b16 %v3066
        %v3232 = vunpack.c.h.b16 %v3066
        %v3233 = vunpack.c.l.b16 %v3067
        %v3234 = vunpack.c.h.b16 %v3067
        %v3235 = vunpack.c.l.b16 %v3068
        %v3236 = vunpack.c.h.b16 %v3068
        %v3237 = vunpack.c.l.b16 %v3069
        %v3238 = vunpack.c.h.b16 %v3069
        %v3239 = vunpack.c.l.b16 %v3070
        %v3240 = vunpack.c.h.b16 %v3070
        %v3241 = vunpack.c.l.b16 %v3071
        %v3242 = vunpack.c.h.b16 %v3071
        %v3243 = vunpack.c.l.b16 %v3072
        %v3244 = vunpack.c.h.b16 %v3072
        %v3245 = vunpack.c.l.b16 %v3073
        %v3246 = vunpack.c.h.b16 %v3073
        %v3247 = vunpack.c.l.b16 %v3074
        %v3248 = vunpack.c.h.b16 %v3074
        %v3249 = vunpack.c.l.b16 %v3075
        %v3250 = vunpack.c.h.b16 %v3075
        %v3251 = vunpack.c.l.b16 %v3076
        %v3252 = vunpack.c.h.b16 %v3076
        %v3253 = vunpack.c.l.b16 %v3077
        %v3254 = vunpack.c.h.b16 %v3077
        %v3255 = vunpack.c.l.b16 %v3078
        %v3256 = vunpack.c.h.b16 %v3078
        %v3257 = vunpack.c.l.b16 %v3079
        %v3258 = vunpack.c.h.b16 %v3079
        %v3259 = vunpack.c.l.b16 %v3080
        %v3260 = vunpack.c.h.b16 %v3080
        %v3261 = vunpack.c.l.b16 %v3081
        %v3262 = vunpack.c.h.b16 %v3081
        %v3263 = vunpack.c.l.b16 %v3082
        %v3264 = vunpack.c.h.b16 %v3082
        %v3265 = vunpack.c.l.b16 %v3083
        %v3266 = vunpack.c.h.b16 %v3083
        %v3267 = vunpack.c.l.b16 %v3084
        %v3268 = vunpack.c.h.b16 %v3084
        %v3269 = vunpack.c.l.b16 %v3085
        %v3270 = vunpack.c.h.b16 %v3085
        %v3271 = vunpack.c.l.b16 %v3086
        %v3272 = vunpack.c.h.b16 %v3086
        %v3273 = vunpack.c.l.b16 %v3087
        %v3274 = vunpack.c.h.b16 %v3087
        %v3275 = vunpack.c.l.b16 %v3088
        %v3276 = vunpack.c.h.b16 %v3088
        %v3277 = vunpack.c.l.b16 %v3089
        %v3278 = vunpack.c.h.b16 %v3089
        %v3279 = vunpack.c.l.b16 %v3090
        %v3280 = vunpack.c.h.b16 %v3090
        %v3281 = vunpack.c.l.b16 %v3091
        %v3282 = vunpack.c.h.b16 %v3091
        %v3283 = vunpack.c.l.b16 %v3092
        %v3284 = vunpack.c.h.b16 %v3092
        %v3285 = vunpack.c.l.b16 %v3093
        %v3286 = vunpack.c.h.b16 %v3093
        %v3287 = vunpack.c.l.b16 %v3094
        %v3288 = vunpack.c.h.b16 %v3094
        %v3289 = vunpack.c.l.b16 %v3095
        %v3290 = vunpack.c.h.b16 %v3095
        %v3291 = vunpack.c.l.b16 %v3096
        %v3292 = vunpack.c.h.b16 %v3096
        %v3293 = vunpack.c.l.b16 %v3097
        %v3294 = vunpack.c.h.b16 %v3097
        %v3295 = vunpack.c.l.b16 %v3098
        %v3296 = vunpack.c.h.b16 %v3098
        %v3297 = vunpack.c.l.b16 %v3099
        %v3298 = vunpack.c.h.b16 %v3099
        %v3299 = vunpack.c.l.b16 %v3100
        %v3300 = vunpack.c.h.b16 %v3100
        %v3301 = vunpack.c.l.b16 %v3101
        %v3302 = vunpack.c.h.b16 %v3101
        %v3303 = vunpack.c.l.b16 %v3102
        %v3304 = vunpack.c.h.b16 %v3102
        %v3305 = vunpack.c.l.b16 %v3103
        %v3306 = vunpack.c.h.b16 %v3103
        %v3307 = vunpack.c.l.b16 %v3104
        %v3308 = vunpack.c.h.b16 %v3104
        %v3309 = vpack.c.b16 %v3183, %v3181
        %v3310 = vpack.c.b16 %v3184, %v3182
        %v3311 = vpack.c.b16 %v3187, %v3185
        %v3312 = vpack.c.b16 %v3188, %v3186
        %v3313 = vpack.c.b16 %v3191, %v3189
        %v3314 = vpack.c.b16 %v3192, %v3190
        %v3315 = vpack.c.b16 %v3195, %v3193
        %v3316 = vpack.c.b16 %v3196, %v3194
        %v3317 = vpack.c.b16 %v3199, %v3197
        %v3318 = vpack.c.b16 %v3200, %v3198
        %v3319 = vpack.c.b16 %v3203, %v3201
        %v3320 = vpack.c.b16 %v3204, %v3202
        %v3321 = vpack.c.b16 %v3207, %v3205
        %v3322 = vpack.c.b16 %v3208, %v3206
        %v3323 = vpack.c.b16 %v3211, %v3209
        %v3324 = vpack.c.b16 %v3212, %v3210
        %v3325 = vpack.c.b16 %v3215, %v3213
        %v3326 = vpack.c.b16 %v3216, %v3214
        %v3327 = vpack.c.b16 %v3219, %v3217
        %v3328 = vpack.c.b16 %v3220, %v3218
        %v3329 = vpack.c.b16 %v3223, %v3221
        %v3330 = vpack.c.b16 %v3224, %v3222
        %v3331 = vpack.c.b16 %v3227, %v3225
        %v3332 = vpack.c.b16 %v3228, %v3226
        %v3333 = vpack.c.b16 %v3231, %v3229
        %v3334 = vpack.c.b16 %v3232, %v3230
        %v3335 = vpack.c.b16 %v3235, %v3233
        %v3336 = vpack.c.b16 %v3236, %v3234
        %v3337 = vpack.c.b16 %v3239, %v3237
        %v3338 = vpack.c.b16 %v3240, %v3238
        %v3339 = vpack.c.b16 %v3243, %v3241
        %v3340 = vpack.c.b16 %v3244, %v3242
        %v3341 = vpack.c.b16 %v3247, %v3245
        %v3342 = vpack.c.b16 %v3248, %v3246
        %v3343 = vpack.c.b16 %v3251, %v3249
        %v3344 = vpack.c.b16 %v3252, %v3250
        %v3345 = vpack.c.b16 %v3255, %v3253
        %v3346 = vpack.c.b16 %v3256, %v3254
        %v3347 = vpack.c.b16 %v3259, %v3257
        %v3348 = vpack.c.b16 %v3260, %v3258
        %v3349 = vpack.c.b16 %v3263, %v3261
        %v3350 = vpack.c.b16 %v3264, %v3262
        %v3351 = vpack.c.b16 %v3267, %v3265
        %v3352 = vpack.c.b16 %v3268, %v3266
        %v3353 = vpack.c.b16 %v3271, %v3269
        %v3354 = vpack.c.b16 %v3272, %v3270
        %v3355 = vpack.c.b16 %v3275, %v3273
        %v3356 = vpack.c.b16 %v3276, %v3274
        %v3357 = vpack.c.b16 %v3279, %v3277
        %v3358 = vpack.c.b16 %v3280, %v3278
        %v3359 = vpack.c.b16 %v3283, %v3281
        %v3360 = vpack.c.b16 %v3284, %v3282
        %v3361 = vpack.c.b16 %v3287, %v3285
        %v3362 = vpack.c.b16 %v3288, %v3286
        %v3363 = vpack.c.b16 %v3291, %v3289
        %v3364 = vpack.c.b16 %v3292, %v3290
        %v3365 = vpack.c.b16 %v3295, %v3293
        %v3366 = vpack.c.b16 %v3296, %v3294
        %v3367 = vpack.c.b16 %v3299, %v3297
        %v3368 = vpack.c.b16 %v3300, %v3298
        %v3369 = vpack.c.b16 %v3303, %v3301
        %v3370 = vpack.c.b16 %v3304, %v3302
        %v3371 = vpack.c.b16 %v3307, %v3305
        %v3372 = vpack.c.b16 %v3308, %v3306
        %3437 = vmatprep.subr.bf16.mxu0 %v3310
        %3438 = vmatpush1.bf16.msra.mxu0 %v3309
        %3439 = vmatprep.subr.bf16.mxu0 %v3312
        %3440 = vmatpush1.bf16.msra.mxu0 %v3311
        %3441 = vmatprep.subr.bf16.mxu0 %v3314
        %3442 = vmatpush1.bf16.msra.mxu0 %v3313
        %3443 = vmatprep.subr.bf16.mxu0 %v3316
        %3444 = vmatpush1.bf16.msra.mxu0 %v3315
        %3445 = vmatprep.subr.bf16.mxu0 %v3318
        %3446 = vmatpush1.bf16.msra.mxu0 %v3317
        %3447 = vmatprep.subr.bf16.mxu0 %v3320
        %3448 = vmatpush1.bf16.msra.mxu0 %v3319
        %3449 = vmatprep.subr.bf16.mxu0 %v3322
        %3450 = vmatpush1.bf16.msra.mxu0 %v3321
        %3451 = vmatprep.subr.bf16.mxu0 %v3324
        %3452 = vmatpush1.bf16.msra.mxu0 %v3323
        %3453 = vmatprep.subr.bf16.mxu0 %v3326
        %3454 = vmatpush1.bf16.msra.mxu0 %v3325
        %3455 = vmatprep.subr.bf16.mxu0 %v3328
        %3456 = vmatpush1.bf16.msra.mxu0 %v3327
        %3457 = vmatprep.subr.bf16.mxu0 %v3330
        %3458 = vmatpush1.bf16.msra.mxu0 %v3329
        %3459 = vmatprep.subr.bf16.mxu0 %v3332
        %3460 = vmatpush1.bf16.msra.mxu0 %v3331
        %3461 = vmatprep.subr.bf16.mxu0 %v3334
        %3462 = vmatpush1.bf16.msra.mxu0 %v3333
        %3463 = vmatprep.subr.bf16.mxu0 %v3336
        %3464 = vmatpush1.bf16.msra.mxu0 %v3335
        %3465 = vmatprep.subr.bf16.mxu0 %v3338
        %3466 = vmatpush1.bf16.msra.mxu0 %v3337
        %3467 = vmatprep.subr.bf16.mxu0 %v3340
        %3468 = vmatpush1.bf16.msra.mxu0 %v3339
        %3469 = vmatprep.mubr.bf16.mxu0 %v3010
        %3470 = vmatmul.mubr.bf16.gmra.mrb[0].mxu0 %v3009
        %v3471 = vpop.f32.mrb[0].mxu0
        %v3472 = vadd.f32 %v3110, %v3471
        %v3473 = vpop.f32.mrb[0].mxu0
        %v3474 = vadd.f32 %v3114, %v3473
        %v3475 = vpop.f32.mrb[0].mxu0
        %v3476 = vadd.f32 %v3110, %v3475
        %v3477 = vpop.f32.mrb[0].mxu0
        %v3478 = vadd.f32 %v3114, %v3477
        %3479 = vmatprep.mubr.bf16.mxu0 %v3014
        %3480 = vmatmul.mubr.bf16.gmra.mrb[0].mxu0 %v3013
        %v3481 = vpop.f32.mrb[0].mxu0
        %v3482 = vadd.f32 %v3110, %v3481
        %v3483 = vpop.f32.mrb[0].mxu0
        %v3484 = vadd.f32 %v3114, %v3483
        %v3485 = vpop.f32.mrb[0].mxu0
        %v3486 = vadd.f32 %v3110, %v3485
        %v3487 = vpop.f32.mrb[0].mxu0
        %v3488 = vadd.f32 %v3114, %v3487
        %3489 = vmatprep.mubr.bf16.mxu0 %v3018
        %3490 = vmatmul.mubr.bf16.gmra.mrb[0].mxu0 %v3017
        %v3491 = vpop.f32.mrb[0].mxu0
        %v3492 = vadd.f32 %v3110, %v3491
        %v3493 = vpop.f32.mrb[0].mxu0
        %v3494 = vadd.f32 %v3114, %v3493
        %v3495 = vpop.f32.mrb[0].mxu0
        %v3496 = vadd.f32 %v3110, %v3495
        %v3497 = vpop.f32.mrb[0].mxu0
        %v3498 = vadd.f32 %v3114, %v3497
        %3499 = vmatprep.mubr.bf16.mxu0 %v3022
        %3500 = vmatmul.mubr.bf16.gmra.mrb[0].mxu0 %v3021
        %v3501 = vpop.f32.mrb[0].mxu0
        %v3502 = vadd.f32 %v3110, %v3501
        %v3503 = vpop.f32.mrb[0].mxu0
        %v3504 = vadd.f32 %v3114, %v3503
        %v3505 = vpop.f32.mrb[0].mxu0
        %v3506 = vadd.f32 %v3110, %v3505
        %v3507 = vpop.f32.mrb[0].mxu0
        %v3508 = vadd.f32 %v3114, %v3507
        %3509 = vmatprep.mubr.bf16.mxu0 %v3026
        %3510 = vmatmul.mubr.bf16.gmra.mrb[0].mxu0 %v3025
        %v3511 = vpop.f32.mrb[0].mxu0
        %v3512 = vadd.f32 %v3110, %v3511
        %v3513 = vpop.f32.mrb[0].mxu0
        %v3514 = vadd.f32 %v3114, %v3513
        %v3515 = vpop.f32.mrb[0].mxu0
        %v3516 = vadd.f32 %v3110, %v3515
        %v3517 = vpop.f32.mrb[0].mxu0
        %v3518 = vadd.f32 %v3114, %v3517
        %3519 = vmatprep.mubr.bf16.mxu0 %v3030
        %3520 = vmatmul.mubr.bf16.gmra.mrb[0].mxu0 %v3029
        %v3521 = vpop.f32.mrb[0].mxu0
        %v3522 = vadd.f32 %v3110, %v3521
        %v3523 = vpop.f32.mrb[0].mxu0
        %v3524 = vadd.f32 %v3114, %v3523
        %v3525 = vpop.f32.mrb[0].mxu0
        %v3526 = vadd.f32 %v3110, %v3525
        %v3527 = vpop.f32.mrb[0].mxu0
        %v3528 = vadd.f32 %v3114, %v3527
        %3529 = vmatprep.mubr.bf16.mxu0 %v3034
        %3530 = vmatmul.mubr.bf16.gmra.mrb[0].mxu0 %v3033
        %v3531 = vpop.f32.mrb[0].mxu0
        %v3532 = vadd.f32 %v3110, %v3531
        %v3533 = vpop.f32.mrb[0].mxu0
        %v3534 = vadd.f32 %v3114, %v3533
        %v3535 = vpop.f32.mrb[0].mxu0
        %v3536 = vadd.f32 %v3110, %v3535
        %v3537 = vpop.f32.mrb[0].mxu0
        %v3538 = vadd.f32 %v3114, %v3537
        %3539 = vmatprep.mubr.bf16.mxu0 %v3038
        %3540 = vmatmul.mubr.bf16.gmra.mrb[0].mxu0 %v3037
        %v3541 = vpop.f32.mrb[0].mxu0
        %v3542 = vadd.f32 %v3110, %v3541
        %v3543 = vpop.f32.mrb[0].mxu0
        %v3544 = vadd.f32 %v3114, %v3543
        %v3545 = vpop.f32.mrb[0].mxu0
        %v3546 = vadd.f32 %v3110, %v3545
        %v3547 = vpop.f32.mrb[0].mxu0
        %v3548 = vadd.f32 %v3114, %v3547
        %3549 = vdwg.mxu0
        %3550 = vmatprep.subr.bf16.mxu0 %v3342
        %3551 = vmatpush1.bf16.msra.mxu0 %v3341
        %3552 = vmatprep.subr.bf16.mxu0 %v3344
        %3553 = vmatpush1.bf16.msra.mxu0 %v3343
        %3554 = vmatprep.subr.bf16.mxu0 %v3346
        %3555 = vmatpush1.bf16.msra.mxu0 %v3345
        %3556 = vmatprep.subr.bf16.mxu0 %v3348
        %3557 = vmatpush1.bf16.msra.mxu0 %v3347
        %3558 = vmatprep.subr.bf16.mxu0 %v3350
        %3559 = vmatpush1.bf16.msra.mxu0 %v3349
        %3560 = vmatprep.subr.bf16.mxu0 %v3352
        %3561 = vmatpush1.bf16.msra.mxu0 %v3351
        %3562 = vmatprep.subr.bf16.mxu0 %v3354
        %3563 = vmatpush1.bf16.msra.mxu0 %v3353
        %3564 = vmatprep.subr.bf16.mxu0 %v3356
        %3565 = vmatpush1.bf16.msra.mxu0 %v3355
        %3566 = vmatprep.subr.bf16.mxu0 %v3358
        %3567 = vmatpush1.bf16.msra.mxu0 %v3357
        %3568 = vmatprep.subr.bf16.mxu0 %v3360
        %3569 = vmatpush1.bf16.msra.mxu0 %v3359
        %3570 = vmatprep.subr.bf16.mxu0 %v3362
        %3571 = vmatpush1.bf16.msra.mxu0 %v3361
        %3572 = vmatprep.subr.bf16.mxu0 %v3364
        %3573 = vmatpush1.bf16.msra.mxu0 %v3363
        %3574 = vmatprep.subr.bf16.mxu0 %v3366
        %3575 = vmatpush1.bf16.msra.mxu0 %v3365
        %3576 = vmatprep.subr.bf16.mxu0 %v3368
        %3577 = vmatpush1.bf16.msra.mxu0 %v3367
        %3578 = vmatprep.subr.bf16.mxu0 %v3370
        %3579 = vmatpush1.bf16.msra.mxu0 %v3369
        %3580 = vmatprep.subr.bf16.mxu0 %v3372
        %3581 = vmatpush1.bf16.msra.mxu0 %v3371
        %3582 = vmatprep.mubr.bf16.mxu0 %v3012
        %3583 = vmatmul.mubr.bf16.gmra.mrb[0].mxu0 %v3011
        %v3584 = vpop.f32.mrb[0].mxu0
        %v3585 = vadd.f32 %v3472, %v3584
        %v3586 = vpop.f32.mrb[0].mxu0
        %v3587 = vadd.f32 %v3474, %v3586
        %v3588 = vpop.f32.mrb[0].mxu0
        %v3589 = vadd.f32 %v3476, %v3588
        %v3590 = vpop.f32.mrb[0].mxu0
        %v3591 = vadd.f32 %v3478, %v3590
        %3592 = vmatprep.mubr.bf16.mxu0 %v3016
        %3593 = vmatmul.mubr.bf16.gmra.mrb[0].mxu0 %v3015
        %v3594 = vpop.f32.mrb[0].mxu0
        %v3595 = vadd.f32 %v3482, %v3594
        %v3596 = vpop.f32.mrb[0].mxu0
        %v3597 = vadd.f32 %v3484, %v3596
        %v3598 = vpop.f32.mrb[0].mxu0
        %v3599 = vadd.f32 %v3486, %v3598
        %v3600 = vpop.f32.mrb[0].mxu0
        %v3601 = vadd.f32 %v3488, %v3600
        %3602 = vmatprep.mubr.bf16.mxu0 %v3020
        %3603 = vmatmul.mubr.bf16.gmra.mrb[0].mxu0 %v3019
        %v3604 = vpop.f32.mrb[0].mxu0
        %v3605 = vadd.f32 %v3492, %v3604
        %v3606 = vpop.f32.mrb[0].mxu0
        %v3607 = vadd.f32 %v3494, %v3606
        %v3608 = vpop.f32.mrb[0].mxu0
        %v3609 = vadd.f32 %v3496, %v3608
        %v3610 = vpop.f32.mrb[0].mxu0
        %v3611 = vadd.f32 %v3498, %v3610
        %3612 = vmatprep.mubr.bf16.mxu0 %v3024
        %3613 = vmatmul.mubr.bf16.gmra.mrb[0].mxu0 %v3023
        %v3614 = vpop.f32.mrb[0].mxu0
        %v3615 = vadd.f32 %v3502, %v3614
        %v3616 = vpop.f32.mrb[0].mxu0
        %v3617 = vadd.f32 %v3504, %v3616
        %v3618 = vpop.f32.mrb[0].mxu0
        %v3619 = vadd.f32 %v3506, %v3618
        %v3620 = vpop.f32.mrb[0].mxu0
        %v3621 = vadd.f32 %v3508, %v3620
        %3622 = vmatprep.mubr.bf16.mxu0 %v3028
        %3623 = vmatmul.mubr.bf16.gmra.mrb[0].mxu0 %v3027
        %v3624 = vpop.f32.mrb[0].mxu0
        %v3625 = vadd.f32 %v3512, %v3624
        %v3626 = vpop.f32.mrb[0].mxu0
        %v3627 = vadd.f32 %v3514, %v3626
        %v3628 = vpop.f32.mrb[0].mxu0
        %v3629 = vadd.f32 %v3516, %v3628
        %v3630 = vpop.f32.mrb[0].mxu0
        %v3631 = vadd.f32 %v3518, %v3630
        %3632 = vmatprep.mubr.bf16.mxu0 %v3032
        %3633 = vmatmul.mubr.bf16.gmra.mrb[0].mxu0 %v3031
        %v3634 = vpop.f32.mrb[0].mxu0
        %v3635 = vadd.f32 %v3522, %v3634
        %v3636 = vpop.f32.mrb[0].mxu0
        %v3637 = vadd.f32 %v3524, %v3636
        %v3638 = vpop.f32.mrb[0].mxu0
        %v3639 = vadd.f32 %v3526, %v3638
        %v3640 = vpop.f32.mrb[0].mxu0
        %v3641 = vadd.f32 %v3528, %v3640
        %3642 = vmatprep.mubr.bf16.mxu0 %v3036
        %3643 = vmatmul.mubr.bf16.gmra.mrb[0].mxu0 %v3035
        %v3644 = vpop.f32.mrb[0].mxu0
        %v3645 = vadd.f32 %v3532, %v3644
        %v3646 = vpop.f32.mrb[0].mxu0
        %v3647 = vadd.f32 %v3534, %v3646
        %v3648 = vpop.f32.mrb[0].mxu0
        %v3649 = vadd.f32 %v3536, %v3648
        %v3650 = vpop.f32.mrb[0].mxu0
        %v3651 = vadd.f32 %v3538, %v3650
        %3652 = vmatprep.mubr.bf16.mxu0 %v3040
        %3653 = vmatmul.mubr.bf16.gmra.mrb[0].mxu0 %v3039
        %v3654 = vpop.f32.mrb[0].mxu0
        %v3655 = vadd.f32 %v3542, %v3654
        %v3656 = vpop.f32.mrb[0].mxu0
        %v3657 = vadd.f32 %v3544, %v3656
        %v3658 = vpop.f32.mrb[0].mxu0
        %v3659 = vadd.f32 %v3546, %v3658
        %v3660 = vpop.f32.mrb[0].mxu0
        %v3661 = vadd.f32 %v3548, %v3660
        %3662 = vdwg.mxu0
        %v3663 = vmax.f32 %v3585, 0.0
        %v3664 = vmax.f32 %v3587, 0.0
        %v3665 = vmax.f32 %v3589, 0.0
        %v3666 = vmax.f32 %v3591, 0.0
        %v3667 = vmax.f32 %v3595, 0.0
        %v3668 = vmax.f32 %v3597, 0.0
        %v3669 = vmax.f32 %v3599, 0.0
        %v3670 = vmax.f32 %v3601, 0.0
        %v3671 = vmax.f32 %v3605, 0.0
        %v3672 = vmax.f32 %v3607, 0.0
        %v3673 = vmax.f32 %v3609, 0.0
        %v3674 = vmax.f32 %v3611, 0.0
        %v3675 = vmax.f32 %v3615, 0.0
        %v3676 = vmax.f32 %v3617, 0.0
        %v3677 = vmax.f32 %v3619, 0.0
        %v3678 = vmax.f32 %v3621, 0.0
        %v3679 = vmax.f32 %v3625, 0.0
        %v3680 = vmax.f32 %v3627, 0.0
        %v3681 = vmax.f32 %v3629, 0.0
        %v3682 = vmax.f32 %v3631, 0.0
        %v3683 = vmax.f32 %v3635, 0.0
        %v3684 = vmax.f32 %v3637, 0.0
        %v3685 = vmax.f32 %v3639, 0.0
        %v3686 = vmax.f32 %v3641, 0.0
        %v3687 = vmax.f32 %v3645, 0.0
        %v3688 = vmax.f32 %v3647, 0.0
        %v3689 = vmax.f32 %v3649, 0.0
        %v3690 = vmax.f32 %v3651, 0.0
        %v3691 = vmax.f32 %v3655, 0.0
        %v3692 = vmax.f32 %v3657, 0.0
        %v3693 = vmax.f32 %v3659, 0.0
        %v3694 = vmax.f32 %v3661, 0.0
        %v3695 = vpack.c.bf16 %v3665, %v3663
        %v3696 = vpack.c.bf16 %v3666, %v3664
        %v3697 = vpack.c.bf16 %v3669, %v3667
        %v3698 = vpack.c.bf16 %v3670, %v3668
        %v3699 = vpack.c.bf16 %v3673, %v3671
        %v3700 = vpack.c.bf16 %v3674, %v3672
        %v3701 = vpack.c.bf16 %v3677, %v3675
        %v3702 = vpack.c.bf16 %v3678, %v3676
        %v3703 = vpack.c.bf16 %v3681, %v3679
        %v3704 = vpack.c.bf16 %v3682, %v3680
        %v3705 = vpack.c.bf16 %v3685, %v3683
        %v3706 = vpack.c.bf16 %v3686, %v3684
        %v3707 = vpack.c.bf16 %v3689, %v3687
        %v3708 = vpack.c.bf16 %v3690, %v3688
        %v3709 = vpack.c.bf16 %v3693, %v3691
        %v3710 = vpack.c.bf16 %v3694, %v3692
        %v3711 = vld [vmem:[%s5] sm:$0xf]
        %v3712 = vld [vmem:[%s5 + $0x4] sm:$0xf]
        %v3713 = vld [vmem:[%s5 + $0x8] sm:$0xf]
        %v3714 = vld [vmem:[%s5 + $0xc] sm:$0xf]
        %v3715 = vld [vmem:[%s5 + $0x10] sm:$0xf]
        %v3716 = vld [vmem:[%s5 + $0x14] sm:$0xf]
        %v3717 = vld [vmem:[%s5 + $0x18] sm:$0xf]
        %v3718 = vld [vmem:[%s5 + $0x1c] sm:$0xf]
        %v3719 = vld [vmem:[%s5 + $0x20] sm:$0xf]
        %v3720 = vld [vmem:[%s5 + $0x24] sm:$0xf]
        %v3721 = vld [vmem:[%s5 + $0x28] sm:$0xf]
        %v3722 = vld [vmem:[%s5 + $0x2c] sm:$0xf]
        %v3723 = vld [vmem:[%s5 + $0x30] sm:$0xf]
        %v3724 = vld [vmem:[%s5 + $0x34] sm:$0xf]
        %v3725 = vld [vmem:[%s5 + $0x38] sm:$0xf]
        %v3726 = vld [vmem:[%s5 + $0x3c] sm:$0xf]
        %v3727 = vld [vmem:[%s5 + $0x40] sm:$0xf]
        %v3728 = vld [vmem:[%s5 + $0x44] sm:$0xf]
        %v3729 = vld [vmem:[%s5 + $0x48] sm:$0xf]
        %v3730 = vld [vmem:[%s5 + $0x4c] sm:$0xf]
        %v3731 = vld [vmem:[%s5 + $0x50] sm:$0xf]
        %v3732 = vld [vmem:[%s5 + $0x54] sm:$0xf]
        %v3733 = vld [vmem:[%s5 + $0x58] sm:$0xf]
        %v3734 = vld [vmem:[%s5 + $0x5c] sm:$0xf]
        %v3735 = vld [vmem:[%s5 + $0x60] sm:$0xf]
        %v3736 = vld [vmem:[%s5 + $0x64] sm:$0xf]
        %v3737 = vld [vmem:[%s5 + $0x68] sm:$0xf]
        %v3738 = vld [vmem:[%s5 + $0x6c] sm:$0xf]
        %v3739 = vld [vmem:[%s5 + $0x70] sm:$0xf]
        %v3740 = vld [vmem:[%s5 + $0x74] sm:$0xf]
        %v3741 = vld [vmem:[%s5 + $0x78] sm:$0xf]
        %v3742 = vld [vmem:[%s5 + $0x7c] sm:$0xf]
        %v3743 = vld [vmem:[#allocation7] sm:$0x1]
        %v3745 = vlaneseq
        %v3746 = vshrl.u32 %v3745, 7
        %v3747 = vsub.s32 0, %v3746
        %v3748 = vrot.slane %v3743, %v3747
        %v3782 = vunpack.c.l.b16 %v3711
        %v3783 = vunpack.c.l.b16 %v3712
        %v3784 = vunpack.c.l.b16 %v3713
        %v3785 = vunpack.c.l.b16 %v3714
        %v3786 = vunpack.c.l.b16 %v3715
        %v3787 = vunpack.c.l.b16 %v3716
        %v3788 = vunpack.c.l.b16 %v3717
        %v3789 = vunpack.c.l.b16 %v3718
        %v3790 = vunpack.c.l.b16 %v3719
        %v3791 = vunpack.c.l.b16 %v3720
        %v3792 = vunpack.c.l.b16 %v3721
        %v3793 = vunpack.c.l.b16 %v3722
        %v3794 = vunpack.c.l.b16 %v3723
        %v3795 = vunpack.c.l.b16 %v3724
        %v3796 = vunpack.c.l.b16 %v3725
        %v3797 = vunpack.c.l.b16 %v3726
        %v3798 = vunpack.c.l.b16 %v3727
        %v3799 = vunpack.c.l.b16 %v3728
        %v3800 = vunpack.c.l.b16 %v3729
        %v3801 = vunpack.c.l.b16 %v3730
        %v3802 = vunpack.c.l.b16 %v3731
        %v3803 = vunpack.c.l.b16 %v3732
        %v3804 = vunpack.c.l.b16 %v3733
        %v3805 = vunpack.c.l.b16 %v3734
        %v3806 = vunpack.c.l.b16 %v3735
        %v3807 = vunpack.c.l.b16 %v3736
        %v3808 = vunpack.c.l.b16 %v3737
        %v3809 = vunpack.c.l.b16 %v3738
        %v3810 = vunpack.c.l.b16 %v3739
        %v3811 = vunpack.c.l.b16 %v3740
        %v3812 = vunpack.c.l.b16 %v3741
        %v3813 = vunpack.c.l.b16 %v3742
        %v3814 = vpack.c.b16 %v3783, %v3782
        %v3815 = vpack.c.b16 %v3785, %v3784
        %v3816 = vpack.c.b16 %v3787, %v3786
        %v3817 = vpack.c.b16 %v3789, %v3788
        %v3818 = vpack.c.b16 %v3791, %v3790
        %v3819 = vpack.c.b16 %v3793, %v3792
        %v3820 = vpack.c.b16 %v3795, %v3794
        %v3821 = vpack.c.b16 %v3797, %v3796
        %v3822 = vpack.c.b16 %v3799, %v3798
        %v3823 = vpack.c.b16 %v3801, %v3800
        %v3824 = vpack.c.b16 %v3803, %v3802
        %v3825 = vpack.c.b16 %v3805, %v3804
        %v3826 = vpack.c.b16 %v3807, %v3806
        %v3827 = vpack.c.b16 %v3809, %v3808
        %v3828 = vpack.c.b16 %v3811, %v3810
        %v3829 = vpack.c.b16 %v3813, %v3812
        %3846 = vmatprep.subr.bf16.mxu0 0
        %3847 = vmatpush1.bf16.msra.mxu0 %v3814
        %3848 = vmatprep.subr.bf16.mxu0 0
        %3849 = vmatpush1.bf16.msra.mxu0 %v3815
        %3850 = vmatprep.subr.bf16.mxu0 0
        %3851 = vmatpush1.bf16.msra.mxu0 %v3816
        %3852 = vmatprep.subr.bf16.mxu0 0
        %3853 = vmatpush1.bf16.msra.mxu0 %v3817
        %3854 = vmatprep.subr.bf16.mxu0 0
        %3855 = vmatpush1.bf16.msra.mxu0 %v3818
        %3856 = vmatprep.subr.bf16.mxu0 0
        %3857 = vmatpush1.bf16.msra.mxu0 %v3819
        %3858 = vmatprep.subr.bf16.mxu0 0
        %3859 = vmatpush1.bf16.msra.mxu0 %v3820
        %3860 = vmatprep.subr.bf16.mxu0 0
        %3861 = vmatpush1.bf16.msra.mxu0 %v3821
        %3862 = vmatprep.subr.bf16.mxu0 0
        %3863 = vmatpush1.bf16.msra.mxu0 %v3822
        %3864 = vmatprep.subr.bf16.mxu0 0
        %3865 = vmatpush1.bf16.msra.mxu0 %v3823
        %3866 = vmatprep.subr.bf16.mxu0 0
        %3867 = vmatpush1.bf16.msra.mxu0 %v3824
        %3868 = vmatprep.subr.bf16.mxu0 0
        %3869 = vmatpush1.bf16.msra.mxu0 %v3825
        %3870 = vmatprep.subr.bf16.mxu0 0
        %3871 = vmatpush1.bf16.msra.mxu0 %v3826
        %3872 = vmatprep.subr.bf16.mxu0 0
        %3873 = vmatpush1.bf16.msra.mxu0 %v3827
        %3874 = vmatprep.subr.bf16.mxu0 0
        %3875 = vmatpush1.bf16.msra.mxu0 %v3828
        %3876 = vmatprep.subr.bf16.mxu0 0
        %3877 = vmatpush1.bf16.msra.mxu0 %v3829
        %3878 = vmatprep.mubr.bf16.mxu0 %v3696
        %3879 = vmatmul.mubr.bf16.gmra.mrb[0].mxu0 %v3695
        %v3880 = vpop.f32.mrb[0].mxu0
        %v3881 = vadd.f32 %v3748, %v3880
        %v3882 = vpop.f32.mrb[0].mxu0
        %v3883 = vpop.f32.mrb[0].mxu0
        %v3884 = vadd.f32 %v3748, %v3883
        %v3885 = vpop.f32.mrb[0].mxu0
        %3886 = vmatprep.mubr.bf16.mxu0 %v3698
        %3887 = vmatmul.mubr.bf16.gmra.mrb[0].mxu0 %v3697
        %v3888 = vpop.f32.mrb[0].mxu0
        %v3889 = vadd.f32 %v3748, %v3888
        %v3890 = vpop.f32.mrb[0].mxu0
        %v3891 = vpop.f32.mrb[0].mxu0
        %v3892 = vadd.f32 %v3748, %v3891
        %v3893 = vpop.f32.mrb[0].mxu0
        %3894 = vmatprep.mubr.bf16.mxu0 %v3700
        %3895 = vmatmul.mubr.bf16.gmra.mrb[0].mxu0 %v3699
        %v3896 = vpop.f32.mrb[0].mxu0
        %v3897 = vadd.f32 %v3748, %v3896
        %v3898 = vpop.f32.mrb[0].mxu0
        %v3899 = vpop.f32.mrb[0].mxu0
        %v3900 = vadd.f32 %v3748, %v3899
        %v3901 = vpop.f32.mrb[0].mxu0
        %3902 = vmatprep.mubr.bf16.mxu0 %v3702
        %3903 = vmatmul.mubr.bf16.gmra.mrb[0].mxu0 %v3701
        %v3904 = vpop.f32.mrb[0].mxu0
        %v3905 = vadd.f32 %v3748, %v3904
        %v3906 = vpop.f32.mrb[0].mxu0
        %v3907 = vpop.f32.mrb[0].mxu0
        %v3908 = vadd.f32 %v3748, %v3907
        %v3909 = vpop.f32.mrb[0].mxu0
        %3910 = vmatprep.mubr.bf16.mxu0 %v3704
        %3911 = vmatmul.mubr.bf16.gmra.mrb[0].mxu0 %v3703
        %v3912 = vpop.f32.mrb[0].mxu0
        %v3913 = vadd.f32 %v3748, %v3912
        %v3914 = vpop.f32.mrb[0].mxu0
        %v3915 = vpop.f32.mrb[0].mxu0
        %v3916 = vadd.f32 %v3748, %v3915
        %v3917 = vpop.f32.mrb[0].mxu0
        %3918 = vmatprep.mubr.bf16.mxu0 %v3706
        %3919 = vmatmul.mubr.bf16.gmra.mrb[0].mxu0 %v3705
        %v3920 = vpop.f32.mrb[0].mxu0
        %v3921 = vadd.f32 %v3748, %v3920
        %v3922 = vpop.f32.mrb[0].mxu0
        %v3923 = vpop.f32.mrb[0].mxu0
        %v3924 = vadd.f32 %v3748, %v3923
        %v3925 = vpop.f32.mrb[0].mxu0
        %3926 = vmatprep.mubr.bf16.mxu0 %v3708
        %3927 = vmatmul.mubr.bf16.gmra.mrb[0].mxu0 %v3707
        %v3928 = vpop.f32.mrb[0].mxu0
        %v3929 = vadd.f32 %v3748, %v3928
        %v3930 = vpop.f32.mrb[0].mxu0
        %v3931 = vpop.f32.mrb[0].mxu0
        %v3932 = vadd.f32 %v3748, %v3931
        %v3933 = vpop.f32.mrb[0].mxu0
        %3934 = vmatprep.mubr.bf16.mxu0 %v3710
        %3935 = vmatmul.mubr.bf16.gmra.mrb[0].mxu0 %v3709
        %v3936 = vpop.f32.mrb[0].mxu0
        %v3937 = vadd.f32 %v3748, %v3936
        %v3938 = vpop.f32.mrb[0].mxu0
        %v3939 = vpop.f32.mrb[0].mxu0
        %v3940 = vadd.f32 %v3748, %v3939
        %v3941 = vpop.f32.mrb[0].mxu0
        %3942 = vdwg.mxu0
        %v3943 = vmax.f32 %v3881, 0.0
        %v3944 = vmax.f32 %v3884, 0.0
        %v3945 = vmax.f32 %v3889, 0.0
        %v3946 = vmax.f32 %v3892, 0.0
        %v3947 = vmax.f32 %v3897, 0.0
        %v3948 = vmax.f32 %v3900, 0.0
        %v3949 = vmax.f32 %v3905, 0.0
        %v3950 = vmax.f32 %v3908, 0.0
        %v3951 = vmax.f32 %v3913, 0.0
        %v3952 = vmax.f32 %v3916, 0.0
        %v3953 = vmax.f32 %v3921, 0.0
        %v3954 = vmax.f32 %v3924, 0.0
        %v3955 = vmax.f32 %v3929, 0.0
        %v3956 = vmax.f32 %v3932, 0.0
        %v3957 = vmax.f32 %v3937, 0.0
        %v3958 = vmax.f32 %v3940, 0.0
        %v3959 = vpack.c.bf16 %v3944, %v3943
        %v3960 = vpack.c.bf16 %v3946, %v3945
        %v3961 = vpack.c.bf16 %v3948, %v3947
        %v3962 = vpack.c.bf16 %v3950, %v3949
        %v3963 = vpack.c.bf16 %v3952, %v3951
        %v3964 = vpack.c.bf16 %v3954, %v3953
        %v3965 = vpack.c.bf16 %v3956, %v3955
        %v3966 = vpack.c.bf16 %v3958, %v3957
        %v3967 = vld [vmem:[#allocation8] sm:$0xf]
        %v3968 = vld [vmem:[#allocation8 + $0x4] sm:$0xf]
        %v3969 = vld [vmem:[#allocation8 + $0x8] sm:$0xf]
        %v3970 = vld [vmem:[#allocation8 + $0xc] sm:$0xf]
        %v3971 = vld [vmem:[#allocation8 + $0x10] sm:$0xf]
        %v3972 = vld [vmem:[#allocation8 + $0x14] sm:$0xf]
        %v3973 = vld [vmem:[#allocation8 + $0x18] sm:$0xf]
        %v3974 = vld [vmem:[#allocation8 + $0x1c] sm:$0xf]
        %v3975 = vld [vmem:[#allocation8 + $0x20] sm:$0xf]
        %v3976 = vld [vmem:[#allocation8 + $0x24] sm:$0xf]
        %v3977 = vld [vmem:[#allocation8 + $0x28] sm:$0xf]
        %v3978 = vld [vmem:[#allocation8 + $0x2c] sm:$0xf]
        %v3979 = vld [vmem:[#allocation8 + $0x30] sm:$0xf]
        %v3980 = vld [vmem:[#allocation8 + $0x34] sm:$0xf]
        %v3981 = vld [vmem:[#allocation8 + $0x38] sm:$0xf]
        %v3982 = vld [vmem:[#allocation8 + $0x3c] sm:$0xf]
        %v3983 = vld [vmem:[#allocation10] sm:$0x1]
        %v3985 = vlaneseq
        %v3986 = vshrl.u32 %v3985, 7
        %v3987 = vsub.s32 0, %v3986
        %v3988 = vrot.slane %v3983, %v3987
        %v4006 = vunpack.c.l.b16 %v3967
        %v4007 = vunpack.c.l.b16 %v3968
        %v4008 = vunpack.c.l.b16 %v3969
        %v4009 = vunpack.c.l.b16 %v3970
        %v4010 = vunpack.c.l.b16 %v3971
        %v4011 = vunpack.c.l.b16 %v3972
        %v4012 = vunpack.c.l.b16 %v3973
        %v4013 = vunpack.c.l.b16 %v3974
        %v4014 = vunpack.c.l.b16 %v3975
        %v4015 = vunpack.c.l.b16 %v3976
        %v4016 = vunpack.c.l.b16 %v3977
        %v4017 = vunpack.c.l.b16 %v3978
        %v4018 = vunpack.c.l.b16 %v3979
        %v4019 = vunpack.c.l.b16 %v3980
        %v4020 = vunpack.c.l.b16 %v3981
        %v4021 = vunpack.c.l.b16 %v3982
        %v4022 = vpack.c.b16 %v4007, %v4006
        %v4023 = vpack.c.b16 %v4009, %v4008
        %v4024 = vpack.c.b16 %v4011, %v4010
        %v4025 = vpack.c.b16 %v4013, %v4012
        %v4026 = vpack.c.b16 %v4015, %v4014
        %v4027 = vpack.c.b16 %v4017, %v4016
        %v4028 = vpack.c.b16 %v4019, %v4018
        %v4029 = vpack.c.b16 %v4021, %v4020
        %4038 = vmatprep.subr.bf16.mxu0 0
        %4039 = vmatpush1.bf16.msra.mxu0 %v4022
        %4040 = vmatprep.subr.bf16.mxu0 0
        %4041 = vmatpush1.bf16.msra.mxu0 %v4023
        %4042 = vmatprep.subr.bf16.mxu0 0
        %4043 = vmatpush1.bf16.msra.mxu0 %v4024
        %4044 = vmatprep.subr.bf16.mxu0 0
        %4045 = vmatpush1.bf16.msra.mxu0 %v4025
        %4046 = vmatprep.subr.bf16.mxu0 0
        %4047 = vmatpush1.bf16.msra.mxu0 %v4026
        %4048 = vmatprep.subr.bf16.mxu0 0
        %4049 = vmatpush1.bf16.msra.mxu0 %v4027
        %4050 = vmatprep.subr.bf16.mxu0 0
        %4051 = vmatpush1.bf16.msra.mxu0 %v4028
        %4052 = vmatprep.subr.bf16.mxu0 0
        %4053 = vmatpush1.bf16.msra.mxu0 %v4029
        %4054 = vmatprep.subr.bf16.mxu0 0
        %4055 = vmatpush1.bf16.msra.mxu0 0
        %4056 = vmatprep.subr.bf16.mxu0 0
        %4057 = vmatpush1.bf16.msra.mxu0 0
        %4058 = vmatprep.subr.bf16.mxu0 0
        %4059 = vmatpush1.bf16.msra.mxu0 0
        %4060 = vmatprep.subr.bf16.mxu0 0
        %4061 = vmatpush1.bf16.msra.mxu0 0
        %4062 = vmatprep.subr.bf16.mxu0 0
        %4063 = vmatpush1.bf16.msra.mxu0 0
        %4064 = vmatprep.subr.bf16.mxu0 0
        %4065 = vmatpush1.bf16.msra.mxu0 0
        %4066 = vmatprep.subr.bf16.mxu0 0
        %4067 = vmatpush1.bf16.msra.mxu0 0
        %4068 = vmatprep.subr.bf16.mxu0 0
        %4069 = vmatpush1.bf16.msra.mxu0 0
        %4070 = vmatprep.mubr.bf16.mxu0 0
        %4071 = vmatmul.mubr.bf16.gmra.mrb[0].mxu0 %v3959
        %v4072 = vpop.f32.mrb[0].mxu0
        %v4073 = vadd.f32 %v3988, %v4072
        %v4074 = vpop.f32.mrb[0].mxu0
        %v4075 = vpop.f32.mrb[0].mxu0
        %v4076 = vadd.f32 %v3988, %v4075
        %v4077 = vpop.f32.mrb[0].mxu0
        %4078 = vmatprep.mubr.bf16.mxu0 0
        %4079 = vmatmul.mubr.bf16.gmra.mrb[0].mxu0 %v3960
        %v4080 = vpop.f32.mrb[0].mxu0
        %v4081 = vadd.f32 %v3988, %v4080
        %v4082 = vpop.f32.mrb[0].mxu0
        %v4083 = vpop.f32.mrb[0].mxu0
        %v4084 = vadd.f32 %v3988, %v4083
        %v4085 = vpop.f32.mrb[0].mxu0
        %4086 = vmatprep.mubr.bf16.mxu0 0
        %4087 = vmatmul.mubr.bf16.gmra.mrb[0].mxu0 %v3961
        %v4088 = vpop.f32.mrb[0].mxu0
        %v4089 = vadd.f32 %v3988, %v4088
        %v4090 = vpop.f32.mrb[0].mxu0
        %v4091 = vpop.f32.mrb[0].mxu0
        %v4092 = vadd.f32 %v3988, %v4091
        %v4093 = vpop.f32.mrb[0].mxu0
        %4094 = vmatprep.mubr.bf16.mxu0 0
        %4095 = vmatmul.mubr.bf16.gmra.mrb[0].mxu0 %v3962
        %v4096 = vpop.f32.mrb[0].mxu0
        %v4097 = vadd.f32 %v3988, %v4096
        %v4098 = vpop.f32.mrb[0].mxu0
        %v4099 = vpop.f32.mrb[0].mxu0
        %v4100 = vadd.f32 %v3988, %v4099
        %v4101 = vpop.f32.mrb[0].mxu0
        %4102 = vmatprep.mubr.bf16.mxu0 0
        %4103 = vmatmul.mubr.bf16.gmra.mrb[0].mxu0 %v3963
        %v4104 = vpop.f32.mrb[0].mxu0
        %v4105 = vadd.f32 %v3988, %v4104
        %v4106 = vpop.f32.mrb[0].mxu0
        %v4107 = vpop.f32.mrb[0].mxu0
        %v4108 = vadd.f32 %v3988, %v4107
        %v4109 = vpop.f32.mrb[0].mxu0
        %4110 = vmatprep.mubr.bf16.mxu0 0
        %4111 = vmatmul.mubr.bf16.gmra.mrb[0].mxu0 %v3964
        %v4112 = vpop.f32.mrb[0].mxu0
        %v4113 = vadd.f32 %v3988, %v4112
        %v4114 = vpop.f32.mrb[0].mxu0
        %v4115 = vpop.f32.mrb[0].mxu0
        %v4116 = vadd.f32 %v3988, %v4115
        %v4117 = vpop.f32.mrb[0].mxu0
        %4118 = vmatprep.mubr.bf16.mxu0 0
        %4119 = vmatmul.mubr.bf16.gmra.mrb[0].mxu0 %v3965
        %v4120 = vpop.f32.mrb[0].mxu0
        %v4121 = vadd.f32 %v3988, %v4120
        %v4122 = vpop.f32.mrb[0].mxu0
        %v4123 = vpop.f32.mrb[0].mxu0
        %v4124 = vadd.f32 %v3988, %v4123
        %v4125 = vpop.f32.mrb[0].mxu0
        %4126 = vmatprep.mubr.bf16.mxu0 0
        %4127 = vmatmul.mubr.bf16.gmra.mrb[0].mxu0 %v3966
        %v4128 = vpop.f32.mrb[0].mxu0
        %v4129 = vadd.f32 %v3988, %v4128
        %v4130 = vpop.f32.mrb[0].mxu0
        %v4131 = vpop.f32.mrb[0].mxu0
        %v4132 = vadd.f32 %v3988, %v4131
        %v4133 = vpop.f32.mrb[0].mxu0
        %4134 = vdwg.mxu0
        %v4135 = vmax.f32 %v4073, 0.0
        %v4136 = vmax.f32 %v4076, 0.0
        %v4137 = vmax.f32 %v4081, 0.0
        %v4138 = vmax.f32 %v4084, 0.0
        %v4139 = vmax.f32 %v4089, 0.0
        %v4140 = vmax.f32 %v4092, 0.0
        %v4141 = vmax.f32 %v4097, 0.0
        %v4142 = vmax.f32 %v4100, 0.0
        %v4143 = vmax.f32 %v4105, 0.0
        %v4144 = vmax.f32 %v4108, 0.0
        %v4145 = vmax.f32 %v4113, 0.0
        %v4146 = vmax.f32 %v4116, 0.0
        %v4147 = vmax.f32 %v4121, 0.0
        %v4148 = vmax.f32 %v4124, 0.0
        %v4149 = vmax.f32 %v4129, 0.0
        %v4150 = vmax.f32 %v4132, 0.0
        %v4151 = vpack.c.bf16 %v4136, %v4135
        %v4152 = vpack.c.bf16 %v4138, %v4137
        %v4153 = vpack.c.bf16 %v4140, %v4139
        %v4154 = vpack.c.bf16 %v4142, %v4141
        %v4155 = vpack.c.bf16 %v4144, %v4143
        %v4156 = vpack.c.bf16 %v4146, %v4145
        %v4157 = vpack.c.bf16 %v4148, %v4147
        %v4158 = vpack.c.bf16 %v4150, %v4149
        %v4159 = vld [vmem:[#allocation11] sm:$0xf]
        %v4160 = vld [vmem:[#allocation11 + $0x4] sm:$0xf]
        %v4161 = vld [vmem:[#allocation11 + $0x8] sm:$0xf]
        %v4162 = vld [vmem:[#allocation11 + $0xc] sm:$0xf]
        %v4163 = vld [vmem:[#allocation11 + $0x10] sm:$0xf]
        %v4164 = vld [vmem:[#allocation11 + $0x14] sm:$0xf]
        %v4165 = vld [vmem:[#allocation11 + $0x18] sm:$0xf]
        %v4166 = vld [vmem:[#allocation11 + $0x1c] sm:$0xf]
        %v4167 = vld [vmem:[#allocation11 + $0x20] sm:$0xf]
        %v4168 = vld [vmem:[#allocation11 + $0x24] sm:$0xf]
        %v4169 = vld [vmem:[#allocation11 + $0x28] sm:$0xf]
        %v4170 = vld [vmem:[#allocation11 + $0x2c] sm:$0xf]
        %v4171 = vld [vmem:[#allocation11 + $0x30] sm:$0xf]
        %v4172 = vld [vmem:[#allocation11 + $0x34] sm:$0xf]
        %v4173 = vld [vmem:[#allocation11 + $0x38] sm:$0xf]
        %v4174 = vld [vmem:[#allocation11 + $0x3c] sm:$0xf]
        %v4175 = vld [vmem:[%s10] sm:$0x1]
        %v4177 = vlaneseq
        %v4178 = vshrl.u32 %v4177, 7
        %v4179 = vsub.s32 0, %v4178
        %v4180 = vrot.slane %v4175, %v4179
        %v4198 = vunpack.c.l.b16 %v4159
        %v4199 = vunpack.c.l.b16 %v4160
        %v4200 = vunpack.c.l.b16 %v4161
        %v4201 = vunpack.c.l.b16 %v4162
        %v4202 = vunpack.c.l.b16 %v4163
        %v4203 = vunpack.c.l.b16 %v4164
        %v4204 = vunpack.c.l.b16 %v4165
        %v4205 = vunpack.c.l.b16 %v4166
        %v4206 = vunpack.c.l.b16 %v4167
        %v4207 = vunpack.c.l.b16 %v4168
        %v4208 = vunpack.c.l.b16 %v4169
        %v4209 = vunpack.c.l.b16 %v4170
        %v4210 = vunpack.c.l.b16 %v4171
        %v4211 = vunpack.c.l.b16 %v4172
        %v4212 = vunpack.c.l.b16 %v4173
        %v4213 = vunpack.c.l.b16 %v4174
        %v4214 = vpack.c.b16 %v4199, %v4198
        %v4215 = vpack.c.b16 %v4201, %v4200
        %v4216 = vpack.c.b16 %v4203, %v4202
        %v4217 = vpack.c.b16 %v4205, %v4204
        %v4218 = vpack.c.b16 %v4207, %v4206
        %v4219 = vpack.c.b16 %v4209, %v4208
        %v4220 = vpack.c.b16 %v4211, %v4210
        %v4221 = vpack.c.b16 %v4213, %v4212
        %4230 = vmatprep.subr.bf16.mxu0 0
        %4231 = vmatpush1.bf16.msra.mxu0 %v4214
        %4232 = vmatprep.subr.bf16.mxu0 0
        %4233 = vmatpush1.bf16.msra.mxu0 %v4215
        %4234 = vmatprep.subr.bf16.mxu0 0
        %4235 = vmatpush1.bf16.msra.mxu0 %v4216
        %4236 = vmatprep.subr.bf16.mxu0 0
        %4237 = vmatpush1.bf16.msra.mxu0 %v4217
        %4238 = vmatprep.subr.bf16.mxu0 0
        %4239 = vmatpush1.bf16.msra.mxu0 %v4218
        %4240 = vmatprep.subr.bf16.mxu0 0
        %4241 = vmatpush1.bf16.msra.mxu0 %v4219
        %4242 = vmatprep.subr.bf16.mxu0 0
        %4243 = vmatpush1.bf16.msra.mxu0 %v4220
        %4244 = vmatprep.subr.bf16.mxu0 0
        %4245 = vmatpush1.bf16.msra.mxu0 %v4221
        %4246 = vmatprep.subr.bf16.mxu0 0
        %4247 = vmatpush1.bf16.msra.mxu0 0
        %4248 = vmatprep.subr.bf16.mxu0 0
        %4249 = vmatpush1.bf16.msra.mxu0 0
        %4250 = vmatprep.subr.bf16.mxu0 0
        %4251 = vmatpush1.bf16.msra.mxu0 0
        %4252 = vmatprep.subr.bf16.mxu0 0
        %4253 = vmatpush1.bf16.msra.mxu0 0
        %4254 = vmatprep.subr.bf16.mxu0 0
        %4255 = vmatpush1.bf16.msra.mxu0 0
        %4256 = vmatprep.subr.bf16.mxu0 0
        %4257 = vmatpush1.bf16.msra.mxu0 0
        %4258 = vmatprep.subr.bf16.mxu0 0
        %4259 = vmatpush1.bf16.msra.mxu0 0
        %4260 = vmatprep.subr.bf16.mxu0 0
        %4261 = vmatpush1.bf16.msra.mxu0 0
        %4262 = vmatprep.mubr.bf16.mxu0 0
        %4263 = vmatmul.mubr.bf16.gmra.mrb[0].mxu0 %v4151
        %v4264 = vpop.f32.mrb[0].mxu0
        %v4265 = vadd.f32 %v4180, %v4264
        %v4266 = vpop.f32.mrb[0].mxu0
        %v4267 = vpop.f32.mrb[0].mxu0
        %v4268 = vadd.f32 %v4180, %v4267
        %v4269 = vpop.f32.mrb[0].mxu0
        %4270 = vmatprep.mubr.bf16.mxu0 0
        %4271 = vmatmul.mubr.bf16.gmra.mrb[0].mxu0 %v4152
        %v4272 = vpop.f32.mrb[0].mxu0
        %v4273 = vadd.f32 %v4180, %v4272
        %v4274 = vpop.f32.mrb[0].mxu0
        %v4275 = vpop.f32.mrb[0].mxu0
        %v4276 = vadd.f32 %v4180, %v4275
        %v4277 = vpop.f32.mrb[0].mxu0
        %4278 = vmatprep.mubr.bf16.mxu0 0
        %4279 = vmatmul.mubr.bf16.gmra.mrb[0].mxu0 %v4153
        %v4280 = vpop.f32.mrb[0].mxu0
        %v4281 = vadd.f32 %v4180, %v4280
        %v4282 = vpop.f32.mrb[0].mxu0
        %v4283 = vpop.f32.mrb[0].mxu0
        %v4284 = vadd.f32 %v4180, %v4283
        %v4285 = vpop.f32.mrb[0].mxu0
        %4286 = vmatprep.mubr.bf16.mxu0 0
        %4287 = vmatmul.mubr.bf16.gmra.mrb[0].mxu0 %v4154
        %v4288 = vpop.f32.mrb[0].mxu0
        %v4289 = vadd.f32 %v4180, %v4288
        %v4290 = vpop.f32.mrb[0].mxu0
        %v4291 = vpop.f32.mrb[0].mxu0
        %v4292 = vadd.f32 %v4180, %v4291
        %v4293 = vpop.f32.mrb[0].mxu0
        %4294 = vmatprep.mubr.bf16.mxu0 0
        %4295 = vmatmul.mubr.bf16.gmra.mrb[0].mxu0 %v4155
        %v4296 = vpop.f32.mrb[0].mxu0
        %v4297 = vadd.f32 %v4180, %v4296
        %v4298 = vpop.f32.mrb[0].mxu0
        %v4299 = vpop.f32.mrb[0].mxu0
        %v4300 = vadd.f32 %v4180, %v4299
        %v4301 = vpop.f32.mrb[0].mxu0
        %4302 = vmatprep.mubr.bf16.mxu0 0
        %4303 = vmatmul.mubr.bf16.gmra.mrb[0].mxu0 %v4156
        %v4304 = vpop.f32.mrb[0].mxu0
        %v4305 = vadd.f32 %v4180, %v4304
        %v4306 = vpop.f32.mrb[0].mxu0
        %v4307 = vpop.f32.mrb[0].mxu0
        %v4308 = vadd.f32 %v4180, %v4307
        %v4309 = vpop.f32.mrb[0].mxu0
        %4310 = vmatprep.mubr.bf16.mxu0 0
        %4311 = vmatmul.mubr.bf16.gmra.mrb[0].mxu0 %v4157
        %v4312 = vpop.f32.mrb[0].mxu0
        %v4313 = vadd.f32 %v4180, %v4312
        %v4314 = vpop.f32.mrb[0].mxu0
        %v4315 = vpop.f32.mrb[0].mxu0
        %v4316 = vadd.f32 %v4180, %v4315
        %v4317 = vpop.f32.mrb[0].mxu0
        %4318 = vmatprep.mubr.bf16.mxu0 0
        %4319 = vmatmul.mubr.bf16.gmra.mrb[0].mxu0 %v4158
        %v4320 = vpop.f32.mrb[0].mxu0
        %v4321 = vadd.f32 %v4180, %v4320
        %v4322 = vpop.f32.mrb[0].mxu0
        %v4323 = vpop.f32.mrb[0].mxu0
        %v4324 = vadd.f32 %v4180, %v4323
        %v4325 = vpop.f32.mrb[0].mxu0
        %4326 = vdwg.mxu0
        %4327 = vst [vmem:[%s464] sm:$0xff] %v4265
        %4328 = vst [vmem:[%s464 + $0x8] sm:$0xff] %v4268
        %4329 = vst [vmem:[%s464 + $0x10] sm:$0xff] %v4273
        %4330 = vst [vmem:[%s464 + $0x18] sm:$0xff] %v4276
        %4331 = vst [vmem:[%s464 + $0x20] sm:$0xff] %v4281
        %4332 = vst [vmem:[%s464 + $0x28] sm:$0xff] %v4284
        %4333 = vst [vmem:[%s464 + $0x30] sm:$0xff] %v4289
        %4334 = vst [vmem:[%s464 + $0x38] sm:$0xff] %v4292
        %4335 = vst [vmem:[%s464 + $0x40] sm:$0xff] %v4297
        %4336 = vst [vmem:[%s464 + $0x48] sm:$0xff] %v4300
        %4337 = vst [vmem:[%s464 + $0x50] sm:$0xff] %v4305
        %4338 = vst [vmem:[%s464 + $0x58] sm:$0xff] %v4308
        %4339 = vst [vmem:[%s464 + $0x60] sm:$0xff] %v4313
        %4340 = vst [vmem:[%s464 + $0x68] sm:$0xff] %v4316
        %4341 = vst [vmem:[%s464 + $0x70] sm:$0xff] %v4321
        %4342 = vst [vmem:[%s464 + $0x78] sm:$0xff] %v4324
        %s4343 = sand.u32 %s273, 1
        %s4344 = scalar_lea.sflag [#allocation4], %s4343
        %s4345 = sand.u32 %s273, 1
        %s4346 = smul.addr %s4345, 128
        %s4347 = scalar_lea.vmem [#allocation13], %s4346
        // Predicated region
        $region89: #{tpu_custom_call.1} parent=63 // pred_check
          %p4348 = pneg %p283
        $region90: #{tpu_custom_call.1} parent=63 // pred_check_branch
          %4350 = sbr.rel (%p4348) target = $region92
        $region91: #{tpu_custom_call.1} parent=63 // pred_region
          %s4351 = smul.u32 16, %s29
          %s4353 = ssub.s32 2048, 2048
          %4354 = vsyncadd %s4344, %s4353
          %s4355 = smul.addr %s4351, 128
          %s4356 = scalar_lea.hbm %s11, %s4355
          %s4357 = sshll.u32 %s4347, 4
          %s4358 = int_to_ptr.vmem [resolvable:$true] %s4357
          %4363 = dma.vmem_to_hbm [thread:$0]  %s4358, 2048, %s4356, %s4344, 128, 128, 8
        $region92: #{tpu_custom_call.1} parent=63 // pred_fallthru
          _
      $region64: #{tpu_custom_call.1} parent=5 // pred_fallthru
        _
      %p4364 = scmp.le.s32.totalorder 2, %s24
      // Predicated region
      $region93: #{tpu_custom_call.1} parent=5 // pred_check
        %p4365 = pneg %p4364
      $region94: #{tpu_custom_call.1} parent=5 // pred_check_branch
        %4367 = sbr.rel (%p4365) target = $region96
      $region95: #{tpu_custom_call.1} parent=5 // pred_region
        %s4368 = ssub.s32 %s24, 2
        // Predicated region
        $region97: #{tpu_custom_call.1} parent=95 // pred_check
          %p4369 = pneg %p289
        $region98: #{tpu_custom_call.1} parent=95 // pred_check_branch
          %4371 = sbr.rel (%p4369) target = $region100
        $region99: #{tpu_custom_call.1} parent=95 // pred_region
          %s4372 = sand.u32 %s274, 1
          %s4373 = scalar_lea.sflag [#allocation4], %s4372
          %s4374 = sand.u32 %s274, 1
          %s4375 = smul.addr %s4374, 128
          %s4376 = scalar_lea.vmem [#allocation13], %s4375
          %4377 = dma.done %s4373, 2048
        $region100: #{tpu_custom_call.1} parent=95 // pred_fallthru
          _
      $region96: #{tpu_custom_call.1} parent=5 // pred_fallthru
        _
    $region6: #{tpu_custom_call.1} parent=1 // loop_footer
      %s28 = sadd.s32 1, %s24
    $region7: #{tpu_custom_call.1} parent=1 // loop_footer_branch
      %23 = sbr.rel target = $region3
    $region8: #{tpu_custom_call.1} parent=1 // loop_exit
      _
    %4378 = vsyncpa [#allocation3], 1
    %s4379 = scalar_lea.sflag [#allocation3], 1
    %4380 = vsyncpa %s4379, 1
    %4381 = vsyncpa [#allocation6], 1
    %4382 = vsyncpa [#allocation9], 1
    %4383 = vsyncpa [#allocation12], 1
    %4384 = vsyncpa [#allocation4], 1
    %s4385 = scalar_lea.sflag [#allocation4], 1
    %4386 = vsyncpa %s4385, 1

</llo_original>
